<compile_context>
chip_gen: v7x
topology: tpu7x:2x2x1
jax: 0.10.0
libtpu: 0.0.40
codegen_flags: <defaults>
</compile_context>

<pallas_src>
import functools

import jax
import jax.numpy as jnp
from jax import lax
from jax.experimental import pallas as pl
from jax.experimental.pallas import tpu as pltpu

LN_EPS = 1e-5       # nn.LayerNorm default eps
L2_EPS = 1e-12      # F.normalize default eps
LANE = 128
SUBLANE = 8
ROW_ALIGN = 16      # bf16 minimum sublane tile is (16, 128)


def _round_up(x, m):
    return (x + m - 1) // m * m


def _tpu_hw():
    """Return (vmem_capacity_bytes, num_tensorcores) with conservative fallbacks."""
    vmem_cap = 128 * 1024 * 1024
    n_tc = 1
    try:
        info = pltpu.get_tpu_info()
        cap = getattr(info, "vmem_capacity_bytes", None)
        if cap:
            vmem_cap = int(cap)
        for attr in ("tensorcore_count", "num_tensorcores", "num_cores", "core_count"):
            v = getattr(info, attr, None)
            if isinstance(v, int) and v > 0:
                n_tc = v
                break
    except Exception:
        pass
    # v7x-style parts: 64 MiB VMEM per TensorCore, 2 TensorCores per chip.
    if vmem_cap <= 64 * 1024 * 1024:
        n_tc = max(n_tc, 2)
    return vmem_cap, n_tc


def _vmem_estimate(tile_m, in_p, hid_p, out_p, w_bpe, out_bpe):
    """Honest VMEM footprint estimate (weights single-buffered)."""
    return int(
        2 * tile_m * in_p * w_bpe                 # x row tile (double-buffered)
        + 2 * tile_m * out_p * out_bpe            # output row tile (double-buffered)
        + (in_p * hid_p + hid_p * out_p) * w_bpe  # weights (single-buffered, resident)
        + SUBLANE * (hid_p + out_p) * 4           # bias/gamma/beta slabs
        + tile_m * hid_p * (4 + w_bpe)            # h in f32 + bf16 copy for matmul 2
        + 2 * tile_m * out_p * 4                  # y f32 + elementwise temporaries
    )


def modal_encoder_kernel(x_ref, w1_ref, v1_ref, w2_ref, v2_ref, o_ref, *,
                         hidden_dim, output_dim):
    """One row-tile of Linear->LN->GELU->(Dropout)->Linear->LN->L2-normalize.

    Feature axes may be zero-padded up to a multiple of 128 lanes. `hidden_dim` /
    `output_dim` are the true widths; means use 1/true_dim constants and the
    (x - mu)^2 variance sums are masked over padded lanes, so padding never
    changes the math.  Padded gamma/beta/bias are zero, so padded activation
    columns stay exactly zero through every stage (including the L2 norm).
    """
    inv_h = jnp.float32(1.0 / hidden_dim)
    inv_o = jnp.float32(1.0 / output_dim)

    b1, g1, bt1 = v1_ref[0:1, :], v1_ref[1:2, :], v1_ref[2:3, :]
    b2, g2, bt2 = v2_ref[0:1, :], v2_ref[1:2, :], v2_ref[2:3, :]

    # ---- Linear 1: bf16 operands, f32 accumulation on the MXU ----
    h = jnp.dot(x_ref[...], w1_ref[...], preferred_element_type=jnp.float32) + b1

    # ---- LayerNorm(hidden_dim): two-pass variance, padded lanes masked to 0 ----
    mu = jnp.sum(h, axis=-1, keepdims=True) * inv_h
    d = h - mu
    if h.shape[-1] != hidden_dim:   # static branch: only when lane-padded
        mask = lax.broadcasted_iota(jnp.int32, h.shape, 1) < hidden_dim
        d = jnp.where(mask, d, 0.0)
    var = jnp.sum(d * d, axis=-1, keepdims=True) * inv_h
    h = d * (lax.rsqrt(var + LN_EPS) * g1) + bt1   # padded cols: g1 = bt1 = 0 -> 0

    # ---- GELU (exact erf form, PyTorch default) ----
    h = 0.5 * h * (1.0 + lax.erf(h * 0.7071067811865476))

    # ---- Dropout ----
    # TODO(synk): training-mode dropout (pltpu.prng_seed / prng_random_bits mask)
    # not implemented; eval-mode identity semantics used.

    # ---- Linear 2: cast activations back to the matmul dtype, f32 accumulation ----
    y = jnp.dot(h.astype(w2_ref.dtype), w2_ref[...],
                preferred_element_type=jnp.float32) + b2

    # ---- LayerNorm(output_dim) ----
    mu2 = jnp.sum(y, axis=-1, keepdims=True) * inv_o
    d2 = y - mu2
    if y.shape[-1] != output_dim:
        mask2 = lax.broadcasted_iota(jnp.int32, y.shape, 1) < output_dim
        d2 = jnp.where(mask2, d2, 0.0)
    var2 = jnp.sum(d2 * d2, axis=-1, keepdims=True) * inv_o
    y = d2 * (lax.rsqrt(var2 + LN_EPS) * g2) + bt2

    # ---- F.normalize(p=2, dim=1): y / max(||y||, eps) == y * rsqrt(max(ss, eps^2)) ----
    ss = jnp.sum(y * y, axis=-1, keepdims=True)
    y = y * lax.rsqrt(jnp.maximum(ss, L2_EPS * L2_EPS))

    o_ref[...] = y.astype(o_ref.dtype)


def prepare_params(params, *, matmul_dtype=jnp.bfloat16):
    """One-time weight prep (pad to lane-dense widths + cast to the MXU dtype).

    Hoisted out of the per-forward path: every call then only pads/casts the
    activations instead of re-streaming the full weight matrices through XLA
    pad/convert ops.
    """
    input_dim, hidden_dim = params["w1"].shape
    output_dim = params["w2"].shape[1]
    in_p = _round_up(input_dim, LANE)
    hid_p = _round_up(hidden_dim, LANE)
    out_p = _round_up(output_dim, LANE)
    f32 = jnp.float32

    w1 = jnp.pad(params["w1"].astype(matmul_dtype),
                 ((0, in_p - input_dim), (0, hid_p - hidden_dim)))
    w2 = jnp.pad(params["w2"].astype(matmul_dtype),
                 ((0, hid_p - hidden_dim), (0, out_p - output_dim)))
    # Bias / gamma / beta packed into a single (8, D) f32 slab per LayerNorm stage.
    v1 = jnp.pad(jnp.stack([params["b1"], params["ln1_gamma"],
                            params["ln1_beta"]]).astype(f32),
                 ((0, SUBLANE - 3), (0, hid_p - hidden_dim)))
    v2 = jnp.pad(jnp.stack([params["b2"], params["ln2_gamma"],
                            params["ln2_beta"]]).astype(f32),
                 ((0, SUBLANE - 3), (0, out_p - output_dim)))

    return {
        "w1": jax.block_until_ready(w1), "w2": jax.block_until_ready(w2),
        "v1": jax.block_until_ready(v1), "v2": jax.block_until_ready(v2),
        "dims": (input_dim, hidden_dim, output_dim),
        "matmul_dtype": matmul_dtype,
    }


def modal_encoder(x, prep, *, tile_m=512):
    """x: [N, input_dim] (f32). Returns [N, output_dim], L2-normalized along dim=1."""
    N, input_dim = x.shape
    p_in, hidden_dim, output_dim = prep["dims"]
    assert input_dim == p_in, "input_dim mismatch with prepared params"
    matmul_dtype = prep["matmul_dtype"]

    in_p = prep["w1"].shape[0]
    hid_p = prep["w1"].shape[1]
    out_p = prep["w2"].shape[1]

    vmem_cap, n_tc = _tpu_hw()
    headroom = 12 * 1024 * 1024
    vmem_budget = max(vmem_cap - headroom, 16 * 1024 * 1024)

    w_bpe = jnp.dtype(matmul_dtype).itemsize
    out_bpe = jnp.dtype(x.dtype).itemsize

    # --- Row-tile selection ---
    tile_m = max(ROW_ALIGN, _round_up(tile_m, ROW_ALIGN))
    if n_tc > 1:
        # Keep >= n_tc grid steps so megacore sharding gives every core work.
        tile_m = min(tile_m, max(ROW_ALIGN, _round_up(pl.cdiv(N, n_tc), ROW_ALIGN)))
    tile_m = min(tile_m, _round_up(N, ROW_ALIGN))
    # Shrink the row tile until the estimated footprint fits the VMEM budget.
    while (tile_m > ROW_ALIGN and
           _vmem_estimate(tile_m, in_p, hid_p, out_p, w_bpe, out_bpe) > vmem_budget):
        tile_m = max(ROW_ALIGN, _round_up(tile_m // 2, ROW_ALIGN))
    # TODO(synk): hidden-dim split fallback (second 'arbitrary' grid axis + f32
    # accumulator) for models whose weights alone exceed the VMEM budget on v7x.

    steps = (N + tile_m - 1) // tile_m
    if n_tc > 1 and steps % n_tc:
        steps = _round_up(steps, n_tc)   # balanced work per TensorCore
    n_p = steps * tile_m

    est = _vmem_estimate(tile_m, in_p, hid_p, out_p, w_bpe, out_bpe)
    vmem_limit = int(min(max(int(est * 1.25) + (2 << 20), 32 * 1024 * 1024),
                         vmem_budget))

    # Activation padding (the only per-call pad/cast left on the hot path).
    xp = jnp.pad(x.astype(matmul_dtype), ((0, n_p - N), (0, in_p - input_dim)))

    kernel = functools.partial(modal_encoder_kernel,
                               hidden_dim=hidden_dim, output_dim=output_dim)
    const = lambda i: (0, 0)

    def build_specs(single_buffer):
        def wspec(shape):
            if single_buffer:
                try:
                    # Weight-stationary: constant index_map -> fetched once; a
                    # single VMEM buffer halves the resident weight footprint.
                    return pl.BlockSpec(shape, const, pipeline_mode=pl.Buffered(1))
                except Exception:
                    pass
            return pl.BlockSpec(shape, const)
        return [
            pl.BlockSpec((tile_m, in_p), lambda i: (i, 0)),   # x row tile
            wspec((in_p, hid_p)),                             # w1
            wspec((SUBLANE, hid_p)),                          # b1 / ln1 gamma / ln1 beta
            wspec((hid_p, out_p)),                            # w2
            wspec((SUBLANE, out_p)),                          # b2 / ln2 gamma / ln2 beta
        ]

    def run(single_buffer):
        return pl.pallas_call(
            kernel,
            out_shape=jax.ShapeDtypeStruct((n_p, out_p), x.dtype),
            grid=(steps,),
            in_specs=build_specs(single_buffer),
            out_specs=pl.BlockSpec((tile_m, out_p), lambda i: (i, 0)),
            compiler_params=pltpu.CompilerParams(
                dimension_semantics=("parallel",),
                vmem_limit_bytes=vmem_limit),
        )(xp, prep["w1"], prep["v1"], prep["w2"], prep["v2"])

    try:
        out = run(True)
    except Exception:
        # Fallback for jax versions where Buffered(1) single-buffering is rejected.
        out = run(False)

    return out[:N, :output_dim]


def init_params(key, input_dim, hidden_dim, output_dim):
    k1, k2, k3, k4 = jax.random.split(key, 4)
    scale1 = 1.0 / jnp.sqrt(input_dim)
    scale2 = 1.0 / jnp.sqrt(hidden_dim)
    return {
        "w1": jax.random.uniform(k1, (input_dim, hidden_dim), jnp.float32, -scale1, scale1),
        "b1": jax.random.uniform(k2, (hidden_dim,), jnp.float32, -scale1, scale1),
        "ln1_gamma": jnp.ones((hidden_dim,), jnp.float32),
        "ln1_beta": jnp.zeros((hidden_dim,), jnp.float32),
        "w2": jax.random.uniform(k3, (hidden_dim, output_dim), jnp.float32, -scale2, scale2),
        "b2": jax.random.uniform(k4, (output_dim,), jnp.float32, -scale2, scale2),
        "ln2_gamma": jnp.ones((output_dim,), jnp.float32),
        "ln2_beta": jnp.zeros((output_dim,), jnp.float32),
    }


def reference(x, p):
    """Pure-JAX f32 reference mirroring the PyTorch forward (eval mode)."""
    h = x @ p["w1"] + p["b1"]
    mu = h.mean(-1, keepdims=True)
    var = ((h - mu) ** 2).mean(-1, keepdims=True)
    h = (h - mu) / jnp.sqrt(var + LN_EPS) * p["ln1_gamma"] + p["ln1_beta"]
    h = jax.nn.gelu(h, approximate=False)
    y = h @ p["w2"] + p["b2"]
    mu2 = y.mean(-1, keepdims=True)
    var2 = ((y - mu2) ** 2).mean(-1, keepdims=True)
    y = (y - mu2) / jnp.sqrt(var2 + LN_EPS) * p["ln2_gamma"] + p["ln2_beta"]
    n = jnp.sqrt((y * y).sum(-1, keepdims=True))
    return y / jnp.maximum(n, L2_EPS)


if __name__ == "__main__":
    key = jax.random.PRNGKey(0)

    # Case 1: representative shapes — non-multiple-of-128 feature dims exercise
    # lane padding; N=256 gives a 2-step balanced grid on 2-TC chips.
    N, input_dim, hidden_dim, output_dim = 256, 64, 128, 48
    kx, kp, kx2, kp2 = jax.random.split(key, 4)
    x = jax.random.normal(kx, (N, input_dim), jnp.float32)
    params = init_params(kp, input_dim, hidden_dim, output_dim)
    prep = prepare_params(params)

    out = jax.block_until_ready(modal_encoder(x, prep))
    ref = reference(x, params)
    assert out.shape == (N, output_dim)
    err = float(jnp.max(jnp.abs(out - ref)))
    # bf16 matmul operands (f32 accumulation) vs f32 reference -> ~1e-3-level deviation.
    assert err < 2e-2, f"case1 mismatch vs reference: max abs err {err}"

    # Case 2: small / odd N exercises the row-padding + minimum-tile path.
    N2, in2, hid2, out2 = 37, 40, 96, 48
    x2 = jax.random.normal(kx2, (N2, in2), jnp.float32)
    params2 = init_params(kp2, in2, hid2, out2)
    prep2 = prepare_params(params2)
    out_b = jax.block_until_ready(modal_encoder(x2, prep2))
    ref_b = reference(x2, params2)
    assert out_b.shape == (N2, out2)
    err2 = float(jnp.max(jnp.abs(out_b - ref_b)))
    assert err2 < 2e-2, f"case2 mismatch vs reference: max abs err {err2}"

    print("KERNEL_OK")
</pallas_src>

<mosaic_0001>
module attributes {stable_mosaic.version = 11 : i64} {
  func.func @modal_encoder_kernel(%arg0: i32, %arg1: memref<256x128xbf16, #tpu.memory_space<vmem>>, %arg2: memref<128x128xbf16, #tpu.memory_space<vmem>>, %arg3: memref<8x128xf32, #tpu.memory_space<vmem>>, %arg4: memref<128x128xbf16, #tpu.memory_space<vmem>>, %arg5: memref<8x128xf32, #tpu.memory_space<vmem>>, %arg6: memref<256x128xf32, #tpu.memory_space<vmem>>) attributes {dimension_semantics = [#tpu.dimension_semantics<parallel>], iteration_bounds = array<i64: 1>, scalar_prefetch = 0 : i64, scratch_operands = 0 : i64, tpu.core_type = #tpu.core_type<tc>, window_params = [{transform_indices = @transform_0, window_bounds = array<i64: 256, 128>}, {pipeline_mode = #tpu.pipeline_mode<synchronous>, transform_indices = @transform_1, window_bounds = array<i64: 128, 128>}, {pipeline_mode = #tpu.pipeline_mode<synchronous>, transform_indices = @transform_2, window_bounds = array<i64: 8, 128>}, {pipeline_mode = #tpu.pipeline_mode<synchronous>, transform_indices = @transform_3, window_bounds = array<i64: 128, 128>}, {pipeline_mode = #tpu.pipeline_mode<synchronous>, transform_indices = @transform_4, window_bounds = array<i64: 8, 128>}, {transform_indices = @transform_5, window_bounds = array<i64: 256, 128>}]} {
    %c0 = arith.constant 0 : index
    %c0_0 = arith.constant 0 : index
    %0 = vector.load %arg3[%c0, %c0_0] : memref<8x128xf32, #tpu.memory_space<vmem>>, vector<1x128xf32>
    %c1 = arith.constant 1 : index
    %c0_1 = arith.constant 0 : index
    %1 = vector.load %arg3[%c1, %c0_1] : memref<8x128xf32, #tpu.memory_space<vmem>>, vector<1x128xf32>
    %c2 = arith.constant 2 : index
    %c0_2 = arith.constant 0 : index
    %2 = vector.load %arg3[%c2, %c0_2] : memref<8x128xf32, #tpu.memory_space<vmem>>, vector<1x128xf32>
    %c0_3 = arith.constant 0 : index
    %c0_4 = arith.constant 0 : index
    %3 = vector.load %arg5[%c0_3, %c0_4] : memref<8x128xf32, #tpu.memory_space<vmem>>, vector<1x128xf32>
    %c1_5 = arith.constant 1 : index
    %c0_6 = arith.constant 0 : index
    %4 = vector.load %arg5[%c1_5, %c0_6] : memref<8x128xf32, #tpu.memory_space<vmem>>, vector<1x128xf32>
    %c2_7 = arith.constant 2 : index
    %c0_8 = arith.constant 0 : index
    %5 = vector.load %arg5[%c2_7, %c0_8] : memref<8x128xf32, #tpu.memory_space<vmem>>, vector<1x128xf32>
    %c0_9 = arith.constant 0 : index
    %c0_10 = arith.constant 0 : index
    %6 = vector.load %arg1[%c0_9, %c0_10] : memref<256x128xbf16, #tpu.memory_space<vmem>>, vector<256x128xbf16>
    %c0_11 = arith.constant 0 : index
    %c0_12 = arith.constant 0 : index
    %7 = vector.load %arg2[%c0_11, %c0_12] : memref<128x128xbf16, #tpu.memory_space<vmem>>, vector<128x128xbf16>
    %cst = arith.constant dense<0.000000e+00> : vector<256x128xf32>
    %8 = tpu.matmul %6, %7, %cst {dimension_numbers = #tpu.dot_dimension_numbers<[1], [0], [0], [1], [0, 0, 1, 1], [], []>} : vector<256x128xbf16>, vector<128x128xbf16>, vector<256x128xf32> -> vector<256x128xf32>
    %9 = vector.broadcast %0 : vector<1x128xf32> to vector<256x128xf32>
    %10 = arith.addf %8, %9 : vector<256x128xf32>
    %cst_13 = arith.constant dense<0.000000e+00> : vector<256xf32>
    %11 = vector.multi_reduction <add>, %10, %cst_13 [1] : vector<256x128xf32> to vector<256xf32>
    %12 = vector.shape_cast %11 : vector<256xf32> to vector<256x1xf32>
    %cst_14 = arith.constant 7.812500e-03 : f32
    %13 = vector.broadcast %cst_14 : f32 to vector<256x1xf32>
    %14 = arith.mulf %12, %13 : vector<256x1xf32>
    %15 = vector.broadcast %14 : vector<256x1xf32> to vector<256x128xf32>
    %16 = arith.subf %10, %15 : vector<256x128xf32>
    %17 = arith.mulf %16, %16 : vector<256x128xf32>
    %cst_15 = arith.constant dense<0.000000e+00> : vector<256xf32>
    %18 = vector.multi_reduction <add>, %17, %cst_15 [1] : vector<256x128xf32> to vector<256xf32>
    %19 = vector.shape_cast %18 : vector<256xf32> to vector<256x1xf32>
    %cst_16 = arith.constant 7.812500e-03 : f32
    %20 = vector.broadcast %cst_16 : f32 to vector<256x1xf32>
    %21 = arith.mulf %19, %20 : vector<256x1xf32>
    %cst_17 = arith.constant 9.99999974E-6 : f32
    %22 = vector.broadcast %cst_17 : f32 to vector<256x1xf32>
    %23 = arith.addf %21, %22 : vector<256x1xf32>
    %24 = math.rsqrt %23 : vector<256x1xf32>
    %25 = vector.broadcast %24 : vector<256x1xf32> to vector<256x128xf32>
    %26 = vector.broadcast %1 : vector<1x128xf32> to vector<256x128xf32>
    %27 = arith.mulf %25, %26 : vector<256x128xf32>
    %28 = arith.mulf %16, %27 : vector<256x128xf32>
    %29 = vector.broadcast %2 : vector<1x128xf32> to vector<256x128xf32>
    %30 = arith.addf %28, %29 : vector<256x128xf32>
    %cst_18 = arith.constant 5.000000e-01 : f32
    %31 = vector.broadcast %cst_18 : f32 to vector<256x128xf32>
    %32 = arith.mulf %31, %30 : vector<256x128xf32>
    %cst_19 = arith.constant 0.707106769 : f32
    %33 = vector.broadcast %cst_19 : f32 to vector<256x128xf32>
    %34 = arith.mulf %30, %33 : vector<256x128xf32>
    %35 = math.erf %34 : vector<256x128xf32>
    %cst_20 = arith.constant 1.000000e+00 : f32
    %36 = vector.broadcast %cst_20 : f32 to vector<256x128xf32>
    %37 = arith.addf %36, %35 : vector<256x128xf32>
    %38 = arith.mulf %32, %37 : vector<256x128xf32>
    %39 = arith.truncf %38 : vector<256x128xf32> to vector<256x128xbf16>
    %c0_21 = arith.constant 0 : index
    %c0_22 = arith.constant 0 : index
    %40 = vector.load %arg4[%c0_21, %c0_22] : memref<128x128xbf16, #tpu.memory_space<vmem>>, vector<128x128xbf16>
    %cst_23 = arith.constant dense<0.000000e+00> : vector<256x128xf32>
    %41 = tpu.matmul %39, %40, %cst_23 {dimension_numbers = #tpu.dot_dimension_numbers<[1], [0], [0], [1], [0, 0, 1, 1], [], []>} : vector<256x128xbf16>, vector<128x128xbf16>, vector<256x128xf32> -> vector<256x128xf32>
    %42 = vector.broadcast %3 : vector<1x128xf32> to vector<256x128xf32>
    %43 = arith.addf %41, %42 : vector<256x128xf32>
    %cst_24 = arith.constant dense<0.000000e+00> : vector<256xf32>
    %44 = vector.multi_reduction <add>, %43, %cst_24 [1] : vector<256x128xf32> to vector<256xf32>
    %45 = vector.shape_cast %44 : vector<256xf32> to vector<256x1xf32>
    %cst_25 = arith.constant 0.020833334 : f32
    %46 = vector.broadcast %cst_25 : f32 to vector<256x1xf32>
    %47 = arith.mulf %45, %46 : vector<256x1xf32>
    %48 = vector.broadcast %47 : vector<256x1xf32> to vector<256x128xf32>
    %49 = arith.subf %43, %48 : vector<256x128xf32>
    %50 = tpu.iota {dimensions = array<i32: 1>} : vector<256x128xi32>
    %c48_i32 = arith.constant 48 : i32
    %51 = vector.broadcast %c48_i32 : i32 to vector<256x128xi32>
    %52 = arith.cmpi slt, %50, %51 : vector<256x128xi32>
    %cst_26 = arith.constant 0.000000e+00 : f32
    %53 = vector.broadcast %cst_26 : f32 to vector<256x128xf32>
    %54 = arith.select %52, %49, %53 : vector<256x128xi1>, vector<256x128xf32>
    %55 = arith.mulf %54, %54 : vector<256x128xf32>
    %cst_27 = arith.constant dense<0.000000e+00> : vector<256xf32>
    %56 = vector.multi_reduction <add>, %55, %cst_27 [1] : vector<256x128xf32> to vector<256xf32>
    %57 = vector.shape_cast %56 : vector<256xf32> to vector<256x1xf32>
    %cst_28 = arith.constant 0.020833334 : f32
    %58 = vector.broadcast %cst_28 : f32 to vector<256x1xf32>
    %59 = arith.mulf %57, %58 : vector<256x1xf32>
    %cst_29 = arith.constant 9.99999974E-6 : f32
    %60 = vector.broadcast %cst_29 : f32 to vector<256x1xf32>
    %61 = arith.addf %59, %60 : vector<256x1xf32>
    %62 = math.rsqrt %61 : vector<256x1xf32>
    %63 = vector.broadcast %62 : vector<256x1xf32> to vector<256x128xf32>
    %64 = vector.broadcast %4 : vector<1x128xf32> to vector<256x128xf32>
    %65 = arith.mulf %63, %64 : vector<256x128xf32>
    %66 = arith.mulf %54, %65 : vector<256x128xf32>
    %67 = vector.broadcast %5 : vector<1x128xf32> to vector<256x128xf32>
    %68 = arith.addf %66, %67 : vector<256x128xf32>
    %69 = arith.mulf %68, %68 : vector<256x128xf32>
    %cst_30 = arith.constant dense<0.000000e+00> : vector<256xf32>
    %70 = vector.multi_reduction <add>, %69, %cst_30 [1] : vector<256x128xf32> to vector<256xf32>
    %71 = vector.shape_cast %70 : vector<256xf32> to vector<256x1xf32>
    %cst_31 = arith.constant 1.000000e-24 : f32
    %72 = vector.broadcast %cst_31 : f32 to vector<256x1xf32>
    %73 = arith.maximumf %71, %72 : vector<256x1xf32>
    %74 = math.rsqrt %73 : vector<256x1xf32>
    %75 = vector.broadcast %74 : vector<256x1xf32> to vector<256x128xf32>
    %76 = arith.mulf %68, %75 : vector<256x128xf32>
    %c0_32 = arith.constant 0 : index
    %c0_33 = arith.constant 0 : index
    %77 = vector.load %arg6[%c0_32, %c0_33] : memref<256x128xf32, #tpu.memory_space<vmem>>, vector<256x128xf32>
    tpu.vector_store %arg6[%c0_32, %c0_33], %76 {strides = array<i32>} : memref<256x128xf32, #tpu.memory_space<vmem>>, vector<256x128xf32>,
    return
  }
  func.func @transform_0(%arg0: i32) -> (i32, i32) {
    %c0_i32 = arith.constant 0 : i32
    %c0_i32_0 = arith.constant 0 : i32
    return %arg0, %c0_i32 : i32, i32
  }
  func.func @transform_1(%arg0: i32) -> (i32, i32) {
    %c0_i32 = arith.constant 0 : i32
    %c0_i32_0 = arith.constant 0 : i32
    %c0_i32_1 = arith.constant 0 : i32
    return %c0_i32, %c0_i32_0 : i32, i32
  }
  func.func @transform_2(%arg0: i32) -> (i32, i32) {
    %c0_i32 = arith.constant 0 : i32
    %c0_i32_0 = arith.constant 0 : i32
    %c0_i32_1 = arith.constant 0 : i32
    return %c0_i32, %c0_i32_0 : i32, i32
  }
  func.func @transform_3(%arg0: i32) -> (i32, i32) {
    %c0_i32 = arith.constant 0 : i32
    %c0_i32_0 = arith.constant 0 : i32
    %c0_i32_1 = arith.constant 0 : i32
    return %c0_i32, %c0_i32_0 : i32, i32
  }
  func.func @transform_4(%arg0: i32) -> (i32, i32) {
    %c0_i32 = arith.constant 0 : i32
    %c0_i32_0 = arith.constant 0 : i32
    %c0_i32_1 = arith.constant 0 : i32
    return %c0_i32, %c0_i32_0 : i32, i32
  }
  func.func @transform_5(%arg0: i32) -> (i32, i32) {
    %c0_i32 = arith.constant 0 : i32
    %c0_i32_0 = arith.constant 0 : i32
    return %arg0, %c0_i32 : i32, i32
  }
}

module attributes {stable_mosaic.version = 11 : i64} {
  func.func @modal_encoder_kernel(%arg0: i32, %arg1: memref<256x128xbf16, #tpu.memory_space<vmem>>, %arg2: memref<128x128xbf16, #tpu.memory_space<vmem>>, %arg3: memref<8x128xf32, #tpu.memory_space<vmem>>, %arg4: memref<128x128xbf16, #tpu.memory_space<vmem>>, %arg5: memref<8x128xf32, #tpu.memory_space<vmem>>, %arg6: memref<256x128xf32, #tpu.memory_space<vmem>>) attributes {dimension_semantics = [#tpu.dimension_semantics<parallel>], iteration_bounds = array<i64: 1>, scalar_prefetch = 0 : i64, scratch_operands = 0 : i64, tpu.core_type = #tpu.core_type<tc>, window_params = [{transform_indices = @transform_0, window_bounds = array<i64: 256, 128>}, {pipeline_mode = #tpu.pipeline_mode<synchronous>, transform_indices = @transform_1, window_bounds = array<i64: 128, 128>}, {pipeline_mode = #tpu.pipeline_mode<synchronous>, transform_indices = @transform_2, window_bounds = array<i64: 8, 128>}, {pipeline_mode = #tpu.pipeline_mode<synchronous>, transform_indices = @transform_3, window_bounds = array<i64: 128, 128>}, {pipeline_mode = #tpu.pipeline_mode<synchronous>, transform_indices = @transform_4, window_bounds = array<i64: 8, 128>}, {transform_indices = @transform_5, window_bounds = array<i64: 256, 128>}]} {
    %c0 = arith.constant 0 : index
    %c0_0 = arith.constant 0 : index
    %0 = vector.load %arg3[%c0, %c0_0] : memref<8x128xf32, #tpu.memory_space<vmem>>, vector<1x128xf32>
    %c1 = arith.constant 1 : index
    %c0_1 = arith.constant 0 : index
    %1 = vector.load %arg3[%c1, %c0_1] : memref<8x128xf32, #tpu.memory_space<vmem>>, vector<1x128xf32>
    %c2 = arith.constant 2 : index
    %c0_2 = arith.constant 0 : index
    %2 = vector.load %arg3[%c2, %c0_2] : memref<8x128xf32, #tpu.memory_space<vmem>>, vector<1x128xf32>
    %c0_3 = arith.constant 0 : index
    %c0_4 = arith.constant 0 : index
    %3 = vector.load %arg5[%c0_3, %c0_4] : memref<8x128xf32, #tpu.memory_space<vmem>>, vector<1x128xf32>
    %c1_5 = arith.constant 1 : index
    %c0_6 = arith.constant 0 : index
    %4 = vector.load %arg5[%c1_5, %c0_6] : memref<8x128xf32, #tpu.memory_space<vmem>>, vector<1x128xf32>
    %c2_7 = arith.constant 2 : index
    %c0_8 = arith.constant 0 : index
    %5 = vector.load %arg5[%c2_7, %c0_8] : memref<8x128xf32, #tpu.memory_space<vmem>>, vector<1x128xf32>
    %c0_9 = arith.constant 0 : index
    %c0_10 = arith.constant 0 : index
    %6 = vector.load %arg1[%c0_9, %c0_10] : memref<256x128xbf16, #tpu.memory_space<vmem>>, vector<256x128xbf16>
    %c0_11 = arith.constant 0 : index
    %c0_12 = arith.constant 0 : index
    %7 = vector.load %arg2[%c0_11, %c0_12] : memref<128x128xbf16, #tpu.memory_space<vmem>>, vector<128x128xbf16>
    %cst = arith.constant dense<0.000000e+00> : vector<256x128xf32>
    %8 = tpu.matmul %6, %7, %cst {dimension_numbers = #tpu.dot_dimension_numbers<[1], [0], [0], [1], [0, 0, 1, 1], [], []>} : vector<256x128xbf16>, vector<128x128xbf16>, vector<256x128xf32> -> vector<256x128xf32>
    %9 = vector.broadcast %0 : vector<1x128xf32> to vector<256x128xf32>
    %10 = arith.addf %8, %9 : vector<256x128xf32>
    %cst_13 = arith.constant dense<0.000000e+00> : vector<256xf32>
    %11 = vector.multi_reduction <add>, %10, %cst_13 [1] : vector<256x128xf32> to vector<256xf32>
    %12 = vector.shape_cast %11 : vector<256xf32> to vector<256x1xf32>
    %cst_14 = arith.constant 7.812500e-03 : f32
    %13 = vector.broadcast %cst_14 : f32 to vector<256x1xf32>
    %14 = arith.mulf %12, %13 : vector<256x1xf32>
    %15 = vector.broadcast %14 : vector<256x1xf32> to vector<256x128xf32>
    %16 = arith.subf %10, %15 : vector<256x128xf32>
    %17 = arith.mulf %16, %16 : vector<256x128xf32>
    %cst_15 = arith.constant dense<0.000000e+00> : vector<256xf32>
    %18 = vector.multi_reduction <add>, %17, %cst_15 [1] : vector<256x128xf32> to vector<256xf32>
    %19 = vector.shape_cast %18 : vector<256xf32> to vector<256x1xf32>
    %cst_16 = arith.constant 7.812500e-03 : f32
    %20 = vector.broadcast %cst_16 : f32 to vector<256x1xf32>
    %21 = arith.mulf %19, %20 : vector<256x1xf32>
    %cst_17 = arith.constant 9.99999974E-6 : f32
    %22 = vector.broadcast %cst_17 : f32 to vector<256x1xf32>
    %23 = arith.addf %21, %22 : vector<256x1xf32>
    %24 = math.rsqrt %23 : vector<256x1xf32>
    %25 = vector.broadcast %24 : vector<256x1xf32> to vector<256x128xf32>
    %26 = vector.broadcast %1 : vector<1x128xf32> to vector<256x128xf32>
    %27 = arith.mulf %25, %26 : vector<256x128xf32>
    %28 = arith.mulf %16, %27 : vector<256x128xf32>
    %29 = vector.broadcast %2 : vector<1x128xf32> to vector<256x128xf32>
    %30 = arith.addf %28, %29 : vector<256x128xf32>
    %cst_18 = arith.constant 5.000000e-01 : f32
    %31 = vector.broadcast %cst_18 : f32 to vector<256x128xf32>
    %32 = arith.mulf %31, %30 : vector<256x128xf32>
    %cst_19 = arith.constant 0.707106769 : f32
    %33 = vector.broadcast %cst_19 : f32 to vector<256x128xf32>
    %34 = arith.mulf %30, %33 : vector<256x128xf32>
    %35 = math.erf %34 : vector<256x128xf32>
    %cst_20 = arith.constant 1.000000e+00 : f32
    %36 = vector.broadcast %cst_20 : f32 to vector<256x128xf32>
    %37 = arith.addf %36, %35 : vector<256x128xf32>
    %38 = arith.mulf %32, %37 : vector<256x128xf32>
    %39 = arith.truncf %38 : vector<256x128xf32> to vector<256x128xbf16>
    %c0_21 = arith.constant 0 : index
    %c0_22 = arith.constant 0 : index
    %40 = vector.load %arg4[%c0_21, %c0_22] : memref<128x128xbf16, #tpu.memory_space<vmem>>, vector<128x128xbf16>
    %cst_23 = arith.constant dense<0.000000e+00> : vector<256x128xf32>
    %41 = tpu.matmul %39, %40, %cst_23 {dimension_numbers = #tpu.dot_dimension_numbers<[1], [0], [0], [1], [0, 0, 1, 1], [], []>} : vector<256x128xbf16>, vector<128x128xbf16>, vector<256x128xf32> -> vector<256x128xf32>
    %42 = vector.broadcast %3 : vector<1x128xf32> to vector<256x128xf32>
    %43 = arith.addf %41, %42 : vector<256x128xf32>
    %cst_24 = arith.constant dense<0.000000e+00> : vector<256xf32>
    %44 = vector.multi_reduction <add>, %43, %cst_24 [1] : vector<256x128xf32> to vector<256xf32>
    %45 = vector.shape_cast %44 : vector<256xf32> to vector<256x1xf32>
    %cst_25 = arith.constant 0.020833334 : f32
    %46 = vector.broadcast %cst_25 : f32 to vector<256x1xf32>
    %47 = arith.mulf %45, %46 : vector<256x1xf32>
    %48 = vector.broadcast %47 : vector<256x1xf32> to vector<256x128xf32>
    %49 = arith.subf %43, %48 : vector<256x128xf32>
    %50 = tpu.iota {dimensions = array<i32: 1>} : vector<256x128xi32>
    %c48_i32 = arith.constant 48 : i32
    %51 = vector.broadcast %c48_i32 : i32 to vector<256x128xi32>
    %52 = arith.cmpi slt, %50, %51 : vector<256x128xi32>
    %cst_26 = arith.constant 0.000000e+00 : f32
    %53 = vector.broadcast %cst_26 : f32 to vector<256x128xf32>
    %54 = arith.select %52, %49, %53 : vector<256x128xi1>, vector<256x128xf32>
    %55 = arith.mulf %54, %54 : vector<256x128xf32>
    %cst_27 = arith.constant dense<0.000000e+00> : vector<256xf32>
    %56 = vector.multi_reduction <add>, %55, %cst_27 [1] : vector<256x128xf32> to vector<256xf32>
    %57 = vector.shape_cast %56 : vector<256xf32> to vector<256x1xf32>
    %cst_28 = arith.constant 0.020833334 : f32
    %58 = vector.broadcast %cst_28 : f32 to vector<256x1xf32>
    %59 = arith.mulf %57, %58 : vector<256x1xf32>
    %cst_29 = arith.constant 9.99999974E-6 : f32
    %60 = vector.broadcast %cst_29 : f32 to vector<256x1xf32>
    %61 = arith.addf %59, %60 : vector<256x1xf32>
    %62 = math.rsqrt %61 : vector<256x1xf32>
    %63 = vector.broadcast %62 : vector<256x1xf32> to vector<256x128xf32>
    %64 = vector.broadcast %4 : vector<1x128xf32> to vector<256x128xf32>
    %65 = arith.mulf %63, %64 : vector<256x128xf32>
    %66 = arith.mulf %54, %65 : vector<256x128xf32>
    %67 = vector.broadcast %5 : vector<1x128xf32> to vector<256x128xf32>
    %68 = arith.addf %66, %67 : vector<256x128xf32>
    %69 = arith.mulf %68, %68 : vector<256x128xf32>
    %cst_30 = arith.constant dense<0.000000e+00> : vector<256xf32>
    %70 = vector.multi_reduction <add>, %69, %cst_30 [1] : vector<256x128xf32> to vector<256xf32>
    %71 = vector.shape_cast %70 : vector<256xf32> to vector<256x1xf32>
    %cst_31 = arith.constant 1.000000e-24 : f32
    %72 = vector.broadcast %cst_31 : f32 to vector<256x1xf32>
    %73 = arith.maximumf %71, %72 : vector<256x1xf32>
    %74 = math.rsqrt %73 : vector<256x1xf32>
    %75 = vector.broadcast %74 : vector<256x1xf32> to vector<256x128xf32>
    %76 = arith.mulf %68, %75 : vector<256x128xf32>
    %c0_32 = arith.constant 0 : index
    %c0_33 = arith.constant 0 : index
    %77 = vector.load %arg6[%c0_32, %c0_33] : memref<256x128xf32, #tpu.memory_space<vmem>>, vector<256x128xf32>
    tpu.vector_store %arg6[%c0_32, %c0_33], %76 {strides = array<i32>} : memref<256x128xf32, #tpu.memory_space<vmem>>, vector<256x128xf32>,
    return
  }
  func.func @transform_0(%arg0: i32) -> (i32, i32) {
    %c0_i32 = arith.constant 0 : i32
    %c0_i32_0 = arith.constant 0 : i32
    return %arg0, %c0_i32 : i32, i32
  }
  func.func @transform_1(%arg0: i32) -> (i32, i32) {
    %c0_i32 = arith.constant 0 : i32
    %c0_i32_0 = arith.constant 0 : i32
    %c0_i32_1 = arith.constant 0 : i32
    return %c0_i32, %c0_i32_0 : i32, i32
  }
  func.func @transform_2(%arg0: i32) -> (i32, i32) {
    %c0_i32 = arith.constant 0 : i32
    %c0_i32_0 = arith.constant 0 : i32
    %c0_i32_1 = arith.constant 0 : i32
    return %c0_i32, %c0_i32_0 : i32, i32
  }
  func.func @transform_3(%arg0: i32) -> (i32, i32) {
    %c0_i32 = arith.constant 0 : i32
    %c0_i32_0 = arith.constant 0 : i32
    %c0_i32_1 = arith.constant 0 : i32
    return %c0_i32, %c0_i32_0 : i32, i32
  }
  func.func @transform_4(%arg0: i32) -> (i32, i32) {
    %c0_i32 = arith.constant 0 : i32
    %c0_i32_0 = arith.constant 0 : i32
    %c0_i32_1 = arith.constant 0 : i32
    return %c0_i32, %c0_i32_0 : i32, i32
  }
  func.func @transform_5(%arg0: i32) -> (i32, i32) {
    %c0_i32 = arith.constant 0 : i32
    %c0_i32_0 = arith.constant 0 : i32
    return %arg0, %c0_i32 : i32, i32
  }
}

</mosaic_0001>

<llo_original>
// kernel: tpu_custom_call.1
$region0: #{tpu_custom_call.1}
  #allocation0 [shape = 'u32[]', space=smem, size = 0x4, offset = 0x4, fixed_abs, tag = 'smem constant byte address 0x4 - core index']
  #allocation1 [shape = 'u32[144,128]{1,0:T(1,128)}', space=vmem, size = 0x12000, scoped, tag = 'internal scratch']
  %s0 = inlined_call_operand.hbm [shape: bf16[256,128], index: 0, kind: input, shape index: {}]
  %s1 = inlined_call_operand.hbm [shape: bf16[128,128], index: 1, kind: input, shape index: {}]
  %s2 = inlined_call_operand.hbm [shape: f32[8,128], index: 2, kind: input, shape index: {}]
  %s3 = inlined_call_operand.hbm [shape: bf16[128,128], index: 3, kind: input, shape index: {}]
  %s4 = inlined_call_operand.vmem [shape: f32[8,128], index: 4, kind: input, shape index: {}]
  %s5 = inlined_call_operand.hbm [shape: f32[256,128], index: 5, kind: output, shape index: {}]
  %s6 = sld [smem:[#allocation0]]
  $region46: #{tpu_custom_call.1} parent=0
    _
  %s8 = ssub.s32 1, %s6
  %s9 = scalar_select 0, %s8, %s6
  $region1: #{tpu_custom_call.1} parent=0
    #allocation2 [shape = 'u8[65536]{0}', space=vmem, size = 0x10000, scoped, tag = 'input window, operand 0, single buffered']
    #allocation3 [shape = 's32[1]{0}', space=sflag, size = 0x4, scoped, tag = 'scoped memory for tpu_custom_call.1']
    #allocation4 [shape = 's32[1]{0}', space=sflag, size = 0x4, scoped, tag = 'scoped memory for tpu_custom_call.1']
    #allocation5 [shape = 'u8[32768]{0}', space=vmem, size = 0x8000, scoped, tag = 'input window, operand 1, single buffered']
    #allocation6 [shape = 's32[1]{0}', space=sflag, size = 0x4, scoped, tag = 'scoped memory for tpu_custom_call.1']
    #allocation7 [shape = 'u8[4096]{0}', space=vmem, size = 0x1000, scoped, tag = 'input window, operand 2, single buffered']
    #allocation8 [shape = 'u8[32768]{0}', space=vmem, size = 0x8000, scoped, tag = 'input window, operand 3, single buffered']
    #allocation9 [shape = 's32[1]{0}', space=sflag, size = 0x4, scoped, tag = 'scoped memory for tpu_custom_call.1']
    #allocation10 [shape = 'u8[131072]{0}', space=vmem, size = 0x20000, scoped, tag = 'output window, operand 0, single buffered']
    %10 = vsyncpa [#allocation3], 0
    %11 = vsyncpa [#allocation6], 0
    %12 = vsyncpa [#allocation9], 0
    %13 = vsyncpa [#allocation4], 0
    // Predicated region
    $region2: #{tpu_custom_call.1} parent=1 // pred_check
      _
    $region3: #{tpu_custom_call.1} parent=1 // pred_check_branch
      %15 = sbr.rel (0) target = $region5
    $region4: #{tpu_custom_call.1} parent=1 // pred_region
      %s17 = ssub.s32 2048, 2048
      %18 = vsyncadd [#allocation3], %s17
      %s19 = sshll.u32 [#allocation2], 4
      %s20 = int_to_ptr.vmem [resolvable:$true] %s19
      %25 = dma.hbm_to_vmem [thread:$0]  %s0, 2048, %s20, [#allocation3], 64, 64, 4
    $region5: #{tpu_custom_call.1} parent=1 // pred_fallthru
      _
    // Predicated region
    $region6: #{tpu_custom_call.1} parent=1 // pred_check
      _
    $region7: #{tpu_custom_call.1} parent=1 // pred_check_branch
      %27 = sbr.rel (0) target = $region9
    $region8: #{tpu_custom_call.1} parent=1 // pred_region
      %s29 = ssub.s32 1024, 1024
      %30 = vsyncadd [#allocation6], %s29
      %s31 = sshll.u32 [#allocation5], 4
      %s32 = int_to_ptr.vmem [resolvable:$true] %s31
      %37 = dma.hbm_to_vmem [thread:$0]  %s1, 1024, %s32, [#allocation6], 64, 64, 4
    $region9: #{tpu_custom_call.1} parent=1 // pred_fallthru
      _
    // Predicated region
    $region10: #{tpu_custom_call.1} parent=1 // pred_check
      _
    $region11: #{tpu_custom_call.1} parent=1 // pred_check_branch
      %39 = sbr.rel (0) target = $region13
    $region12: #{tpu_custom_call.1} parent=1 // pred_region
      %s41 = ssub.s32 128, 128
      %42 = vsyncadd [#allocation6], %s41
      %s44 = sshll.u32 [#allocation7], 4
      %s45 = int_to_ptr.vmem [resolvable:$true] %s44
      %47 = dma.hbm_to_vmem [thread:$0]  %s2, 128, %s45, [#allocation6]
    $region13: #{tpu_custom_call.1} parent=1 // pred_fallthru
      _
    // Predicated region
    $region14: #{tpu_custom_call.1} parent=1 // pred_check
      _
    $region15: #{tpu_custom_call.1} parent=1 // pred_check_branch
      %49 = sbr.rel (0) target = $region17
    $region16: #{tpu_custom_call.1} parent=1 // pred_region
      %s51 = ssub.s32 1024, 1024
      %52 = vsyncadd [#allocation9], %s51
      %s53 = sshll.u32 [#allocation8], 4
      %s54 = int_to_ptr.vmem [resolvable:$true] %s53
      %59 = dma.hbm_to_vmem [thread:$0]  %s3, 1024, %s54, [#allocation9], 64, 64, 4
    $region17: #{tpu_custom_call.1} parent=1 // pred_fallthru
      _
    // Predicated region
    $region18: #{tpu_custom_call.1} parent=1 // pred_check
      _
    $region19: #{tpu_custom_call.1} parent=1 // pred_check_branch
      %61 = sbr.rel (0) target = $region21
    $region20: #{tpu_custom_call.1} parent=1 // pred_region
      _
    $region21: #{tpu_custom_call.1} parent=1 // pred_fallthru
      _
    // Predicated region
    $region22: #{tpu_custom_call.1} parent=1 // pred_check
      _
    $region23: #{tpu_custom_call.1} parent=1 // pred_check_branch
      %63 = sbr.rel (0) target = $region25
    $region24: #{tpu_custom_call.1} parent=1 // pred_region
      %64 = dma.done [#allocation3], 2048
    $region25: #{tpu_custom_call.1} parent=1 // pred_fallthru
      _
    // Predicated region
    $region26: #{tpu_custom_call.1} parent=1 // pred_check
      _
    $region27: #{tpu_custom_call.1} parent=1 // pred_check_branch
      %66 = sbr.rel (0) target = $region29
    $region28: #{tpu_custom_call.1} parent=1 // pred_region
      %67 = dma.done [#allocation6], 1024
    $region29: #{tpu_custom_call.1} parent=1 // pred_fallthru
      _
    // Predicated region
    $region30: #{tpu_custom_call.1} parent=1 // pred_check
      _
    $region31: #{tpu_custom_call.1} parent=1 // pred_check_branch
      %69 = sbr.rel (0) target = $region33
    $region32: #{tpu_custom_call.1} parent=1 // pred_region
      %70 = dma.done [#allocation6], 128
    $region33: #{tpu_custom_call.1} parent=1 // pred_fallthru
      _
    // Predicated region
    $region34: #{tpu_custom_call.1} parent=1 // pred_check
      _
    $region35: #{tpu_custom_call.1} parent=1 // pred_check_branch
      %72 = sbr.rel (0) target = $region37
    $region36: #{tpu_custom_call.1} parent=1 // pred_region
      %73 = dma.done [#allocation9], 1024
    $region37: #{tpu_custom_call.1} parent=1 // pred_fallthru
      _
    %v75 = vld [vmem:[#allocation7] sm:$0x1]
    %v76 = vld [vmem:[#allocation7 + $0x1] sm:$0x1]
    %v77 = vld [vmem:[#allocation7 + $0x2] sm:$0x1]
    %v78 = vld [vmem:[%s4] sm:$0x1]
    %v79 = vld [vmem:[%s4 + $0x1] sm:$0x1]
    %v80 = vld [vmem:[%s4 + $0x2] sm:$0x1]
    %v81 = vld [vmem:[#allocation2] sm:$0xf]
    %v82 = vld [vmem:[#allocation2 + $0x4] sm:$0xf]
    %v83 = vld [vmem:[#allocation2 + $0x8] sm:$0xf]
    %v84 = vld [vmem:[#allocation2 + $0xc] sm:$0xf]
    %v85 = vld [vmem:[#allocation2 + $0x10] sm:$0xf]
    %v86 = vld [vmem:[#allocation2 + $0x14] sm:$0xf]
    %v87 = vld [vmem:[#allocation2 + $0x18] sm:$0xf]
    %v88 = vld [vmem:[#allocation2 + $0x1c] sm:$0xf]
    %v89 = vld [vmem:[#allocation2 + $0x20] sm:$0xf]
    %v90 = vld [vmem:[#allocation2 + $0x24] sm:$0xf]
    %v91 = vld [vmem:[#allocation2 + $0x28] sm:$0xf]
    %v92 = vld [vmem:[#allocation2 + $0x2c] sm:$0xf]
    %v93 = vld [vmem:[#allocation2 + $0x30] sm:$0xf]
    %v94 = vld [vmem:[#allocation2 + $0x34] sm:$0xf]
    %v95 = vld [vmem:[#allocation2 + $0x38] sm:$0xf]
    %v96 = vld [vmem:[#allocation2 + $0x3c] sm:$0xf]
    %v97 = vld [vmem:[#allocation2 + $0x40] sm:$0xf]
    %v98 = vld [vmem:[#allocation2 + $0x44] sm:$0xf]
    %v99 = vld [vmem:[#allocation2 + $0x48] sm:$0xf]
    %v100 = vld [vmem:[#allocation2 + $0x4c] sm:$0xf]
    %v101 = vld [vmem:[#allocation2 + $0x50] sm:$0xf]
    %v102 = vld [vmem:[#allocation2 + $0x54] sm:$0xf]
    %v103 = vld [vmem:[#allocation2 + $0x58] sm:$0xf]
    %v104 = vld [vmem:[#allocation2 + $0x5c] sm:$0xf]
    %v105 = vld [vmem:[#allocation2 + $0x60] sm:$0xf]
    %v106 = vld [vmem:[#allocation2 + $0x64] sm:$0xf]
    %v107 = vld [vmem:[#allocation2 + $0x68] sm:$0xf]
    %v108 = vld [vmem:[#allocation2 + $0x6c] sm:$0xf]
    %v109 = vld [vmem:[#allocation2 + $0x70] sm:$0xf]
    %v110 = vld [vmem:[#allocation2 + $0x74] sm:$0xf]
    %v111 = vld [vmem:[#allocation2 + $0x78] sm:$0xf]
    %v112 = vld [vmem:[#allocation2 + $0x7c] sm:$0xf]
    %v113 = vld [vmem:[#allocation5] sm:$0xf]
    %v114 = vld [vmem:[#allocation5 + $0x4] sm:$0xf]
    %v115 = vld [vmem:[#allocation5 + $0x8] sm:$0xf]
    %v116 = vld [vmem:[#allocation5 + $0xc] sm:$0xf]
    %v117 = vld [vmem:[#allocation5 + $0x10] sm:$0xf]
    %v118 = vld [vmem:[#allocation5 + $0x14] sm:$0xf]
    %v119 = vld [vmem:[#allocation5 + $0x18] sm:$0xf]
    %v120 = vld [vmem:[#allocation5 + $0x1c] sm:$0xf]
    %v121 = vld [vmem:[#allocation5 + $0x20] sm:$0xf]
    %v122 = vld [vmem:[#allocation5 + $0x24] sm:$0xf]
    %v123 = vld [vmem:[#allocation5 + $0x28] sm:$0xf]
    %v124 = vld [vmem:[#allocation5 + $0x2c] sm:$0xf]
    %v125 = vld [vmem:[#allocation5 + $0x30] sm:$0xf]
    %v126 = vld [vmem:[#allocation5 + $0x34] sm:$0xf]
    %v127 = vld [vmem:[#allocation5 + $0x38] sm:$0xf]
    %v128 = vld [vmem:[#allocation5 + $0x3c] sm:$0xf]
    %v129 = vlaneseq
    %v130 = vshrl.u32 %v129, 7
    %v131 = vsub.s32 0, %v130
    %v132 = vrot.slane %v75, %v131
    %v165 = vunpack.c.l.b16 %v81
    %v166 = vunpack.c.l.b16 %v82
    %v167 = vunpack.c.l.b16 %v83
    %v168 = vunpack.c.l.b16 %v84
    %v169 = vunpack.c.l.b16 %v85
    %v170 = vunpack.c.l.b16 %v86
    %v171 = vunpack.c.l.b16 %v87
    %v172 = vunpack.c.l.b16 %v88
    %v173 = vunpack.c.l.b16 %v89
    %v174 = vunpack.c.l.b16 %v90
    %v175 = vunpack.c.l.b16 %v91
    %v176 = vunpack.c.l.b16 %v92
    %v177 = vunpack.c.l.b16 %v93
    %v178 = vunpack.c.l.b16 %v94
    %v179 = vunpack.c.l.b16 %v95
    %v180 = vunpack.c.l.b16 %v96
    %v181 = vunpack.c.l.b16 %v97
    %v182 = vunpack.c.l.b16 %v98
    %v183 = vunpack.c.l.b16 %v99
    %v184 = vunpack.c.l.b16 %v100
    %v185 = vunpack.c.l.b16 %v101
    %v186 = vunpack.c.l.b16 %v102
    %v187 = vunpack.c.l.b16 %v103
    %v188 = vunpack.c.l.b16 %v104
    %v189 = vunpack.c.l.b16 %v105
    %v190 = vunpack.c.l.b16 %v106
    %v191 = vunpack.c.l.b16 %v107
    %v192 = vunpack.c.l.b16 %v108
    %v193 = vunpack.c.l.b16 %v109
    %v194 = vunpack.c.l.b16 %v110
    %v195 = vunpack.c.l.b16 %v111
    %v196 = vunpack.c.l.b16 %v112
    %v197 = vpack.c.b16 %v166, %v165
    %v198 = vpack.c.b16 %v168, %v167
    %v199 = vpack.c.b16 %v170, %v169
    %v200 = vpack.c.b16 %v172, %v171
    %v201 = vpack.c.b16 %v174, %v173
    %v202 = vpack.c.b16 %v176, %v175
    %v203 = vpack.c.b16 %v178, %v177
    %v204 = vpack.c.b16 %v180, %v179
    %v205 = vpack.c.b16 %v182, %v181
    %v206 = vpack.c.b16 %v184, %v183
    %v207 = vpack.c.b16 %v186, %v185
    %v208 = vpack.c.b16 %v188, %v187
    %v209 = vpack.c.b16 %v190, %v189
    %v210 = vpack.c.b16 %v192, %v191
    %v211 = vpack.c.b16 %v194, %v193
    %v212 = vpack.c.b16 %v196, %v195
    %v245 = vunpack.c.l.b16 %v113
    %v246 = vunpack.c.l.b16 %v114
    %v247 = vunpack.c.l.b16 %v115
    %v248 = vunpack.c.l.b16 %v116
    %v249 = vunpack.c.l.b16 %v117
    %v250 = vunpack.c.l.b16 %v118
    %v251 = vunpack.c.l.b16 %v119
    %v252 = vunpack.c.l.b16 %v120
    %v253 = vunpack.c.l.b16 %v121
    %v254 = vunpack.c.l.b16 %v122
    %v255 = vunpack.c.l.b16 %v123
    %v256 = vunpack.c.l.b16 %v124
    %v257 = vunpack.c.l.b16 %v125
    %v258 = vunpack.c.l.b16 %v126
    %v259 = vunpack.c.l.b16 %v127
    %v260 = vunpack.c.l.b16 %v128
    %v261 = vpack.c.b16 %v246, %v245
    %v262 = vpack.c.b16 %v248, %v247
    %v263 = vpack.c.b16 %v250, %v249
    %v264 = vpack.c.b16 %v252, %v251
    %v265 = vpack.c.b16 %v254, %v253
    %v266 = vpack.c.b16 %v256, %v255
    %v267 = vpack.c.b16 %v258, %v257
    %v268 = vpack.c.b16 %v260, %v259
    %277 = vmatprep.subr.bf16.mxu0 0
    %278 = vmatpush1.bf16.msra.mxu0 %v261
    %279 = vmatprep.subr.bf16.mxu0 0
    %280 = vmatpush1.bf16.msra.mxu0 %v262
    %281 = vmatprep.subr.bf16.mxu0 0
    %282 = vmatpush1.bf16.msra.mxu0 %v263
    %283 = vmatprep.subr.bf16.mxu0 0
    %284 = vmatpush1.bf16.msra.mxu0 %v264
    %285 = vmatprep.subr.bf16.mxu0 0
    %286 = vmatpush1.bf16.msra.mxu0 %v265
    %287 = vmatprep.subr.bf16.mxu0 0
    %288 = vmatpush1.bf16.msra.mxu0 %v266
    %289 = vmatprep.subr.bf16.mxu0 0
    %290 = vmatpush1.bf16.msra.mxu0 %v267
    %291 = vmatprep.subr.bf16.mxu0 0
    %292 = vmatpush1.bf16.msra.mxu0 %v268
    %293 = vmatprep.subr.bf16.mxu0 0
    %294 = vmatpush1.bf16.msra.mxu0 0
    %295 = vmatprep.subr.bf16.mxu0 0
    %296 = vmatpush1.bf16.msra.mxu0 0
    %297 = vmatprep.subr.bf16.mxu0 0
    %298 = vmatpush1.bf16.msra.mxu0 0
    %299 = vmatprep.subr.bf16.mxu0 0
    %300 = vmatpush1.bf16.msra.mxu0 0
    %301 = vmatprep.subr.bf16.mxu0 0
    %302 = vmatpush1.bf16.msra.mxu0 0
    %303 = vmatprep.subr.bf16.mxu0 0
    %304 = vmatpush1.bf16.msra.mxu0 0
    %305 = vmatprep.subr.bf16.mxu0 0
    %306 = vmatpush1.bf16.msra.mxu0 0
    %307 = vmatprep.subr.bf16.mxu0 0
    %308 = vmatpush1.bf16.msra.mxu0 0
    %309 = vmatprep.mubr.bf16.mxu0 0
    %310 = vmatmul.mubr.bf16.gmra.mrb[0].mxu0 %v197
    %v311 = vpop.f32.mrb[0].mxu0
    %v312 = vadd.f32 %v132, %v311
    %v313 = vpop.f32.mrb[0].mxu0
    %v314 = vpop.f32.mrb[0].mxu0
    %v315 = vadd.f32 %v132, %v314
    %v316 = vpop.f32.mrb[0].mxu0
    %317 = vmatprep.mubr.bf16.mxu0 0
    %318 = vmatmul.mubr.bf16.gmra.mrb[0].mxu0 %v198
    %v319 = vpop.f32.mrb[0].mxu0
    %v320 = vadd.f32 %v132, %v319
    %v321 = vpop.f32.mrb[0].mxu0
    %v322 = vpop.f32.mrb[0].mxu0
    %v323 = vadd.f32 %v132, %v322
    %v324 = vpop.f32.mrb[0].mxu0
    %325 = vmatprep.mubr.bf16.mxu0 0
    %326 = vmatmul.mubr.bf16.gmra.mrb[0].mxu0 %v199
    %v327 = vpop.f32.mrb[0].mxu0
    %v328 = vadd.f32 %v132, %v327
    %v329 = vpop.f32.mrb[0].mxu0
    %v330 = vpop.f32.mrb[0].mxu0
    %v331 = vadd.f32 %v132, %v330
    %v332 = vpop.f32.mrb[0].mxu0
    %333 = vmatprep.mubr.bf16.mxu0 0
    %334 = vmatmul.mubr.bf16.gmra.mrb[0].mxu0 %v200
    %v335 = vpop.f32.mrb[0].mxu0
    %v336 = vadd.f32 %v132, %v335
    %v337 = vpop.f32.mrb[0].mxu0
    %v338 = vpop.f32.mrb[0].mxu0
    %v339 = vadd.f32 %v132, %v338
    %v340 = vpop.f32.mrb[0].mxu0
    %341 = vmatprep.mubr.bf16.mxu0 0
    %342 = vmatmul.mubr.bf16.gmra.mrb[0].mxu0 %v201
    %v343 = vpop.f32.mrb[0].mxu0
    %v344 = vadd.f32 %v132, %v343
    %v345 = vpop.f32.mrb[0].mxu0
    %v346 = vpop.f32.mrb[0].mxu0
    %v347 = vadd.f32 %v132, %v346
    %v348 = vpop.f32.mrb[0].mxu0
    %349 = vmatprep.mubr.bf16.mxu0 0
    %350 = vmatmul.mubr.bf16.gmra.mrb[0].mxu0 %v202
    %v351 = vpop.f32.mrb[0].mxu0
    %v352 = vadd.f32 %v132, %v351
    %v353 = vpop.f32.mrb[0].mxu0
    %v354 = vpop.f32.mrb[0].mxu0
    %v355 = vadd.f32 %v132, %v354
    %v356 = vpop.f32.mrb[0].mxu0
    %357 = vmatprep.mubr.bf16.mxu0 0
    %358 = vmatmul.mubr.bf16.gmra.mrb[0].mxu0 %v203
    %v359 = vpop.f32.mrb[0].mxu0
    %v360 = vadd.f32 %v132, %v359
    %v361 = vpop.f32.mrb[0].mxu0
    %v362 = vpop.f32.mrb[0].mxu0
    %v363 = vadd.f32 %v132, %v362
    %v364 = vpop.f32.mrb[0].mxu0
    %365 = vmatprep.mubr.bf16.mxu0 0
    %366 = vmatmul.mubr.bf16.gmra.mrb[0].mxu0 %v204
    %v367 = vpop.f32.mrb[0].mxu0
    %v368 = vadd.f32 %v132, %v367
    %v369 = vpop.f32.mrb[0].mxu0
    %v370 = vpop.f32.mrb[0].mxu0
    %v371 = vadd.f32 %v132, %v370
    %v372 = vpop.f32.mrb[0].mxu0
    %373 = vmatprep.mubr.bf16.mxu0 0
    %374 = vmatmul.mubr.bf16.gmra.mrb[0].mxu0 %v205
    %v375 = vpop.f32.mrb[0].mxu0
    %v376 = vadd.f32 %v132, %v375
    %v377 = vpop.f32.mrb[0].mxu0
    %v378 = vpop.f32.mrb[0].mxu0
    %v379 = vadd.f32 %v132, %v378
    %v380 = vpop.f32.mrb[0].mxu0
    %381 = vmatprep.mubr.bf16.mxu0 0
    %382 = vmatmul.mubr.bf16.gmra.mrb[0].mxu0 %v206
    %v383 = vpop.f32.mrb[0].mxu0
    %v384 = vadd.f32 %v132, %v383
    %v385 = vpop.f32.mrb[0].mxu0
    %v386 = vpop.f32.mrb[0].mxu0
    %v387 = vadd.f32 %v132, %v386
    %v388 = vpop.f32.mrb[0].mxu0
    %389 = vmatprep.mubr.bf16.mxu0 0
    %390 = vmatmul.mubr.bf16.gmra.mrb[0].mxu0 %v207
    %v391 = vpop.f32.mrb[0].mxu0
    %v392 = vadd.f32 %v132, %v391
    %v393 = vpop.f32.mrb[0].mxu0
    %v394 = vpop.f32.mrb[0].mxu0
    %v395 = vadd.f32 %v132, %v394
    %v396 = vpop.f32.mrb[0].mxu0
    %397 = vmatprep.mubr.bf16.mxu0 0
    %398 = vmatmul.mubr.bf16.gmra.mrb[0].mxu0 %v208
    %v399 = vpop.f32.mrb[0].mxu0
    %v400 = vadd.f32 %v132, %v399
    %v401 = vpop.f32.mrb[0].mxu0
    %v402 = vpop.f32.mrb[0].mxu0
    %v403 = vadd.f32 %v132, %v402
    %v404 = vpop.f32.mrb[0].mxu0
    %405 = vmatprep.mubr.bf16.mxu0 0
    %406 = vmatmul.mubr.bf16.gmra.mrb[0].mxu0 %v209
    %v407 = vpop.f32.mrb[0].mxu0
    %v408 = vadd.f32 %v132, %v407
    %v409 = vpop.f32.mrb[0].mxu0
    %v410 = vpop.f32.mrb[0].mxu0
    %v411 = vadd.f32 %v132, %v410
    %v412 = vpop.f32.mrb[0].mxu0
    %413 = vmatprep.mubr.bf16.mxu0 0
    %414 = vmatmul.mubr.bf16.gmra.mrb[0].mxu0 %v210
    %v415 = vpop.f32.mrb[0].mxu0
    %v416 = vadd.f32 %v132, %v415
    %v417 = vpop.f32.mrb[0].mxu0
    %v418 = vpop.f32.mrb[0].mxu0
    %v419 = vadd.f32 %v132, %v418
    %v420 = vpop.f32.mrb[0].mxu0
    %421 = vmatprep.mubr.bf16.mxu0 0
    %422 = vmatmul.mubr.bf16.gmra.mrb[0].mxu0 %v211
    %v423 = vpop.f32.mrb[0].mxu0
    %v424 = vadd.f32 %v132, %v423
    %v425 = vpop.f32.mrb[0].mxu0
    %v426 = vpop.f32.mrb[0].mxu0
    %v427 = vadd.f32 %v132, %v426
    %v428 = vpop.f32.mrb[0].mxu0
    %429 = vmatprep.mubr.bf16.mxu0 0
    %430 = vmatmul.mubr.bf16.gmra.mrb[0].mxu0 %v212
    %v431 = vpop.f32.mrb[0].mxu0
    %v432 = vadd.f32 %v132, %v431
    %v433 = vpop.f32.mrb[0].mxu0
    %v434 = vpop.f32.mrb[0].mxu0
    %v435 = vadd.f32 %v132, %v434
    %v436 = vpop.f32.mrb[0].mxu0
    %437 = vdwg.mxu0
    %438 = vadd.xlane.f32.xlu0 %v312
    %v439 = vpop.xlane.xlu0 %438
    %440 = vadd.xlane.f32.xlu0 %v315
    %v441 = vpop.xlane.xlu0 %440
    %442 = vadd.xlane.f32.xlu0 %v320
    %v443 = vpop.xlane.xlu0 %442
    %444 = vadd.xlane.f32.xlu0 %v323
    %v445 = vpop.xlane.xlu0 %444
    %446 = vadd.xlane.f32.xlu0 %v328
    %v447 = vpop.xlane.xlu0 %446
    %448 = vadd.xlane.f32.xlu0 %v331
    %v449 = vpop.xlane.xlu0 %448
    %450 = vadd.xlane.f32.xlu0 %v336
    %v451 = vpop.xlane.xlu0 %450
    %452 = vadd.xlane.f32.xlu0 %v339
    %v453 = vpop.xlane.xlu0 %452
    %454 = vadd.xlane.f32.xlu0 %v344
    %v455 = vpop.xlane.xlu0 %454
    %456 = vadd.xlane.f32.xlu0 %v347
    %v457 = vpop.xlane.xlu0 %456
    %458 = vadd.xlane.f32.xlu0 %v352
    %v459 = vpop.xlane.xlu0 %458
    %460 = vadd.xlane.f32.xlu0 %v355
    %v461 = vpop.xlane.xlu0 %460
    %462 = vadd.xlane.f32.xlu0 %v360
    %v463 = vpop.xlane.xlu0 %462
    %464 = vadd.xlane.f32.xlu0 %v363
    %v465 = vpop.xlane.xlu0 %464
    %466 = vadd.xlane.f32.xlu0 %v368
    %v467 = vpop.xlane.xlu0 %466
    %468 = vadd.xlane.f32.xlu0 %v371
    %v469 = vpop.xlane.xlu0 %468
    %470 = vadd.xlane.f32.xlu0 %v376
    %v471 = vpop.xlane.xlu0 %470
    %472 = vadd.xlane.f32.xlu0 %v379
    %v473 = vpop.xlane.xlu0 %472
    %474 = vadd.xlane.f32.xlu0 %v384
    %v475 = vpop.xlane.xlu0 %474
    %476 = vadd.xlane.f32.xlu0 %v387
    %v477 = vpop.xlane.xlu0 %476
    %478 = vadd.xlane.f32.xlu0 %v392
    %v479 = vpop.xlane.xlu0 %478
    %480 = vadd.xlane.f32.xlu0 %v395
    %v481 = vpop.xlane.xlu0 %480
    %482 = vadd.xlane.f32.xlu0 %v400
    %v483 = vpop.xlane.xlu0 %482
    %484 = vadd.xlane.f32.xlu0 %v403
    %v485 = vpop.xlane.xlu0 %484
    %486 = vadd.xlane.f32.xlu0 %v408
    %v487 = vpop.xlane.xlu0 %486
    %488 = vadd.xlane.f32.xlu0 %v411
    %v489 = vpop.xlane.xlu0 %488
    %490 = vadd.xlane.f32.xlu0 %v416
    %v491 = vpop.xlane.xlu0 %490
    %492 = vadd.xlane.f32.xlu0 %v419
    %v493 = vpop.xlane.xlu0 %492
    %494 = vadd.xlane.f32.xlu0 %v424
    %v495 = vpop.xlane.xlu0 %494
    %496 = vadd.xlane.f32.xlu0 %v427
    %v497 = vpop.xlane.xlu0 %496
    %498 = vadd.xlane.f32.xlu0 %v432
    %v499 = vpop.xlane.xlu0 %498
    %500 = vadd.xlane.f32.xlu0 %v435
    %v501 = vpop.xlane.xlu0 %500
    %v502 = vmul.f32 %v439, 0.0078125
    %v503 = vmul.f32 %v441, 0.0078125
    %v504 = vmul.f32 %v443, 0.0078125
    %v505 = vmul.f32 %v445, 0.0078125
    %v506 = vmul.f32 %v447, 0.0078125
    %v507 = vmul.f32 %v449, 0.0078125
    %v508 = vmul.f32 %v451, 0.0078125
    %v509 = vmul.f32 %v453, 0.0078125
    %v510 = vmul.f32 %v455, 0.0078125
    %v511 = vmul.f32 %v457, 0.0078125
    %v512 = vmul.f32 %v459, 0.0078125
    %v513 = vmul.f32 %v461, 0.0078125
    %v514 = vmul.f32 %v463, 0.0078125
    %v515 = vmul.f32 %v465, 0.0078125
    %v516 = vmul.f32 %v467, 0.0078125
    %v517 = vmul.f32 %v469, 0.0078125
    %v518 = vmul.f32 %v471, 0.0078125
    %v519 = vmul.f32 %v473, 0.0078125
    %v520 = vmul.f32 %v475, 0.0078125
    %v521 = vmul.f32 %v477, 0.0078125
    %v522 = vmul.f32 %v479, 0.0078125
    %v523 = vmul.f32 %v481, 0.0078125
    %v524 = vmul.f32 %v483, 0.0078125
    %v525 = vmul.f32 %v485, 0.0078125
    %v526 = vmul.f32 %v487, 0.0078125
    %v527 = vmul.f32 %v489, 0.0078125
    %v528 = vmul.f32 %v491, 0.0078125
    %v529 = vmul.f32 %v493, 0.0078125
    %v530 = vmul.f32 %v495, 0.0078125
    %v531 = vmul.f32 %v497, 0.0078125
    %v532 = vmul.f32 %v499, 0.0078125
    %v533 = vmul.f32 %v501, 0.0078125
    %v534 = vsub.f32 %v312, %v502
    %v535 = vsub.f32 %v315, %v503
    %v536 = vsub.f32 %v320, %v504
    %v537 = vsub.f32 %v323, %v505
    %v538 = vsub.f32 %v328, %v506
    %v539 = vsub.f32 %v331, %v507
    %v540 = vsub.f32 %v336, %v508
    %v541 = vsub.f32 %v339, %v509
    %v542 = vsub.f32 %v344, %v510
    %v543 = vsub.f32 %v347, %v511
    %v544 = vsub.f32 %v352, %v512
    %v545 = vsub.f32 %v355, %v513
    %v546 = vsub.f32 %v360, %v514
    %v547 = vsub.f32 %v363, %v515
    %v548 = vsub.f32 %v368, %v516
    %v549 = vsub.f32 %v371, %v517
    %v550 = vsub.f32 %v376, %v518
    %v551 = vsub.f32 %v379, %v519
    %v552 = vsub.f32 %v384, %v520
    %v553 = vsub.f32 %v387, %v521
    %v554 = vsub.f32 %v392, %v522
    %v555 = vsub.f32 %v395, %v523
    %v556 = vsub.f32 %v400, %v524
    %v557 = vsub.f32 %v403, %v525
    %v558 = vsub.f32 %v408, %v526
    %v559 = vsub.f32 %v411, %v527
    %v560 = vsub.f32 %v416, %v528
    %v561 = vsub.f32 %v419, %v529
    %v562 = vsub.f32 %v424, %v530
    %v563 = vsub.f32 %v427, %v531
    %v564 = vsub.f32 %v432, %v532
    %v565 = vsub.f32 %v435, %v533
    %v566 = vmul.f32 %v534, %v534
    %v567 = vmul.f32 %v535, %v535
    %v568 = vmul.f32 %v536, %v536
    %v569 = vmul.f32 %v537, %v537
    %v570 = vmul.f32 %v538, %v538
    %v571 = vmul.f32 %v539, %v539
    %v572 = vmul.f32 %v540, %v540
    %v573 = vmul.f32 %v541, %v541
    %v574 = vmul.f32 %v542, %v542
    %v575 = vmul.f32 %v543, %v543
    %v576 = vmul.f32 %v544, %v544
    %v577 = vmul.f32 %v545, %v545
    %v578 = vmul.f32 %v546, %v546
    %v579 = vmul.f32 %v547, %v547
    %v580 = vmul.f32 %v548, %v548
    %v581 = vmul.f32 %v549, %v549
    %v582 = vmul.f32 %v550, %v550
    %v583 = vmul.f32 %v551, %v551
    %v584 = vmul.f32 %v552, %v552
    %v585 = vmul.f32 %v553, %v553
    %v586 = vmul.f32 %v554, %v554
    %v587 = vmul.f32 %v555, %v555
    %v588 = vmul.f32 %v556, %v556
    %v589 = vmul.f32 %v557, %v557
    %v590 = vmul.f32 %v558, %v558
    %v591 = vmul.f32 %v559, %v559
    %v592 = vmul.f32 %v560, %v560
    %v593 = vmul.f32 %v561, %v561
    %v594 = vmul.f32 %v562, %v562
    %v595 = vmul.f32 %v563, %v563
    %v596 = vmul.f32 %v564, %v564
    %v597 = vmul.f32 %v565, %v565
    %598 = vadd.xlane.f32.xlu0 %v566
    %v599 = vpop.xlane.xlu0 %598
    %600 = vadd.xlane.f32.xlu0 %v567
    %v601 = vpop.xlane.xlu0 %600
    %602 = vadd.xlane.f32.xlu0 %v568
    %v603 = vpop.xlane.xlu0 %602
    %604 = vadd.xlane.f32.xlu0 %v569
    %v605 = vpop.xlane.xlu0 %604
    %606 = vadd.xlane.f32.xlu0 %v570
    %v607 = vpop.xlane.xlu0 %606
    %608 = vadd.xlane.f32.xlu0 %v571
    %v609 = vpop.xlane.xlu0 %608
    %610 = vadd.xlane.f32.xlu0 %v572
    %v611 = vpop.xlane.xlu0 %610
    %612 = vadd.xlane.f32.xlu0 %v573
    %v613 = vpop.xlane.xlu0 %612
    %614 = vadd.xlane.f32.xlu0 %v574
    %v615 = vpop.xlane.xlu0 %614
    %616 = vadd.xlane.f32.xlu0 %v575
    %v617 = vpop.xlane.xlu0 %616
    %618 = vadd.xlane.f32.xlu0 %v576
    %v619 = vpop.xlane.xlu0 %618
    %620 = vadd.xlane.f32.xlu0 %v577
    %v621 = vpop.xlane.xlu0 %620
    %622 = vadd.xlane.f32.xlu0 %v578
    %v623 = vpop.xlane.xlu0 %622
    %624 = vadd.xlane.f32.xlu0 %v579
    %v625 = vpop.xlane.xlu0 %624
    %626 = vadd.xlane.f32.xlu0 %v580
    %v627 = vpop.xlane.xlu0 %626
    %628 = vadd.xlane.f32.xlu0 %v581
    %v629 = vpop.xlane.xlu0 %628
    %630 = vadd.xlane.f32.xlu0 %v582
    %v631 = vpop.xlane.xlu0 %630
    %632 = vadd.xlane.f32.xlu0 %v583
    %v633 = vpop.xlane.xlu0 %632
    %634 = vadd.xlane.f32.xlu0 %v584
    %v635 = vpop.xlane.xlu0 %634
    %636 = vadd.xlane.f32.xlu0 %v585
    %v637 = vpop.xlane.xlu0 %636
    %638 = vadd.xlane.f32.xlu0 %v586
    %v639 = vpop.xlane.xlu0 %638
    %640 = vadd.xlane.f32.xlu0 %v587
    %v641 = vpop.xlane.xlu0 %640
    %642 = vadd.xlane.f32.xlu0 %v588
    %v643 = vpop.xlane.xlu0 %642
    %644 = vadd.xlane.f32.xlu0 %v589
    %v645 = vpop.xlane.xlu0 %644
    %646 = vadd.xlane.f32.xlu0 %v590
    %v647 = vpop.xlane.xlu0 %646
    %648 = vadd.xlane.f32.xlu0 %v591
    %v649 = vpop.xlane.xlu0 %648
    %650 = vadd.xlane.f32.xlu0 %v592
    %v651 = vpop.xlane.xlu0 %650
    %652 = vadd.xlane.f32.xlu0 %v593
    %v653 = vpop.xlane.xlu0 %652
    %654 = vadd.xlane.f32.xlu0 %v594
    %v655 = vpop.xlane.xlu0 %654
    %656 = vadd.xlane.f32.xlu0 %v595
    %v657 = vpop.xlane.xlu0 %656
    %658 = vadd.xlane.f32.xlu0 %v596
    %v659 = vpop.xlane.xlu0 %658
    %660 = vadd.xlane.f32.xlu0 %v597
    %v661 = vpop.xlane.xlu0 %660
    %v662 = vmul.f32 %v599, 0.0078125
    %v663 = vmul.f32 %v601, 0.0078125
    %v664 = vmul.f32 %v603, 0.0078125
    %v665 = vmul.f32 %v605, 0.0078125
    %v666 = vmul.f32 %v607, 0.0078125
    %v667 = vmul.f32 %v609, 0.0078125
    %v668 = vmul.f32 %v611, 0.0078125
    %v669 = vmul.f32 %v613, 0.0078125
    %v670 = vmul.f32 %v615, 0.0078125
    %v671 = vmul.f32 %v617, 0.0078125
    %v672 = vmul.f32 %v619, 0.0078125
    %v673 = vmul.f32 %v621, 0.0078125
    %v674 = vmul.f32 %v623, 0.0078125
    %v675 = vmul.f32 %v625, 0.0078125
    %v676 = vmul.f32 %v627, 0.0078125
    %v677 = vmul.f32 %v629, 0.0078125
    %v678 = vmul.f32 %v631, 0.0078125
    %v679 = vmul.f32 %v633, 0.0078125
    %v680 = vmul.f32 %v635, 0.0078125
    %v681 = vmul.f32 %v637, 0.0078125
    %v682 = vmul.f32 %v639, 0.0078125
    %v683 = vmul.f32 %v641, 0.0078125
    %v684 = vmul.f32 %v643, 0.0078125
    %v685 = vmul.f32 %v645, 0.0078125
    %v686 = vmul.f32 %v647, 0.0078125
    %v687 = vmul.f32 %v649, 0.0078125
    %v688 = vmul.f32 %v651, 0.0078125
    %v689 = vmul.f32 %v653, 0.0078125
    %v690 = vmul.f32 %v655, 0.0078125
    %v691 = vmul.f32 %v657, 0.0078125
    %v692 = vmul.f32 %v659, 0.0078125
    %v693 = vmul.f32 %v661, 0.0078125
    %v694 = vadd.f32 %v662, 1e-05
    %v695 = vadd.f32 %v663, 1e-05
    %v696 = vadd.f32 %v664, 1e-05
    %v697 = vadd.f32 %v665, 1e-05
    %v698 = vadd.f32 %v666, 1e-05
    %v699 = vadd.f32 %v667, 1e-05
    %v700 = vadd.f32 %v668, 1e-05
    %v701 = vadd.f32 %v669, 1e-05
    %v702 = vadd.f32 %v670, 1e-05
    %v703 = vadd.f32 %v671, 1e-05
    %v704 = vadd.f32 %v672, 1e-05
    %v705 = vadd.f32 %v673, 1e-05
    %v706 = vadd.f32 %v674, 1e-05
    %v707 = vadd.f32 %v675, 1e-05
    %v708 = vadd.f32 %v676, 1e-05
    %v709 = vadd.f32 %v677, 1e-05
    %v710 = vadd.f32 %v678, 1e-05
    %v711 = vadd.f32 %v679, 1e-05
    %v712 = vadd.f32 %v680, 1e-05
    %v713 = vadd.f32 %v681, 1e-05
    %v714 = vadd.f32 %v682, 1e-05
    %v715 = vadd.f32 %v683, 1e-05
    %v716 = vadd.f32 %v684, 1e-05
    %v717 = vadd.f32 %v685, 1e-05
    %v718 = vadd.f32 %v686, 1e-05
    %v719 = vadd.f32 %v687, 1e-05
    %v720 = vadd.f32 %v688, 1e-05
    %v721 = vadd.f32 %v689, 1e-05
    %v722 = vadd.f32 %v690, 1e-05
    %v723 = vadd.f32 %v691, 1e-05
    %v724 = vadd.f32 %v692, 1e-05
    %v725 = vadd.f32 %v693, 1e-05
    %v726 = vrsqrt.pop %v694
    %v727 = vrsqrt.pop %v695
    %v728 = vrsqrt.pop %v696
    %v729 = vrsqrt.pop %v697
    %v730 = vrsqrt.pop %v698
    %v731 = vrsqrt.pop %v699
    %v732 = vrsqrt.pop %v700
    %v733 = vrsqrt.pop %v701
    %v734 = vrsqrt.pop %v702
    %v735 = vrsqrt.pop %v703
    %v736 = vrsqrt.pop %v704
    %v737 = vrsqrt.pop %v705
    %v738 = vrsqrt.pop %v706
    %v739 = vrsqrt.pop %v707
    %v740 = vrsqrt.pop %v708
    %v741 = vrsqrt.pop %v709
    %v742 = vrsqrt.pop %v710
    %v743 = vrsqrt.pop %v711
    %v744 = vrsqrt.pop %v712
    %v745 = vrsqrt.pop %v713
    %v746 = vrsqrt.pop %v714
    %v747 = vrsqrt.pop %v715
    %v748 = vrsqrt.pop %v716
    %v749 = vrsqrt.pop %v717
    %v750 = vrsqrt.pop %v718
    %v751 = vrsqrt.pop %v719
    %v752 = vrsqrt.pop %v720
    %v753 = vrsqrt.pop %v721
    %v754 = vrsqrt.pop %v722
    %v755 = vrsqrt.pop %v723
    %v756 = vrsqrt.pop %v724
    %v757 = vrsqrt.pop %v725
    %v758 = vlaneseq
    %v759 = vshrl.u32 %v758, 7
    %v760 = vsub.s32 0, %v759
    %v761 = vrot.slane %v76, %v760
    %v762 = vmul.f32 %v726, %v761
    %v763 = vmul.f32 %v727, %v761
    %v764 = vmul.f32 %v728, %v761
    %v765 = vmul.f32 %v729, %v761
    %v766 = vmul.f32 %v730, %v761
    %v767 = vmul.f32 %v731, %v761
    %v768 = vmul.f32 %v732, %v761
    %v769 = vmul.f32 %v733, %v761
    %v770 = vmul.f32 %v734, %v761
    %v771 = vmul.f32 %v735, %v761
    %v772 = vmul.f32 %v736, %v761
    %v773 = vmul.f32 %v737, %v761
    %v774 = vmul.f32 %v738, %v761
    %v775 = vmul.f32 %v739, %v761
    %v776 = vmul.f32 %v740, %v761
    %v777 = vmul.f32 %v741, %v761
    %v778 = vmul.f32 %v742, %v761
    %v779 = vmul.f32 %v743, %v761
    %v780 = vmul.f32 %v744, %v761
    %v781 = vmul.f32 %v745, %v761
    %v782 = vmul.f32 %v746, %v761
    %v783 = vmul.f32 %v747, %v761
    %v784 = vmul.f32 %v748, %v761
    %v785 = vmul.f32 %v749, %v761
    %v786 = vmul.f32 %v750, %v761
    %v787 = vmul.f32 %v751, %v761
    %v788 = vmul.f32 %v752, %v761
    %v789 = vmul.f32 %v753, %v761
    %v790 = vmul.f32 %v754, %v761
    %v791 = vmul.f32 %v755, %v761
    %v792 = vmul.f32 %v756, %v761
    %v793 = vmul.f32 %v757, %v761
    %v794 = vmul.f32 %v534, %v762
    %v795 = vmul.f32 %v535, %v763
    %v796 = vmul.f32 %v536, %v764
    %v797 = vmul.f32 %v537, %v765
    %v798 = vmul.f32 %v538, %v766
    %v799 = vmul.f32 %v539, %v767
    %v800 = vmul.f32 %v540, %v768
    %v801 = vmul.f32 %v541, %v769
    %v802 = vmul.f32 %v542, %v770
    %v803 = vmul.f32 %v543, %v771
    %v804 = vmul.f32 %v544, %v772
    %v805 = vmul.f32 %v545, %v773
    %v806 = vmul.f32 %v546, %v774
    %v807 = vmul.f32 %v547, %v775
    %v808 = vmul.f32 %v548, %v776
    %v809 = vmul.f32 %v549, %v777
    %v810 = vmul.f32 %v550, %v778
    %v811 = vmul.f32 %v551, %v779
    %v812 = vmul.f32 %v552, %v780
    %v813 = vmul.f32 %v553, %v781
    %v814 = vmul.f32 %v554, %v782
    %v815 = vmul.f32 %v555, %v783
    %v816 = vmul.f32 %v556, %v784
    %v817 = vmul.f32 %v557, %v785
    %v818 = vmul.f32 %v558, %v786
    %v819 = vmul.f32 %v559, %v787
    %v820 = vmul.f32 %v560, %v788
    %v821 = vmul.f32 %v561, %v789
    %v822 = vmul.f32 %v562, %v790
    %v823 = vmul.f32 %v563, %v791
    %v824 = vmul.f32 %v564, %v792
    %v825 = vmul.f32 %v565, %v793
    %v826 = vlaneseq
    %v827 = vshrl.u32 %v826, 7
    %v828 = vsub.s32 0, %v827
    %v829 = vrot.slane %v77, %v828
    %v830 = vadd.f32 %v794, %v829
    %v831 = vadd.f32 %v795, %v829
    %v832 = vadd.f32 %v796, %v829
    %v833 = vadd.f32 %v797, %v829
    %v834 = vadd.f32 %v798, %v829
    %v835 = vadd.f32 %v799, %v829
    %v836 = vadd.f32 %v800, %v829
    %v837 = vadd.f32 %v801, %v829
    %v838 = vadd.f32 %v802, %v829
    %v839 = vadd.f32 %v803, %v829
    %v840 = vadd.f32 %v804, %v829
    %v841 = vadd.f32 %v805, %v829
    %v842 = vadd.f32 %v806, %v829
    %v843 = vadd.f32 %v807, %v829
    %v844 = vadd.f32 %v808, %v829
    %v845 = vadd.f32 %v809, %v829
    %v846 = vadd.f32 %v810, %v829
    %v847 = vadd.f32 %v811, %v829
    %v848 = vadd.f32 %v812, %v829
    %v849 = vadd.f32 %v813, %v829
    %v850 = vadd.f32 %v814, %v829
    %v851 = vadd.f32 %v815, %v829
    %v852 = vadd.f32 %v816, %v829
    %v853 = vadd.f32 %v817, %v829
    %v854 = vadd.f32 %v818, %v829
    %v855 = vadd.f32 %v819, %v829
    %v856 = vadd.f32 %v820, %v829
    %v857 = vadd.f32 %v821, %v829
    %v858 = vadd.f32 %v822, %v829
    %v859 = vadd.f32 %v823, %v829
    %v860 = vadd.f32 %v824, %v829
    %v861 = vadd.f32 %v825, %v829
    %v862 = vmul.f32 %v830, 0.5
    %v863 = vmul.f32 %v831, 0.5
    %v864 = vmul.f32 %v832, 0.5
    %v865 = vmul.f32 %v833, 0.5
    %v866 = vmul.f32 %v834, 0.5
    %v867 = vmul.f32 %v835, 0.5
    %v868 = vmul.f32 %v836, 0.5
    %v869 = vmul.f32 %v837, 0.5
    %v870 = vmul.f32 %v838, 0.5
    %v871 = vmul.f32 %v839, 0.5
    %v872 = vmul.f32 %v840, 0.5
    %v873 = vmul.f32 %v841, 0.5
    %v874 = vmul.f32 %v842, 0.5
    %v875 = vmul.f32 %v843, 0.5
    %v876 = vmul.f32 %v844, 0.5
    %v877 = vmul.f32 %v845, 0.5
    %v878 = vmul.f32 %v846, 0.5
    %v879 = vmul.f32 %v847, 0.5
    %v880 = vmul.f32 %v848, 0.5
    %v881 = vmul.f32 %v849, 0.5
    %v882 = vmul.f32 %v850, 0.5
    %v883 = vmul.f32 %v851, 0.5
    %v884 = vmul.f32 %v852, 0.5
    %v885 = vmul.f32 %v853, 0.5
    %v886 = vmul.f32 %v854, 0.5
    %v887 = vmul.f32 %v855, 0.5
    %v888 = vmul.f32 %v856, 0.5
    %v889 = vmul.f32 %v857, 0.5
    %v890 = vmul.f32 %v858, 0.5
    %v891 = vmul.f32 %v859, 0.5
    %v892 = vmul.f32 %v860, 0.5
    %v893 = vmul.f32 %v861, 0.5
    %v894 = vmul.f32 %v830, 0.70710677
    %v895 = vmul.f32 %v831, 0.70710677
    %v896 = vmul.f32 %v832, 0.70710677
    %v897 = vmul.f32 %v833, 0.70710677
    %v898 = vmul.f32 %v834, 0.70710677
    %v899 = vmul.f32 %v835, 0.70710677
    %v900 = vmul.f32 %v836, 0.70710677
    %v901 = vmul.f32 %v837, 0.70710677
    %v902 = vmul.f32 %v838, 0.70710677
    %v903 = vmul.f32 %v839, 0.70710677
    %v904 = vmul.f32 %v840, 0.70710677
    %v905 = vmul.f32 %v841, 0.70710677
    %v906 = vmul.f32 %v842, 0.70710677
    %v907 = vmul.f32 %v843, 0.70710677
    %v908 = vmul.f32 %v844, 0.70710677
    %v909 = vmul.f32 %v845, 0.70710677
    %v910 = vmul.f32 %v846, 0.70710677
    %v911 = vmul.f32 %v847, 0.70710677
    %v912 = vmul.f32 %v848, 0.70710677
    %v913 = vmul.f32 %v849, 0.70710677
    %v914 = vmul.f32 %v850, 0.70710677
    %v915 = vmul.f32 %v851, 0.70710677
    %v916 = vmul.f32 %v852, 0.70710677
    %v917 = vmul.f32 %v853, 0.70710677
    %v918 = vmul.f32 %v854, 0.70710677
    %v919 = vmul.f32 %v855, 0.70710677
    %v920 = vmul.f32 %v856, 0.70710677
    %v921 = vmul.f32 %v857, 0.70710677
    %v922 = vmul.f32 %v858, 0.70710677
    %v923 = vmul.f32 %v859, 0.70710677
    %v924 = vmul.f32 %v860, 0.70710677
    %v925 = vmul.f32 %v861, 0.70710677
    %v926 = verf.f32.pop %v894
    %v927 = verf.f32.pop %v895
    %v928 = verf.f32.pop %v896
    %v929 = verf.f32.pop %v897
    %v930 = verf.f32.pop %v898
    %v931 = verf.f32.pop %v899
    %v932 = verf.f32.pop %v900
    %v933 = verf.f32.pop %v901
    %v934 = verf.f32.pop %v902
    %v935 = verf.f32.pop %v903
    %v936 = verf.f32.pop %v904
    %v937 = verf.f32.pop %v905
    %v938 = verf.f32.pop %v906
    %v939 = verf.f32.pop %v907
    %v940 = verf.f32.pop %v908
    %v941 = verf.f32.pop %v909
    %v942 = verf.f32.pop %v910
    %v943 = verf.f32.pop %v911
    %v944 = verf.f32.pop %v912
    %v945 = verf.f32.pop %v913
    %v946 = verf.f32.pop %v914
    %v947 = verf.f32.pop %v915
    %v948 = verf.f32.pop %v916
    %v949 = verf.f32.pop %v917
    %v950 = verf.f32.pop %v918
    %v951 = verf.f32.pop %v919
    %v952 = verf.f32.pop %v920
    %v953 = verf.f32.pop %v921
    %v954 = verf.f32.pop %v922
    %v955 = verf.f32.pop %v923
    %v956 = verf.f32.pop %v924
    %v957 = verf.f32.pop %v925
    %v958 = vadd.f32 %v926, 1.0
    %v959 = vadd.f32 %v927, 1.0
    %v960 = vadd.f32 %v928, 1.0
    %v961 = vadd.f32 %v929, 1.0
    %v962 = vadd.f32 %v930, 1.0
    %v963 = vadd.f32 %v931, 1.0
    %v964 = vadd.f32 %v932, 1.0
    %v965 = vadd.f32 %v933, 1.0
    %v966 = vadd.f32 %v934, 1.0
    %v967 = vadd.f32 %v935, 1.0
    %v968 = vadd.f32 %v936, 1.0
    %v969 = vadd.f32 %v937, 1.0
    %v970 = vadd.f32 %v938, 1.0
    %v971 = vadd.f32 %v939, 1.0
    %v972 = vadd.f32 %v940, 1.0
    %v973 = vadd.f32 %v941, 1.0
    %v974 = vadd.f32 %v942, 1.0
    %v975 = vadd.f32 %v943, 1.0
    %v976 = vadd.f32 %v944, 1.0
    %v977 = vadd.f32 %v945, 1.0
    %v978 = vadd.f32 %v946, 1.0
    %v979 = vadd.f32 %v947, 1.0
    %v980 = vadd.f32 %v948, 1.0
    %v981 = vadd.f32 %v949, 1.0
    %v982 = vadd.f32 %v950, 1.0
    %v983 = vadd.f32 %v951, 1.0
    %v984 = vadd.f32 %v952, 1.0
    %v985 = vadd.f32 %v953, 1.0
    %v986 = vadd.f32 %v954, 1.0
    %v987 = vadd.f32 %v955, 1.0
    %v988 = vadd.f32 %v956, 1.0
    %v989 = vadd.f32 %v957, 1.0
    %v990 = vmul.f32 %v862, %v958
    %v991 = vmul.f32 %v863, %v959
    %v992 = vmul.f32 %v864, %v960
    %v993 = vmul.f32 %v865, %v961
    %v994 = vmul.f32 %v866, %v962
    %v995 = vmul.f32 %v867, %v963
    %v996 = vmul.f32 %v868, %v964
    %v997 = vmul.f32 %v869, %v965
    %v998 = vmul.f32 %v870, %v966
    %v999 = vmul.f32 %v871, %v967
    %v1000 = vmul.f32 %v872, %v968
    %v1001 = vmul.f32 %v873, %v969
    %v1002 = vmul.f32 %v874, %v970
    %v1003 = vmul.f32 %v875, %v971
    %v1004 = vmul.f32 %v876, %v972
    %v1005 = vmul.f32 %v877, %v973
    %v1006 = vmul.f32 %v878, %v974
    %v1007 = vmul.f32 %v879, %v975
    %v1008 = vmul.f32 %v880, %v976
    %v1009 = vmul.f32 %v881, %v977
    %v1010 = vmul.f32 %v882, %v978
    %v1011 = vmul.f32 %v883, %v979
    %v1012 = vmul.f32 %v884, %v980
    %v1013 = vmul.f32 %v885, %v981
    %v1014 = vmul.f32 %v886, %v982
    %v1015 = vmul.f32 %v887, %v983
    %v1016 = vmul.f32 %v888, %v984
    %v1017 = vmul.f32 %v889, %v985
    %v1018 = vmul.f32 %v890, %v986
    %v1019 = vmul.f32 %v891, %v987
    %v1020 = vmul.f32 %v892, %v988
    %v1021 = vmul.f32 %v893, %v989
    %v1022 = vpack.c.bf16 %v991, %v990
    %v1023 = vpack.c.bf16 %v993, %v992
    %v1024 = vpack.c.bf16 %v995, %v994
    %v1025 = vpack.c.bf16 %v997, %v996
    %v1026 = vpack.c.bf16 %v999, %v998
    %v1027 = vpack.c.bf16 %v1001, %v1000
    %v1028 = vpack.c.bf16 %v1003, %v1002
    %v1029 = vpack.c.bf16 %v1005, %v1004
    %v1030 = vpack.c.bf16 %v1007, %v1006
    %v1031 = vpack.c.bf16 %v1009, %v1008
    %v1032 = vpack.c.bf16 %v1011, %v1010
    %v1033 = vpack.c.bf16 %v1013, %v1012
    %v1034 = vpack.c.bf16 %v1015, %v1014
    %v1035 = vpack.c.bf16 %v1017, %v1016
    %v1036 = vpack.c.bf16 %v1019, %v1018
    %v1037 = vpack.c.bf16 %v1021, %v1020
    %v1038 = vld [vmem:[#allocation8] sm:$0xf]
    %v1039 = vld [vmem:[#allocation8 + $0x4] sm:$0xf]
    %v1040 = vld [vmem:[#allocation8 + $0x8] sm:$0xf]
    %v1041 = vld [vmem:[#allocation8 + $0xc] sm:$0xf]
    %v1042 = vld [vmem:[#allocation8 + $0x10] sm:$0xf]
    %v1043 = vld [vmem:[#allocation8 + $0x14] sm:$0xf]
    %v1044 = vld [vmem:[#allocation8 + $0x18] sm:$0xf]
    %v1045 = vld [vmem:[#allocation8 + $0x1c] sm:$0xf]
    %v1046 = vld [vmem:[#allocation8 + $0x20] sm:$0xf]
    %v1047 = vld [vmem:[#allocation8 + $0x24] sm:$0xf]
    %v1048 = vld [vmem:[#allocation8 + $0x28] sm:$0xf]
    %v1049 = vld [vmem:[#allocation8 + $0x2c] sm:$0xf]
    %v1050 = vld [vmem:[#allocation8 + $0x30] sm:$0xf]
    %v1051 = vld [vmem:[#allocation8 + $0x34] sm:$0xf]
    %v1052 = vld [vmem:[#allocation8 + $0x38] sm:$0xf]
    %v1053 = vld [vmem:[#allocation8 + $0x3c] sm:$0xf]
    %v1054 = vlaneseq
    %v1055 = vshrl.u32 %v1054, 7
    %v1056 = vsub.s32 0, %v1055
    %v1057 = vrot.slane %v78, %v1056
    %v1074 = vunpack.c.l.b16 %v1038
    %v1075 = vunpack.c.l.b16 %v1039
    %v1076 = vunpack.c.l.b16 %v1040
    %v1077 = vunpack.c.l.b16 %v1041
    %v1078 = vunpack.c.l.b16 %v1042
    %v1079 = vunpack.c.l.b16 %v1043
    %v1080 = vunpack.c.l.b16 %v1044
    %v1081 = vunpack.c.l.b16 %v1045
    %v1082 = vunpack.c.l.b16 %v1046
    %v1083 = vunpack.c.l.b16 %v1047
    %v1084 = vunpack.c.l.b16 %v1048
    %v1085 = vunpack.c.l.b16 %v1049
    %v1086 = vunpack.c.l.b16 %v1050
    %v1087 = vunpack.c.l.b16 %v1051
    %v1088 = vunpack.c.l.b16 %v1052
    %v1089 = vunpack.c.l.b16 %v1053
    %v1090 = vpack.c.b16 %v1075, %v1074
    %v1091 = vpack.c.b16 %v1077, %v1076
    %v1092 = vpack.c.b16 %v1079, %v1078
    %v1093 = vpack.c.b16 %v1081, %v1080
    %v1094 = vpack.c.b16 %v1083, %v1082
    %v1095 = vpack.c.b16 %v1085, %v1084
    %v1096 = vpack.c.b16 %v1087, %v1086
    %v1097 = vpack.c.b16 %v1089, %v1088
    %1106 = vmatprep.subr.bf16.mxu0 0
    %1107 = vmatpush1.bf16.msra.mxu0 %v1090
    %1108 = vmatprep.subr.bf16.mxu0 0
    %1109 = vmatpush1.bf16.msra.mxu0 %v1091
    %1110 = vmatprep.subr.bf16.mxu0 0
    %1111 = vmatpush1.bf16.msra.mxu0 %v1092
    %1112 = vmatprep.subr.bf16.mxu0 0
    %1113 = vmatpush1.bf16.msra.mxu0 %v1093
    %1114 = vmatprep.subr.bf16.mxu0 0
    %1115 = vmatpush1.bf16.msra.mxu0 %v1094
    %1116 = vmatprep.subr.bf16.mxu0 0
    %1117 = vmatpush1.bf16.msra.mxu0 %v1095
    %1118 = vmatprep.subr.bf16.mxu0 0
    %1119 = vmatpush1.bf16.msra.mxu0 %v1096
    %1120 = vmatprep.subr.bf16.mxu0 0
    %1121 = vmatpush1.bf16.msra.mxu0 %v1097
    %1122 = vmatprep.subr.bf16.mxu0 0
    %1123 = vmatpush1.bf16.msra.mxu0 0
    %1124 = vmatprep.subr.bf16.mxu0 0
    %1125 = vmatpush1.bf16.msra.mxu0 0
    %1126 = vmatprep.subr.bf16.mxu0 0
    %1127 = vmatpush1.bf16.msra.mxu0 0
    %1128 = vmatprep.subr.bf16.mxu0 0
    %1129 = vmatpush1.bf16.msra.mxu0 0
    %1130 = vmatprep.subr.bf16.mxu0 0
    %1131 = vmatpush1.bf16.msra.mxu0 0
    %1132 = vmatprep.subr.bf16.mxu0 0
    %1133 = vmatpush1.bf16.msra.mxu0 0
    %1134 = vmatprep.subr.bf16.mxu0 0
    %1135 = vmatpush1.bf16.msra.mxu0 0
    %1136 = vmatprep.subr.bf16.mxu0 0
    %1137 = vmatpush1.bf16.msra.mxu0 0
    %1138 = vmatprep.mubr.bf16.mxu0 0
    %1139 = vmatmul.mubr.bf16.gmra.mrb[0].mxu0 %v1022
    %v1140 = vpop.f32.mrb[0].mxu0
    %v1141 = vadd.f32 %v1057, %v1140
    %v1142 = vpop.f32.mrb[0].mxu0
    %v1143 = vpop.f32.mrb[0].mxu0
    %v1144 = vadd.f32 %v1057, %v1143
    %v1145 = vpop.f32.mrb[0].mxu0
    %1146 = vmatprep.mubr.bf16.mxu0 0
    %1147 = vmatmul.mubr.bf16.gmra.mrb[0].mxu0 %v1023
    %v1148 = vpop.f32.mrb[0].mxu0
    %v1149 = vadd.f32 %v1057, %v1148
    %v1150 = vpop.f32.mrb[0].mxu0
    %v1151 = vpop.f32.mrb[0].mxu0
    %v1152 = vadd.f32 %v1057, %v1151
    %v1153 = vpop.f32.mrb[0].mxu0
    %1154 = vmatprep.mubr.bf16.mxu0 0
    %1155 = vmatmul.mubr.bf16.gmra.mrb[0].mxu0 %v1024
    %v1156 = vpop.f32.mrb[0].mxu0
    %v1157 = vadd.f32 %v1057, %v1156
    %v1158 = vpop.f32.mrb[0].mxu0
    %v1159 = vpop.f32.mrb[0].mxu0
    %v1160 = vadd.f32 %v1057, %v1159
    %v1161 = vpop.f32.mrb[0].mxu0
    %1162 = vmatprep.mubr.bf16.mxu0 0
    %1163 = vmatmul.mubr.bf16.gmra.mrb[0].mxu0 %v1025
    %v1164 = vpop.f32.mrb[0].mxu0
    %v1165 = vadd.f32 %v1057, %v1164
    %v1166 = vpop.f32.mrb[0].mxu0
    %v1167 = vpop.f32.mrb[0].mxu0
    %v1168 = vadd.f32 %v1057, %v1167
    %v1169 = vpop.f32.mrb[0].mxu0
    %1170 = vmatprep.mubr.bf16.mxu0 0
    %1171 = vmatmul.mubr.bf16.gmra.mrb[0].mxu0 %v1026
    %v1172 = vpop.f32.mrb[0].mxu0
    %v1173 = vadd.f32 %v1057, %v1172
    %v1174 = vpop.f32.mrb[0].mxu0
    %v1175 = vpop.f32.mrb[0].mxu0
    %v1176 = vadd.f32 %v1057, %v1175
    %v1177 = vpop.f32.mrb[0].mxu0
    %1178 = vmatprep.mubr.bf16.mxu0 0
    %1179 = vmatmul.mubr.bf16.gmra.mrb[0].mxu0 %v1027
    %v1180 = vpop.f32.mrb[0].mxu0
    %v1181 = vadd.f32 %v1057, %v1180
    %v1182 = vpop.f32.mrb[0].mxu0
    %v1183 = vpop.f32.mrb[0].mxu0
    %v1184 = vadd.f32 %v1057, %v1183
    %v1185 = vpop.f32.mrb[0].mxu0
    %1186 = vmatprep.mubr.bf16.mxu0 0
    %1187 = vmatmul.mubr.bf16.gmra.mrb[0].mxu0 %v1028
    %v1188 = vpop.f32.mrb[0].mxu0
    %v1189 = vadd.f32 %v1057, %v1188
    %v1190 = vpop.f32.mrb[0].mxu0
    %v1191 = vpop.f32.mrb[0].mxu0
    %v1192 = vadd.f32 %v1057, %v1191
    %v1193 = vpop.f32.mrb[0].mxu0
    %1194 = vmatprep.mubr.bf16.mxu0 0
    %1195 = vmatmul.mubr.bf16.gmra.mrb[0].mxu0 %v1029
    %v1196 = vpop.f32.mrb[0].mxu0
    %v1197 = vadd.f32 %v1057, %v1196
    %v1198 = vpop.f32.mrb[0].mxu0
    %v1199 = vpop.f32.mrb[0].mxu0
    %v1200 = vadd.f32 %v1057, %v1199
    %v1201 = vpop.f32.mrb[0].mxu0
    %1202 = vmatprep.mubr.bf16.mxu0 0
    %1203 = vmatmul.mubr.bf16.gmra.mrb[0].mxu0 %v1030
    %v1204 = vpop.f32.mrb[0].mxu0
    %v1205 = vadd.f32 %v1057, %v1204
    %v1206 = vpop.f32.mrb[0].mxu0
    %v1207 = vpop.f32.mrb[0].mxu0
    %v1208 = vadd.f32 %v1057, %v1207
    %v1209 = vpop.f32.mrb[0].mxu0
    %1210 = vmatprep.mubr.bf16.mxu0 0
    %1211 = vmatmul.mubr.bf16.gmra.mrb[0].mxu0 %v1031
    %v1212 = vpop.f32.mrb[0].mxu0
    %v1213 = vadd.f32 %v1057, %v1212
    %v1214 = vpop.f32.mrb[0].mxu0
    %v1215 = vpop.f32.mrb[0].mxu0
    %v1216 = vadd.f32 %v1057, %v1215
    %v1217 = vpop.f32.mrb[0].mxu0
    %1218 = vmatprep.mubr.bf16.mxu0 0
    %1219 = vmatmul.mubr.bf16.gmra.mrb[0].mxu0 %v1032
    %v1220 = vpop.f32.mrb[0].mxu0
    %v1221 = vadd.f32 %v1057, %v1220
    %v1222 = vpop.f32.mrb[0].mxu0
    %v1223 = vpop.f32.mrb[0].mxu0
    %v1224 = vadd.f32 %v1057, %v1223
    %v1225 = vpop.f32.mrb[0].mxu0
    %1226 = vmatprep.mubr.bf16.mxu0 0
    %1227 = vmatmul.mubr.bf16.gmra.mrb[0].mxu0 %v1033
    %v1228 = vpop.f32.mrb[0].mxu0
    %v1229 = vadd.f32 %v1057, %v1228
    %v1230 = vpop.f32.mrb[0].mxu0
    %v1231 = vpop.f32.mrb[0].mxu0
    %v1232 = vadd.f32 %v1057, %v1231
    %v1233 = vpop.f32.mrb[0].mxu0
    %1234 = vmatprep.mubr.bf16.mxu0 0
    %1235 = vmatmul.mubr.bf16.gmra.mrb[0].mxu0 %v1034
    %v1236 = vpop.f32.mrb[0].mxu0
    %v1237 = vadd.f32 %v1057, %v1236
    %v1238 = vpop.f32.mrb[0].mxu0
    %v1239 = vpop.f32.mrb[0].mxu0
    %v1240 = vadd.f32 %v1057, %v1239
    %v1241 = vpop.f32.mrb[0].mxu0
    %1242 = vmatprep.mubr.bf16.mxu0 0
    %1243 = vmatmul.mubr.bf16.gmra.mrb[0].mxu0 %v1035
    %v1244 = vpop.f32.mrb[0].mxu0
    %v1245 = vadd.f32 %v1057, %v1244
    %v1246 = vpop.f32.mrb[0].mxu0
    %v1247 = vpop.f32.mrb[0].mxu0
    %v1248 = vadd.f32 %v1057, %v1247
    %v1249 = vpop.f32.mrb[0].mxu0
    %1250 = vmatprep.mubr.bf16.mxu0 0
    %1251 = vmatmul.mubr.bf16.gmra.mrb[0].mxu0 %v1036
    %v1252 = vpop.f32.mrb[0].mxu0
    %v1253 = vadd.f32 %v1057, %v1252
    %v1254 = vpop.f32.mrb[0].mxu0
    %v1255 = vpop.f32.mrb[0].mxu0
    %v1256 = vadd.f32 %v1057, %v1255
    %v1257 = vpop.f32.mrb[0].mxu0
    %1258 = vmatprep.mubr.bf16.mxu0 0
    %1259 = vmatmul.mubr.bf16.gmra.mrb[0].mxu0 %v1037
    %v1260 = vpop.f32.mrb[0].mxu0
    %v1261 = vadd.f32 %v1057, %v1260
    %v1262 = vpop.f32.mrb[0].mxu0
    %v1263 = vpop.f32.mrb[0].mxu0
    %v1264 = vadd.f32 %v1057, %v1263
    %v1265 = vpop.f32.mrb[0].mxu0
    %1266 = vdwg.mxu0
    %1267 = vadd.xlane.f32.xlu0 %v1141
    %v1268 = vpop.xlane.xlu0 %1267
    %1269 = vadd.xlane.f32.xlu0 %v1144
    %v1270 = vpop.xlane.xlu0 %1269
    %1271 = vadd.xlane.f32.xlu0 %v1149
    %v1272 = vpop.xlane.xlu0 %1271
    %1273 = vadd.xlane.f32.xlu0 %v1152
    %v1274 = vpop.xlane.xlu0 %1273
    %1275 = vadd.xlane.f32.xlu0 %v1157
    %v1276 = vpop.xlane.xlu0 %1275
    %1277 = vadd.xlane.f32.xlu0 %v1160
    %v1278 = vpop.xlane.xlu0 %1277
    %1279 = vadd.xlane.f32.xlu0 %v1165
    %v1280 = vpop.xlane.xlu0 %1279
    %1281 = vadd.xlane.f32.xlu0 %v1168
    %v1282 = vpop.xlane.xlu0 %1281
    %1283 = vadd.xlane.f32.xlu0 %v1173
    %v1284 = vpop.xlane.xlu0 %1283
    %1285 = vadd.xlane.f32.xlu0 %v1176
    %v1286 = vpop.xlane.xlu0 %1285
    %1287 = vadd.xlane.f32.xlu0 %v1181
    %v1288 = vpop.xlane.xlu0 %1287
    %1289 = vadd.xlane.f32.xlu0 %v1184
    %v1290 = vpop.xlane.xlu0 %1289
    %1291 = vadd.xlane.f32.xlu0 %v1189
    %v1292 = vpop.xlane.xlu0 %1291
    %1293 = vadd.xlane.f32.xlu0 %v1192
    %v1294 = vpop.xlane.xlu0 %1293
    %1295 = vadd.xlane.f32.xlu0 %v1197
    %v1296 = vpop.xlane.xlu0 %1295
    %1297 = vadd.xlane.f32.xlu0 %v1200
    %v1298 = vpop.xlane.xlu0 %1297
    %1299 = vadd.xlane.f32.xlu0 %v1205
    %v1300 = vpop.xlane.xlu0 %1299
    %1301 = vadd.xlane.f32.xlu0 %v1208
    %v1302 = vpop.xlane.xlu0 %1301
    %1303 = vadd.xlane.f32.xlu0 %v1213
    %v1304 = vpop.xlane.xlu0 %1303
    %1305 = vadd.xlane.f32.xlu0 %v1216
    %v1306 = vpop.xlane.xlu0 %1305
    %1307 = vadd.xlane.f32.xlu0 %v1221
    %v1308 = vpop.xlane.xlu0 %1307
    %1309 = vadd.xlane.f32.xlu0 %v1224
    %v1310 = vpop.xlane.xlu0 %1309
    %1311 = vadd.xlane.f32.xlu0 %v1229
    %v1312 = vpop.xlane.xlu0 %1311
    %1313 = vadd.xlane.f32.xlu0 %v1232
    %v1314 = vpop.xlane.xlu0 %1313
    %1315 = vadd.xlane.f32.xlu0 %v1237
    %v1316 = vpop.xlane.xlu0 %1315
    %1317 = vadd.xlane.f32.xlu0 %v1240
    %v1318 = vpop.xlane.xlu0 %1317
    %1319 = vadd.xlane.f32.xlu0 %v1245
    %v1320 = vpop.xlane.xlu0 %1319
    %1321 = vadd.xlane.f32.xlu0 %v1248
    %v1322 = vpop.xlane.xlu0 %1321
    %1323 = vadd.xlane.f32.xlu0 %v1253
    %v1324 = vpop.xlane.xlu0 %1323
    %1325 = vadd.xlane.f32.xlu0 %v1256
    %v1326 = vpop.xlane.xlu0 %1325
    %1327 = vadd.xlane.f32.xlu0 %v1261
    %v1328 = vpop.xlane.xlu0 %1327
    %1329 = vadd.xlane.f32.xlu0 %v1264
    %v1330 = vpop.xlane.xlu0 %1329
    %v1331 = vmul.f32 %v1268, 0.020833334
    %v1332 = vmul.f32 %v1270, 0.020833334
    %v1333 = vmul.f32 %v1272, 0.020833334
    %v1334 = vmul.f32 %v1274, 0.020833334
    %v1335 = vmul.f32 %v1276, 0.020833334
    %v1336 = vmul.f32 %v1278, 0.020833334
    %v1337 = vmul.f32 %v1280, 0.020833334
    %v1338 = vmul.f32 %v1282, 0.020833334
    %v1339 = vmul.f32 %v1284, 0.020833334
    %v1340 = vmul.f32 %v1286, 0.020833334
    %v1341 = vmul.f32 %v1288, 0.020833334
    %v1342 = vmul.f32 %v1290, 0.020833334
    %v1343 = vmul.f32 %v1292, 0.020833334
    %v1344 = vmul.f32 %v1294, 0.020833334
    %v1345 = vmul.f32 %v1296, 0.020833334
    %v1346 = vmul.f32 %v1298, 0.020833334
    %v1347 = vmul.f32 %v1300, 0.020833334
    %v1348 = vmul.f32 %v1302, 0.020833334
    %v1349 = vmul.f32 %v1304, 0.020833334
    %v1350 = vmul.f32 %v1306, 0.020833334
    %v1351 = vmul.f32 %v1308, 0.020833334
    %v1352 = vmul.f32 %v1310, 0.020833334
    %v1353 = vmul.f32 %v1312, 0.020833334
    %v1354 = vmul.f32 %v1314, 0.020833334
    %v1355 = vmul.f32 %v1316, 0.020833334
    %v1356 = vmul.f32 %v1318, 0.020833334
    %v1357 = vmul.f32 %v1320, 0.020833334
    %v1358 = vmul.f32 %v1322, 0.020833334
    %v1359 = vmul.f32 %v1324, 0.020833334
    %v1360 = vmul.f32 %v1326, 0.020833334
    %v1361 = vmul.f32 %v1328, 0.020833334
    %v1362 = vmul.f32 %v1330, 0.020833334
    %v1363 = vsub.f32 %v1141, %v1331
    %v1364 = vsub.f32 %v1144, %v1332
    %v1365 = vsub.f32 %v1149, %v1333
    %v1366 = vsub.f32 %v1152, %v1334
    %v1367 = vsub.f32 %v1157, %v1335
    %v1368 = vsub.f32 %v1160, %v1336
    %v1369 = vsub.f32 %v1165, %v1337
    %v1370 = vsub.f32 %v1168, %v1338
    %v1371 = vsub.f32 %v1173, %v1339
    %v1372 = vsub.f32 %v1176, %v1340
    %v1373 = vsub.f32 %v1181, %v1341
    %v1374 = vsub.f32 %v1184, %v1342
    %v1375 = vsub.f32 %v1189, %v1343
    %v1376 = vsub.f32 %v1192, %v1344
    %v1377 = vsub.f32 %v1197, %v1345
    %v1378 = vsub.f32 %v1200, %v1346
    %v1379 = vsub.f32 %v1205, %v1347
    %v1380 = vsub.f32 %v1208, %v1348
    %v1381 = vsub.f32 %v1213, %v1349
    %v1382 = vsub.f32 %v1216, %v1350
    %v1383 = vsub.f32 %v1221, %v1351
    %v1384 = vsub.f32 %v1224, %v1352
    %v1385 = vsub.f32 %v1229, %v1353
    %v1386 = vsub.f32 %v1232, %v1354
    %v1387 = vsub.f32 %v1237, %v1355
    %v1388 = vsub.f32 %v1240, %v1356
    %v1389 = vsub.f32 %v1245, %v1357
    %v1390 = vsub.f32 %v1248, %v1358
    %v1391 = vsub.f32 %v1253, %v1359
    %v1392 = vsub.f32 %v1256, %v1360
    %v1393 = vsub.f32 %v1261, %v1361
    %v1394 = vsub.f32 %v1264, %v1362
    %v1395 = vlaneseq
    %v1396 = vand.u32 %v1395, 127
    %vm1397 = vcmp.lt.s32.totalorder %v1396, 48
    %v1398 = vsel %vm1397, %v1363, 0.0
    %v1399 = vsel %vm1397, %v1364, 0.0
    %v1400 = vsel %vm1397, %v1365, 0.0
    %v1401 = vsel %vm1397, %v1366, 0.0
    %v1402 = vsel %vm1397, %v1367, 0.0
    %v1403 = vsel %vm1397, %v1368, 0.0
    %v1404 = vsel %vm1397, %v1369, 0.0
    %v1405 = vsel %vm1397, %v1370, 0.0
    %v1406 = vsel %vm1397, %v1371, 0.0
    %v1407 = vsel %vm1397, %v1372, 0.0
    %v1408 = vsel %vm1397, %v1373, 0.0
    %v1409 = vsel %vm1397, %v1374, 0.0
    %v1410 = vsel %vm1397, %v1375, 0.0
    %v1411 = vsel %vm1397, %v1376, 0.0
    %v1412 = vsel %vm1397, %v1377, 0.0
    %v1413 = vsel %vm1397, %v1378, 0.0
    %v1414 = vsel %vm1397, %v1379, 0.0
    %v1415 = vsel %vm1397, %v1380, 0.0
    %v1416 = vsel %vm1397, %v1381, 0.0
    %v1417 = vsel %vm1397, %v1382, 0.0
    %v1418 = vsel %vm1397, %v1383, 0.0
    %v1419 = vsel %vm1397, %v1384, 0.0
    %v1420 = vsel %vm1397, %v1385, 0.0
    %v1421 = vsel %vm1397, %v1386, 0.0
    %v1422 = vsel %vm1397, %v1387, 0.0
    %v1423 = vsel %vm1397, %v1388, 0.0
    %v1424 = vsel %vm1397, %v1389, 0.0
    %v1425 = vsel %vm1397, %v1390, 0.0
    %v1426 = vsel %vm1397, %v1391, 0.0
    %v1427 = vsel %vm1397, %v1392, 0.0
    %v1428 = vsel %vm1397, %v1393, 0.0
    %v1429 = vsel %vm1397, %v1394, 0.0
    %v1430 = vmul.f32 %v1398, %v1398
    %v1431 = vmul.f32 %v1399, %v1399
    %v1432 = vmul.f32 %v1400, %v1400
    %v1433 = vmul.f32 %v1401, %v1401
    %v1434 = vmul.f32 %v1402, %v1402
    %v1435 = vmul.f32 %v1403, %v1403
    %v1436 = vmul.f32 %v1404, %v1404
    %v1437 = vmul.f32 %v1405, %v1405
    %v1438 = vmul.f32 %v1406, %v1406
    %v1439 = vmul.f32 %v1407, %v1407
    %v1440 = vmul.f32 %v1408, %v1408
    %v1441 = vmul.f32 %v1409, %v1409
    %v1442 = vmul.f32 %v1410, %v1410
    %v1443 = vmul.f32 %v1411, %v1411
    %v1444 = vmul.f32 %v1412, %v1412
    %v1445 = vmul.f32 %v1413, %v1413
    %v1446 = vmul.f32 %v1414, %v1414
    %v1447 = vmul.f32 %v1415, %v1415
    %v1448 = vmul.f32 %v1416, %v1416
    %v1449 = vmul.f32 %v1417, %v1417
    %v1450 = vmul.f32 %v1418, %v1418
    %v1451 = vmul.f32 %v1419, %v1419
    %v1452 = vmul.f32 %v1420, %v1420
    %v1453 = vmul.f32 %v1421, %v1421
    %v1454 = vmul.f32 %v1422, %v1422
    %v1455 = vmul.f32 %v1423, %v1423
    %v1456 = vmul.f32 %v1424, %v1424
    %v1457 = vmul.f32 %v1425, %v1425
    %v1458 = vmul.f32 %v1426, %v1426
    %v1459 = vmul.f32 %v1427, %v1427
    %v1460 = vmul.f32 %v1428, %v1428
    %v1461 = vmul.f32 %v1429, %v1429
    %1462 = vadd.xlane.f32.xlu0 %v1430
    %v1463 = vpop.xlane.xlu0 %1462
    %1464 = vadd.xlane.f32.xlu0 %v1431
    %v1465 = vpop.xlane.xlu0 %1464
    %1466 = vadd.xlane.f32.xlu0 %v1432
    %v1467 = vpop.xlane.xlu0 %1466
    %1468 = vadd.xlane.f32.xlu0 %v1433
    %v1469 = vpop.xlane.xlu0 %1468
    %1470 = vadd.xlane.f32.xlu0 %v1434
    %v1471 = vpop.xlane.xlu0 %1470
    %1472 = vadd.xlane.f32.xlu0 %v1435
    %v1473 = vpop.xlane.xlu0 %1472
    %1474 = vadd.xlane.f32.xlu0 %v1436
    %v1475 = vpop.xlane.xlu0 %1474
    %1476 = vadd.xlane.f32.xlu0 %v1437
    %v1477 = vpop.xlane.xlu0 %1476
    %1478 = vadd.xlane.f32.xlu0 %v1438
    %v1479 = vpop.xlane.xlu0 %1478
    %1480 = vadd.xlane.f32.xlu0 %v1439
    %v1481 = vpop.xlane.xlu0 %1480
    %1482 = vadd.xlane.f32.xlu0 %v1440
    %v1483 = vpop.xlane.xlu0 %1482
    %1484 = vadd.xlane.f32.xlu0 %v1441
    %v1485 = vpop.xlane.xlu0 %1484
    %1486 = vadd.xlane.f32.xlu0 %v1442
    %v1487 = vpop.xlane.xlu0 %1486
    %1488 = vadd.xlane.f32.xlu0 %v1443
    %v1489 = vpop.xlane.xlu0 %1488
    %1490 = vadd.xlane.f32.xlu0 %v1444
    %v1491 = vpop.xlane.xlu0 %1490
    %1492 = vadd.xlane.f32.xlu0 %v1445
    %v1493 = vpop.xlane.xlu0 %1492
    %1494 = vadd.xlane.f32.xlu0 %v1446
    %v1495 = vpop.xlane.xlu0 %1494
    %1496 = vadd.xlane.f32.xlu0 %v1447
    %v1497 = vpop.xlane.xlu0 %1496
    %1498 = vadd.xlane.f32.xlu0 %v1448
    %v1499 = vpop.xlane.xlu0 %1498
    %1500 = vadd.xlane.f32.xlu0 %v1449
    %v1501 = vpop.xlane.xlu0 %1500
    %1502 = vadd.xlane.f32.xlu0 %v1450
    %v1503 = vpop.xlane.xlu0 %1502
    %1504 = vadd.xlane.f32.xlu0 %v1451
    %v1505 = vpop.xlane.xlu0 %1504
    %1506 = vadd.xlane.f32.xlu0 %v1452
    %v1507 = vpop.xlane.xlu0 %1506
    %1508 = vadd.xlane.f32.xlu0 %v1453
    %v1509 = vpop.xlane.xlu0 %1508
    %1510 = vadd.xlane.f32.xlu0 %v1454
    %v1511 = vpop.xlane.xlu0 %1510
    %1512 = vadd.xlane.f32.xlu0 %v1455
    %v1513 = vpop.xlane.xlu0 %1512
    %1514 = vadd.xlane.f32.xlu0 %v1456
    %v1515 = vpop.xlane.xlu0 %1514
    %1516 = vadd.xlane.f32.xlu0 %v1457
    %v1517 = vpop.xlane.xlu0 %1516
    %1518 = vadd.xlane.f32.xlu0 %v1458
    %v1519 = vpop.xlane.xlu0 %1518
    %1520 = vadd.xlane.f32.xlu0 %v1459
    %v1521 = vpop.xlane.xlu0 %1520
    %1522 = vadd.xlane.f32.xlu0 %v1460
    %v1523 = vpop.xlane.xlu0 %1522
    %1524 = vadd.xlane.f32.xlu0 %v1461
    %v1525 = vpop.xlane.xlu0 %1524
    %v1526 = vmul.f32 %v1463, 0.020833334
    %v1527 = vmul.f32 %v1465, 0.020833334
    %v1528 = vmul.f32 %v1467, 0.020833334
    %v1529 = vmul.f32 %v1469, 0.020833334
    %v1530 = vmul.f32 %v1471, 0.020833334
    %v1531 = vmul.f32 %v1473, 0.020833334
    %v1532 = vmul.f32 %v1475, 0.020833334
    %v1533 = vmul.f32 %v1477, 0.020833334
    %v1534 = vmul.f32 %v1479, 0.020833334
    %v1535 = vmul.f32 %v1481, 0.020833334
    %v1536 = vmul.f32 %v1483, 0.020833334
    %v1537 = vmul.f32 %v1485, 0.020833334
    %v1538 = vmul.f32 %v1487, 0.020833334
    %v1539 = vmul.f32 %v1489, 0.020833334
    %v1540 = vmul.f32 %v1491, 0.020833334
    %v1541 = vmul.f32 %v1493, 0.020833334
    %v1542 = vmul.f32 %v1495, 0.020833334
    %v1543 = vmul.f32 %v1497, 0.020833334
    %v1544 = vmul.f32 %v1499, 0.020833334
    %v1545 = vmul.f32 %v1501, 0.020833334
    %v1546 = vmul.f32 %v1503, 0.020833334
    %v1547 = vmul.f32 %v1505, 0.020833334
    %v1548 = vmul.f32 %v1507, 0.020833334
    %v1549 = vmul.f32 %v1509, 0.020833334
    %v1550 = vmul.f32 %v1511, 0.020833334
    %v1551 = vmul.f32 %v1513, 0.020833334
    %v1552 = vmul.f32 %v1515, 0.020833334
    %v1553 = vmul.f32 %v1517, 0.020833334
    %v1554 = vmul.f32 %v1519, 0.020833334
    %v1555 = vmul.f32 %v1521, 0.020833334
    %v1556 = vmul.f32 %v1523, 0.020833334
    %v1557 = vmul.f32 %v1525, 0.020833334
    %v1558 = vadd.f32 %v1526, 1e-05
    %v1559 = vadd.f32 %v1527, 1e-05
    %v1560 = vadd.f32 %v1528, 1e-05
    %v1561 = vadd.f32 %v1529, 1e-05
    %v1562 = vadd.f32 %v1530, 1e-05
    %v1563 = vadd.f32 %v1531, 1e-05
    %v1564 = vadd.f32 %v1532, 1e-05
    %v1565 = vadd.f32 %v1533, 1e-05
    %v1566 = vadd.f32 %v1534, 1e-05
    %v1567 = vadd.f32 %v1535, 1e-05
    %v1568 = vadd.f32 %v1536, 1e-05
    %v1569 = vadd.f32 %v1537, 1e-05
    %v1570 = vadd.f32 %v1538, 1e-05
    %v1571 = vadd.f32 %v1539, 1e-05
    %v1572 = vadd.f32 %v1540, 1e-05
    %v1573 = vadd.f32 %v1541, 1e-05
    %v1574 = vadd.f32 %v1542, 1e-05
    %v1575 = vadd.f32 %v1543, 1e-05
    %v1576 = vadd.f32 %v1544, 1e-05
    %v1577 = vadd.f32 %v1545, 1e-05
    %v1578 = vadd.f32 %v1546, 1e-05
    %v1579 = vadd.f32 %v1547, 1e-05
    %v1580 = vadd.f32 %v1548, 1e-05
    %v1581 = vadd.f32 %v1549, 1e-05
    %v1582 = vadd.f32 %v1550, 1e-05
    %v1583 = vadd.f32 %v1551, 1e-05
    %v1584 = vadd.f32 %v1552, 1e-05
    %v1585 = vadd.f32 %v1553, 1e-05
    %v1586 = vadd.f32 %v1554, 1e-05
    %v1587 = vadd.f32 %v1555, 1e-05
    %v1588 = vadd.f32 %v1556, 1e-05
    %v1589 = vadd.f32 %v1557, 1e-05
    %v1590 = vrsqrt.pop %v1558
    %v1591 = vrsqrt.pop %v1559
    %v1592 = vrsqrt.pop %v1560
    %v1593 = vrsqrt.pop %v1561
    %v1594 = vrsqrt.pop %v1562
    %v1595 = vrsqrt.pop %v1563
    %v1596 = vrsqrt.pop %v1564
    %v1597 = vrsqrt.pop %v1565
    %v1598 = vrsqrt.pop %v1566
    %v1599 = vrsqrt.pop %v1567
    %v1600 = vrsqrt.pop %v1568
    %v1601 = vrsqrt.pop %v1569
    %v1602 = vrsqrt.pop %v1570
    %v1603 = vrsqrt.pop %v1571
    %v1604 = vrsqrt.pop %v1572
    %v1605 = vrsqrt.pop %v1573
    %v1606 = vrsqrt.pop %v1574
    %v1607 = vrsqrt.pop %v1575
    %v1608 = vrsqrt.pop %v1576
    %v1609 = vrsqrt.pop %v1577
    %v1610 = vrsqrt.pop %v1578
    %v1611 = vrsqrt.pop %v1579
    %v1612 = vrsqrt.pop %v1580
    %v1613 = vrsqrt.pop %v1581
    %v1614 = vrsqrt.pop %v1582
    %v1615 = vrsqrt.pop %v1583
    %v1616 = vrsqrt.pop %v1584
    %v1617 = vrsqrt.pop %v1585
    %v1618 = vrsqrt.pop %v1586
    %v1619 = vrsqrt.pop %v1587
    %v1620 = vrsqrt.pop %v1588
    %v1621 = vrsqrt.pop %v1589
    %v1622 = vlaneseq
    %v1623 = vshrl.u32 %v1622, 7
    %v1624 = vsub.s32 0, %v1623
    %v1625 = vrot.slane %v79, %v1624
    %v1626 = vmul.f32 %v1590, %v1625
    %v1627 = vmul.f32 %v1591, %v1625
    %v1628 = vmul.f32 %v1592, %v1625
    %v1629 = vmul.f32 %v1593, %v1625
    %v1630 = vmul.f32 %v1594, %v1625
    %v1631 = vmul.f32 %v1595, %v1625
    %v1632 = vmul.f32 %v1596, %v1625
    %v1633 = vmul.f32 %v1597, %v1625
    %v1634 = vmul.f32 %v1598, %v1625
    %v1635 = vmul.f32 %v1599, %v1625
    %v1636 = vmul.f32 %v1600, %v1625
    %v1637 = vmul.f32 %v1601, %v1625
    %v1638 = vmul.f32 %v1602, %v1625
    %v1639 = vmul.f32 %v1603, %v1625
    %v1640 = vmul.f32 %v1604, %v1625
    %v1641 = vmul.f32 %v1605, %v1625
    %v1642 = vmul.f32 %v1606, %v1625
    %v1643 = vmul.f32 %v1607, %v1625
    %v1644 = vmul.f32 %v1608, %v1625
    %v1645 = vmul.f32 %v1609, %v1625
    %v1646 = vmul.f32 %v1610, %v1625
    %v1647 = vmul.f32 %v1611, %v1625
    %v1648 = vmul.f32 %v1612, %v1625
    %v1649 = vmul.f32 %v1613, %v1625
    %v1650 = vmul.f32 %v1614, %v1625
    %v1651 = vmul.f32 %v1615, %v1625
    %v1652 = vmul.f32 %v1616, %v1625
    %v1653 = vmul.f32 %v1617, %v1625
    %v1654 = vmul.f32 %v1618, %v1625
    %v1655 = vmul.f32 %v1619, %v1625
    %v1656 = vmul.f32 %v1620, %v1625
    %v1657 = vmul.f32 %v1621, %v1625
    %v1658 = vmul.f32 %v1398, %v1626
    %v1659 = vmul.f32 %v1399, %v1627
    %v1660 = vmul.f32 %v1400, %v1628
    %v1661 = vmul.f32 %v1401, %v1629
    %v1662 = vmul.f32 %v1402, %v1630
    %v1663 = vmul.f32 %v1403, %v1631
    %v1664 = vmul.f32 %v1404, %v1632
    %v1665 = vmul.f32 %v1405, %v1633
    %v1666 = vmul.f32 %v1406, %v1634
    %v1667 = vmul.f32 %v1407, %v1635
    %v1668 = vmul.f32 %v1408, %v1636
    %v1669 = vmul.f32 %v1409, %v1637
    %v1670 = vmul.f32 %v1410, %v1638
    %v1671 = vmul.f32 %v1411, %v1639
    %v1672 = vmul.f32 %v1412, %v1640
    %v1673 = vmul.f32 %v1413, %v1641
    %v1674 = vmul.f32 %v1414, %v1642
    %v1675 = vmul.f32 %v1415, %v1643
    %v1676 = vmul.f32 %v1416, %v1644
    %v1677 = vmul.f32 %v1417, %v1645
    %v1678 = vmul.f32 %v1418, %v1646
    %v1679 = vmul.f32 %v1419, %v1647
    %v1680 = vmul.f32 %v1420, %v1648
    %v1681 = vmul.f32 %v1421, %v1649
    %v1682 = vmul.f32 %v1422, %v1650
    %v1683 = vmul.f32 %v1423, %v1651
    %v1684 = vmul.f32 %v1424, %v1652
    %v1685 = vmul.f32 %v1425, %v1653
    %v1686 = vmul.f32 %v1426, %v1654
    %v1687 = vmul.f32 %v1427, %v1655
    %v1688 = vmul.f32 %v1428, %v1656
    %v1689 = vmul.f32 %v1429, %v1657
    %v1690 = vlaneseq
    %v1691 = vshrl.u32 %v1690, 7
    %v1692 = vsub.s32 0, %v1691
    %v1693 = vrot.slane %v80, %v1692
    %v1694 = vadd.f32 %v1658, %v1693
    %v1695 = vadd.f32 %v1659, %v1693
    %v1696 = vadd.f32 %v1660, %v1693
    %v1697 = vadd.f32 %v1661, %v1693
    %v1698 = vadd.f32 %v1662, %v1693
    %v1699 = vadd.f32 %v1663, %v1693
    %v1700 = vadd.f32 %v1664, %v1693
    %v1701 = vadd.f32 %v1665, %v1693
    %v1702 = vadd.f32 %v1666, %v1693
    %v1703 = vadd.f32 %v1667, %v1693
    %v1704 = vadd.f32 %v1668, %v1693
    %v1705 = vadd.f32 %v1669, %v1693
    %v1706 = vadd.f32 %v1670, %v1693
    %v1707 = vadd.f32 %v1671, %v1693
    %v1708 = vadd.f32 %v1672, %v1693
    %v1709 = vadd.f32 %v1673, %v1693
    %v1710 = vadd.f32 %v1674, %v1693
    %v1711 = vadd.f32 %v1675, %v1693
    %v1712 = vadd.f32 %v1676, %v1693
    %v1713 = vadd.f32 %v1677, %v1693
    %v1714 = vadd.f32 %v1678, %v1693
    %v1715 = vadd.f32 %v1679, %v1693
    %v1716 = vadd.f32 %v1680, %v1693
    %v1717 = vadd.f32 %v1681, %v1693
    %v1718 = vadd.f32 %v1682, %v1693
    %v1719 = vadd.f32 %v1683, %v1693
    %v1720 = vadd.f32 %v1684, %v1693
    %v1721 = vadd.f32 %v1685, %v1693
    %v1722 = vadd.f32 %v1686, %v1693
    %v1723 = vadd.f32 %v1687, %v1693
    %v1724 = vadd.f32 %v1688, %v1693
    %v1725 = vadd.f32 %v1689, %v1693
    %v1726 = vmul.f32 %v1694, %v1694
    %v1727 = vmul.f32 %v1695, %v1695
    %v1728 = vmul.f32 %v1696, %v1696
    %v1729 = vmul.f32 %v1697, %v1697
    %v1730 = vmul.f32 %v1698, %v1698
    %v1731 = vmul.f32 %v1699, %v1699
    %v1732 = vmul.f32 %v1700, %v1700
    %v1733 = vmul.f32 %v1701, %v1701
    %v1734 = vmul.f32 %v1702, %v1702
    %v1735 = vmul.f32 %v1703, %v1703
    %v1736 = vmul.f32 %v1704, %v1704
    %v1737 = vmul.f32 %v1705, %v1705
    %v1738 = vmul.f32 %v1706, %v1706
    %v1739 = vmul.f32 %v1707, %v1707
    %v1740 = vmul.f32 %v1708, %v1708
    %v1741 = vmul.f32 %v1709, %v1709
    %v1742 = vmul.f32 %v1710, %v1710
    %v1743 = vmul.f32 %v1711, %v1711
    %v1744 = vmul.f32 %v1712, %v1712
    %v1745 = vmul.f32 %v1713, %v1713
    %v1746 = vmul.f32 %v1714, %v1714
    %v1747 = vmul.f32 %v1715, %v1715
    %v1748 = vmul.f32 %v1716, %v1716
    %v1749 = vmul.f32 %v1717, %v1717
    %v1750 = vmul.f32 %v1718, %v1718
    %v1751 = vmul.f32 %v1719, %v1719
    %v1752 = vmul.f32 %v1720, %v1720
    %v1753 = vmul.f32 %v1721, %v1721
    %v1754 = vmul.f32 %v1722, %v1722
    %v1755 = vmul.f32 %v1723, %v1723
    %v1756 = vmul.f32 %v1724, %v1724
    %v1757 = vmul.f32 %v1725, %v1725
    %1758 = vadd.xlane.f32.xlu0 %v1726
    %v1759 = vpop.xlane.xlu0 %1758
    %1760 = vadd.xlane.f32.xlu0 %v1727
    %v1761 = vpop.xlane.xlu0 %1760
    %1762 = vadd.xlane.f32.xlu0 %v1728
    %v1763 = vpop.xlane.xlu0 %1762
    %1764 = vadd.xlane.f32.xlu0 %v1729
    %v1765 = vpop.xlane.xlu0 %1764
    %1766 = vadd.xlane.f32.xlu0 %v1730
    %v1767 = vpop.xlane.xlu0 %1766
    %1768 = vadd.xlane.f32.xlu0 %v1731
    %v1769 = vpop.xlane.xlu0 %1768
    %1770 = vadd.xlane.f32.xlu0 %v1732
    %v1771 = vpop.xlane.xlu0 %1770
    %1772 = vadd.xlane.f32.xlu0 %v1733
    %v1773 = vpop.xlane.xlu0 %1772
    %1774 = vadd.xlane.f32.xlu0 %v1734
    %v1775 = vpop.xlane.xlu0 %1774
    %1776 = vadd.xlane.f32.xlu0 %v1735
    %v1777 = vpop.xlane.xlu0 %1776
    %1778 = vadd.xlane.f32.xlu0 %v1736
    %v1779 = vpop.xlane.xlu0 %1778
    %1780 = vadd.xlane.f32.xlu0 %v1737
    %v1781 = vpop.xlane.xlu0 %1780
    %1782 = vadd.xlane.f32.xlu0 %v1738
    %v1783 = vpop.xlane.xlu0 %1782
    %1784 = vadd.xlane.f32.xlu0 %v1739
    %v1785 = vpop.xlane.xlu0 %1784
    %1786 = vadd.xlane.f32.xlu0 %v1740
    %v1787 = vpop.xlane.xlu0 %1786
    %1788 = vadd.xlane.f32.xlu0 %v1741
    %v1789 = vpop.xlane.xlu0 %1788
    %1790 = vadd.xlane.f32.xlu0 %v1742
    %v1791 = vpop.xlane.xlu0 %1790
    %1792 = vadd.xlane.f32.xlu0 %v1743
    %v1793 = vpop.xlane.xlu0 %1792
    %1794 = vadd.xlane.f32.xlu0 %v1744
    %v1795 = vpop.xlane.xlu0 %1794
    %1796 = vadd.xlane.f32.xlu0 %v1745
    %v1797 = vpop.xlane.xlu0 %1796
    %1798 = vadd.xlane.f32.xlu0 %v1746
    %v1799 = vpop.xlane.xlu0 %1798
    %1800 = vadd.xlane.f32.xlu0 %v1747
    %v1801 = vpop.xlane.xlu0 %1800
    %1802 = vadd.xlane.f32.xlu0 %v1748
    %v1803 = vpop.xlane.xlu0 %1802
    %1804 = vadd.xlane.f32.xlu0 %v1749
    %v1805 = vpop.xlane.xlu0 %1804
    %1806 = vadd.xlane.f32.xlu0 %v1750
    %v1807 = vpop.xlane.xlu0 %1806
    %1808 = vadd.xlane.f32.xlu0 %v1751
    %v1809 = vpop.xlane.xlu0 %1808
    %1810 = vadd.xlane.f32.xlu0 %v1752
    %v1811 = vpop.xlane.xlu0 %1810
    %1812 = vadd.xlane.f32.xlu0 %v1753
    %v1813 = vpop.xlane.xlu0 %1812
    %1814 = vadd.xlane.f32.xlu0 %v1754
    %v1815 = vpop.xlane.xlu0 %1814
    %1816 = vadd.xlane.f32.xlu0 %v1755
    %v1817 = vpop.xlane.xlu0 %1816
    %1818 = vadd.xlane.f32.xlu0 %v1756
    %v1819 = vpop.xlane.xlu0 %1818
    %1820 = vadd.xlane.f32.xlu0 %v1757
    %v1821 = vpop.xlane.xlu0 %1820
    %v1822 = vmax.f32 %v1759, 1e-24
    %v1823 = vmax.f32 %v1761, 1e-24
    %v1824 = vmax.f32 %v1763, 1e-24
    %v1825 = vmax.f32 %v1765, 1e-24
    %v1826 = vmax.f32 %v1767, 1e-24
    %v1827 = vmax.f32 %v1769, 1e-24
    %v1828 = vmax.f32 %v1771, 1e-24
    %v1829 = vmax.f32 %v1773, 1e-24
    %v1830 = vmax.f32 %v1775, 1e-24
    %v1831 = vmax.f32 %v1777, 1e-24
    %v1832 = vmax.f32 %v1779, 1e-24
    %v1833 = vmax.f32 %v1781, 1e-24
    %v1834 = vmax.f32 %v1783, 1e-24
    %v1835 = vmax.f32 %v1785, 1e-24
    %v1836 = vmax.f32 %v1787, 1e-24
    %v1837 = vmax.f32 %v1789, 1e-24
    %v1838 = vmax.f32 %v1791, 1e-24
    %v1839 = vmax.f32 %v1793, 1e-24
    %v1840 = vmax.f32 %v1795, 1e-24
    %v1841 = vmax.f32 %v1797, 1e-24
    %v1842 = vmax.f32 %v1799, 1e-24
    %v1843 = vmax.f32 %v1801, 1e-24
    %v1844 = vmax.f32 %v1803, 1e-24
    %v1845 = vmax.f32 %v1805, 1e-24
    %v1846 = vmax.f32 %v1807, 1e-24
    %v1847 = vmax.f32 %v1809, 1e-24
    %v1848 = vmax.f32 %v1811, 1e-24
    %v1849 = vmax.f32 %v1813, 1e-24
    %v1850 = vmax.f32 %v1815, 1e-24
    %v1851 = vmax.f32 %v1817, 1e-24
    %v1852 = vmax.f32 %v1819, 1e-24
    %v1853 = vmax.f32 %v1821, 1e-24
    %v1854 = vrsqrt.pop %v1822
    %v1855 = vrsqrt.pop %v1823
    %v1856 = vrsqrt.pop %v1824
    %v1857 = vrsqrt.pop %v1825
    %v1858 = vrsqrt.pop %v1826
    %v1859 = vrsqrt.pop %v1827
    %v1860 = vrsqrt.pop %v1828
    %v1861 = vrsqrt.pop %v1829
    %v1862 = vrsqrt.pop %v1830
    %v1863 = vrsqrt.pop %v1831
    %v1864 = vrsqrt.pop %v1832
    %v1865 = vrsqrt.pop %v1833
    %v1866 = vrsqrt.pop %v1834
    %v1867 = vrsqrt.pop %v1835
    %v1868 = vrsqrt.pop %v1836
    %v1869 = vrsqrt.pop %v1837
    %v1870 = vrsqrt.pop %v1838
    %v1871 = vrsqrt.pop %v1839
    %v1872 = vrsqrt.pop %v1840
    %v1873 = vrsqrt.pop %v1841
    %v1874 = vrsqrt.pop %v1842
    %v1875 = vrsqrt.pop %v1843
    %v1876 = vrsqrt.pop %v1844
    %v1877 = vrsqrt.pop %v1845
    %v1878 = vrsqrt.pop %v1846
    %v1879 = vrsqrt.pop %v1847
    %v1880 = vrsqrt.pop %v1848
    %v1881 = vrsqrt.pop %v1849
    %v1882 = vrsqrt.pop %v1850
    %v1883 = vrsqrt.pop %v1851
    %v1884 = vrsqrt.pop %v1852
    %v1885 = vrsqrt.pop %v1853
    %v1886 = vmul.f32 %v1694, %v1854
    %v1887 = vmul.f32 %v1695, %v1855
    %v1888 = vmul.f32 %v1696, %v1856
    %v1889 = vmul.f32 %v1697, %v1857
    %v1890 = vmul.f32 %v1698, %v1858
    %v1891 = vmul.f32 %v1699, %v1859
    %v1892 = vmul.f32 %v1700, %v1860
    %v1893 = vmul.f32 %v1701, %v1861
    %v1894 = vmul.f32 %v1702, %v1862
    %v1895 = vmul.f32 %v1703, %v1863
    %v1896 = vmul.f32 %v1704, %v1864
    %v1897 = vmul.f32 %v1705, %v1865
    %v1898 = vmul.f32 %v1706, %v1866
    %v1899 = vmul.f32 %v1707, %v1867
    %v1900 = vmul.f32 %v1708, %v1868
    %v1901 = vmul.f32 %v1709, %v1869
    %v1902 = vmul.f32 %v1710, %v1870
    %v1903 = vmul.f32 %v1711, %v1871
    %v1904 = vmul.f32 %v1712, %v1872
    %v1905 = vmul.f32 %v1713, %v1873
    %v1906 = vmul.f32 %v1714, %v1874
    %v1907 = vmul.f32 %v1715, %v1875
    %v1908 = vmul.f32 %v1716, %v1876
    %v1909 = vmul.f32 %v1717, %v1877
    %v1910 = vmul.f32 %v1718, %v1878
    %v1911 = vmul.f32 %v1719, %v1879
    %v1912 = vmul.f32 %v1720, %v1880
    %v1913 = vmul.f32 %v1721, %v1881
    %v1914 = vmul.f32 %v1722, %v1882
    %v1915 = vmul.f32 %v1723, %v1883
    %v1916 = vmul.f32 %v1724, %v1884
    %v1917 = vmul.f32 %v1725, %v1885
    %1918 = vst [vmem:[#allocation10] sm:$0xff] %v1886
    %1919 = vst [vmem:[#allocation10 + $0x8] sm:$0xff] %v1887
    %1920 = vst [vmem:[#allocation10 + $0x10] sm:$0xff] %v1888
    %1921 = vst [vmem:[#allocation10 + $0x18] sm:$0xff] %v1889
    %1922 = vst [vmem:[#allocation10 + $0x20] sm:$0xff] %v1890
    %1923 = vst [vmem:[#allocation10 + $0x28] sm:$0xff] %v1891
    %1924 = vst [vmem:[#allocation10 + $0x30] sm:$0xff] %v1892
    %1925 = vst [vmem:[#allocation10 + $0x38] sm:$0xff] %v1893
    %1926 = vst [vmem:[#allocation10 + $0x40] sm:$0xff] %v1894
    %1927 = vst [vmem:[#allocation10 + $0x48] sm:$0xff] %v1895
    %1928 = vst [vmem:[#allocation10 + $0x50] sm:$0xff] %v1896
    %1929 = vst [vmem:[#allocation10 + $0x58] sm:$0xff] %v1897
    %1930 = vst [vmem:[#allocation10 + $0x60] sm:$0xff] %v1898
    %1931 = vst [vmem:[#allocation10 + $0x68] sm:$0xff] %v1899
    %1932 = vst [vmem:[#allocation10 + $0x70] sm:$0xff] %v1900
    %1933 = vst [vmem:[#allocation10 + $0x78] sm:$0xff] %v1901
    %1934 = vst [vmem:[#allocation10 + $0x80] sm:$0xff] %v1902
    %1935 = vst [vmem:[#allocation10 + $0x88] sm:$0xff] %v1903
    %1936 = vst [vmem:[#allocation10 + $0x90] sm:$0xff] %v1904
    %1937 = vst [vmem:[#allocation10 + $0x98] sm:$0xff] %v1905
    %1938 = vst [vmem:[#allocation10 + $0xa0] sm:$0xff] %v1906
    %1939 = vst [vmem:[#allocation10 + $0xa8] sm:$0xff] %v1907
    %1940 = vst [vmem:[#allocation10 + $0xb0] sm:$0xff] %v1908
    %1941 = vst [vmem:[#allocation10 + $0xb8] sm:$0xff] %v1909
    %1942 = vst [vmem:[#allocation10 + $0xc0] sm:$0xff] %v1910
    %1943 = vst [vmem:[#allocation10 + $0xc8] sm:$0xff] %v1911
    %1944 = vst [vmem:[#allocation10 + $0xd0] sm:$0xff] %v1912
    %1945 = vst [vmem:[#allocation10 + $0xd8] sm:$0xff] %v1913
    %1946 = vst [vmem:[#allocation10 + $0xe0] sm:$0xff] %v1914
    %1947 = vst [vmem:[#allocation10 + $0xe8] sm:$0xff] %v1915
    %1948 = vst [vmem:[#allocation10 + $0xf0] sm:$0xff] %v1916
    %1949 = vst [vmem:[#allocation10 + $0xf8] sm:$0xff] %v1917
    // Predicated region
    $region38: #{tpu_custom_call.1} parent=1 // pred_check
      _
    $region39: #{tpu_custom_call.1} parent=1 // pred_check_branch
      %1951 = sbr.rel (0) target = $region41
    $region40: #{tpu_custom_call.1} parent=1 // pred_region
      %s1953 = ssub.s32 4096, 4096
      %1954 = vsyncadd [#allocation4], %s1953
      %s1955 = sshll.u32 [#allocation10], 4
      %s1956 = int_to_ptr.vmem [resolvable:$true] %s1955
      %1961 = dma.vmem_to_hbm [thread:$0]  %s1956, 4096, %s5, [#allocation4], 128, 128, 8
    $region41: #{tpu_custom_call.1} parent=1 // pred_fallthru
      _
    // Predicated region
    $region42: #{tpu_custom_call.1} parent=1 // pred_check
      _
    $region43: #{tpu_custom_call.1} parent=1 // pred_check_branch
      %1963 = sbr.rel (0) target = $region45
    $region44: #{tpu_custom_call.1} parent=1 // pred_region
      %1964 = dma.done [#allocation4], 4096
    $region45: #{tpu_custom_call.1} parent=1 // pred_fallthru
      _
    %1965 = vsyncpa [#allocation3], 1
    %1966 = vsyncpa [#allocation6], 1
    %1967 = vsyncpa [#allocation9], 1
    %1968 = vsyncpa [#allocation4], 1

// kernel: tpu_custom_call.1
$region0: #{tpu_custom_call.1}
  #allocation0 [shape = 'u32[]', space=smem, size = 0x4, offset = 0x4, fixed_abs, tag = 'smem constant byte address 0x4 - core index']
  #allocation1 [shape = 'u32[144,128]{1,0:T(1,128)}', space=vmem, size = 0x12000, scoped, tag = 'internal scratch']
  %s0 = inlined_call_operand.hbm [shape: bf16[256,128], index: 0, kind: input, shape index: {}]
  %s1 = inlined_call_operand.hbm [shape: bf16[128,128], index: 1, kind: input, shape index: {}]
  %s2 = inlined_call_operand.hbm [shape: f32[8,128], index: 2, kind: input, shape index: {}]
  %s3 = inlined_call_operand.hbm [shape: bf16[128,128], index: 3, kind: input, shape index: {}]
  %s4 = inlined_call_operand.vmem [shape: f32[8,128], index: 4, kind: input, shape index: {}]
  %s5 = inlined_call_operand.hbm [shape: f32[256,128], index: 5, kind: output, shape index: {}]
  %s6 = sld [smem:[#allocation0]]
  $region46: #{tpu_custom_call.1} parent=0
    _
  %s8 = ssub.s32 1, %s6
  %s9 = scalar_select 0, %s8, %s6
  $region1: #{tpu_custom_call.1} parent=0
    #allocation2 [shape = 'u8[65536]{0}', space=vmem, size = 0x10000, scoped, tag = 'input window, operand 0, single buffered']
    #allocation3 [shape = 's32[1]{0}', space=sflag, size = 0x4, scoped, tag = 'scoped memory for tpu_custom_call.1']
    #allocation4 [shape = 's32[1]{0}', space=sflag, size = 0x4, scoped, tag = 'scoped memory for tpu_custom_call.1']
    #allocation5 [shape = 'u8[32768]{0}', space=vmem, size = 0x8000, scoped, tag = 'input window, operand 1, single buffered']
    #allocation6 [shape = 's32[1]{0}', space=sflag, size = 0x4, scoped, tag = 'scoped memory for tpu_custom_call.1']
    #allocation7 [shape = 'u8[4096]{0}', space=vmem, size = 0x1000, scoped, tag = 'input window, operand 2, single buffered']
    #allocation8 [shape = 'u8[32768]{0}', space=vmem, size = 0x8000, scoped, tag = 'input window, operand 3, single buffered']
    #allocation9 [shape = 's32[1]{0}', space=sflag, size = 0x4, scoped, tag = 'scoped memory for tpu_custom_call.1']
    #allocation10 [shape = 'u8[131072]{0}', space=vmem, size = 0x20000, scoped, tag = 'output window, operand 0, single buffered']
    %10 = vsyncpa [#allocation3], 0
    %11 = vsyncpa [#allocation6], 0
    %12 = vsyncpa [#allocation9], 0
    %13 = vsyncpa [#allocation4], 0
    // Predicated region
    $region2: #{tpu_custom_call.1} parent=1 // pred_check
      _
    $region3: #{tpu_custom_call.1} parent=1 // pred_check_branch
      %15 = sbr.rel (0) target = $region5
    $region4: #{tpu_custom_call.1} parent=1 // pred_region
      %s17 = ssub.s32 2048, 2048
      %18 = vsyncadd [#allocation3], %s17
      %s19 = sshll.u32 [#allocation2], 4
      %s20 = int_to_ptr.vmem [resolvable:$true] %s19
      %25 = dma.hbm_to_vmem [thread:$0]  %s0, 2048, %s20, [#allocation3], 64, 64, 4
    $region5: #{tpu_custom_call.1} parent=1 // pred_fallthru
      _
    // Predicated region
    $region6: #{tpu_custom_call.1} parent=1 // pred_check
      _
    $region7: #{tpu_custom_call.1} parent=1 // pred_check_branch
      %27 = sbr.rel (0) target = $region9
    $region8: #{tpu_custom_call.1} parent=1 // pred_region
      %s29 = ssub.s32 1024, 1024
      %30 = vsyncadd [#allocation6], %s29
      %s31 = sshll.u32 [#allocation5], 4
      %s32 = int_to_ptr.vmem [resolvable:$true] %s31
      %37 = dma.hbm_to_vmem [thread:$0]  %s1, 1024, %s32, [#allocation6], 64, 64, 4
    $region9: #{tpu_custom_call.1} parent=1 // pred_fallthru
      _
    // Predicated region
    $region10: #{tpu_custom_call.1} parent=1 // pred_check
      _
    $region11: #{tpu_custom_call.1} parent=1 // pred_check_branch
      %39 = sbr.rel (0) target = $region13
    $region12: #{tpu_custom_call.1} parent=1 // pred_region
      %s41 = ssub.s32 128, 128
      %42 = vsyncadd [#allocation6], %s41
      %s44 = sshll.u32 [#allocation7], 4
      %s45 = int_to_ptr.vmem [resolvable:$true] %s44
      %47 = dma.hbm_to_vmem [thread:$0]  %s2, 128, %s45, [#allocation6]
    $region13: #{tpu_custom_call.1} parent=1 // pred_fallthru
      _
    // Predicated region
    $region14: #{tpu_custom_call.1} parent=1 // pred_check
      _
    $region15: #{tpu_custom_call.1} parent=1 // pred_check_branch
      %49 = sbr.rel (0) target = $region17
    $region16: #{tpu_custom_call.1} parent=1 // pred_region
      %s51 = ssub.s32 1024, 1024
      %52 = vsyncadd [#allocation9], %s51
      %s53 = sshll.u32 [#allocation8], 4
      %s54 = int_to_ptr.vmem [resolvable:$true] %s53
      %59 = dma.hbm_to_vmem [thread:$0]  %s3, 1024, %s54, [#allocation9], 64, 64, 4
    $region17: #{tpu_custom_call.1} parent=1 // pred_fallthru
      _
    // Predicated region
    $region18: #{tpu_custom_call.1} parent=1 // pred_check
      _
    $region19: #{tpu_custom_call.1} parent=1 // pred_check_branch
      %61 = sbr.rel (0) target = $region21
    $region20: #{tpu_custom_call.1} parent=1 // pred_region
      _
    $region21: #{tpu_custom_call.1} parent=1 // pred_fallthru
      _
    // Predicated region
    $region22: #{tpu_custom_call.1} parent=1 // pred_check
      _
    $region23: #{tpu_custom_call.1} parent=1 // pred_check_branch
      %63 = sbr.rel (0) target = $region25
    $region24: #{tpu_custom_call.1} parent=1 // pred_region
      %64 = dma.done [#allocation3], 2048
    $region25: #{tpu_custom_call.1} parent=1 // pred_fallthru
      _
    // Predicated region
    $region26: #{tpu_custom_call.1} parent=1 // pred_check
      _
    $region27: #{tpu_custom_call.1} parent=1 // pred_check_branch
      %66 = sbr.rel (0) target = $region29
    $region28: #{tpu_custom_call.1} parent=1 // pred_region
      %67 = dma.done [#allocation6], 1024
    $region29: #{tpu_custom_call.1} parent=1 // pred_fallthru
      _
    // Predicated region
    $region30: #{tpu_custom_call.1} parent=1 // pred_check
      _
    $region31: #{tpu_custom_call.1} parent=1 // pred_check_branch
      %69 = sbr.rel (0) target = $region33
    $region32: #{tpu_custom_call.1} parent=1 // pred_region
      %70 = dma.done [#allocation6], 128
    $region33: #{tpu_custom_call.1} parent=1 // pred_fallthru
      _
    // Predicated region
    $region34: #{tpu_custom_call.1} parent=1 // pred_check
      _
    $region35: #{tpu_custom_call.1} parent=1 // pred_check_branch
      %72 = sbr.rel (0) target = $region37
    $region36: #{tpu_custom_call.1} parent=1 // pred_region
      %73 = dma.done [#allocation9], 1024
    $region37: #{tpu_custom_call.1} parent=1 // pred_fallthru
      _
    %v75 = vld [vmem:[#allocation7] sm:$0x1]
    %v76 = vld [vmem:[#allocation7 + $0x1] sm:$0x1]
    %v77 = vld [vmem:[#allocation7 + $0x2] sm:$0x1]
    %v78 = vld [vmem:[%s4] sm:$0x1]
    %v79 = vld [vmem:[%s4 + $0x1] sm:$0x1]
    %v80 = vld [vmem:[%s4 + $0x2] sm:$0x1]
    %v81 = vld [vmem:[#allocation2] sm:$0xf]
    %v82 = vld [vmem:[#allocation2 + $0x4] sm:$0xf]
    %v83 = vld [vmem:[#allocation2 + $0x8] sm:$0xf]
    %v84 = vld [vmem:[#allocation2 + $0xc] sm:$0xf]
    %v85 = vld [vmem:[#allocation2 + $0x10] sm:$0xf]
    %v86 = vld [vmem:[#allocation2 + $0x14] sm:$0xf]
    %v87 = vld [vmem:[#allocation2 + $0x18] sm:$0xf]
    %v88 = vld [vmem:[#allocation2 + $0x1c] sm:$0xf]
    %v89 = vld [vmem:[#allocation2 + $0x20] sm:$0xf]
    %v90 = vld [vmem:[#allocation2 + $0x24] sm:$0xf]
    %v91 = vld [vmem:[#allocation2 + $0x28] sm:$0xf]
    %v92 = vld [vmem:[#allocation2 + $0x2c] sm:$0xf]
    %v93 = vld [vmem:[#allocation2 + $0x30] sm:$0xf]
    %v94 = vld [vmem:[#allocation2 + $0x34] sm:$0xf]
    %v95 = vld [vmem:[#allocation2 + $0x38] sm:$0xf]
    %v96 = vld [vmem:[#allocation2 + $0x3c] sm:$0xf]
    %v97 = vld [vmem:[#allocation2 + $0x40] sm:$0xf]
    %v98 = vld [vmem:[#allocation2 + $0x44] sm:$0xf]
    %v99 = vld [vmem:[#allocation2 + $0x48] sm:$0xf]
    %v100 = vld [vmem:[#allocation2 + $0x4c] sm:$0xf]
    %v101 = vld [vmem:[#allocation2 + $0x50] sm:$0xf]
    %v102 = vld [vmem:[#allocation2 + $0x54] sm:$0xf]
    %v103 = vld [vmem:[#allocation2 + $0x58] sm:$0xf]
    %v104 = vld [vmem:[#allocation2 + $0x5c] sm:$0xf]
    %v105 = vld [vmem:[#allocation2 + $0x60] sm:$0xf]
    %v106 = vld [vmem:[#allocation2 + $0x64] sm:$0xf]
    %v107 = vld [vmem:[#allocation2 + $0x68] sm:$0xf]
    %v108 = vld [vmem:[#allocation2 + $0x6c] sm:$0xf]
    %v109 = vld [vmem:[#allocation2 + $0x70] sm:$0xf]
    %v110 = vld [vmem:[#allocation2 + $0x74] sm:$0xf]
    %v111 = vld [vmem:[#allocation2 + $0x78] sm:$0xf]
    %v112 = vld [vmem:[#allocation2 + $0x7c] sm:$0xf]
    %v113 = vld [vmem:[#allocation5] sm:$0xf]
    %v114 = vld [vmem:[#allocation5 + $0x4] sm:$0xf]
    %v115 = vld [vmem:[#allocation5 + $0x8] sm:$0xf]
    %v116 = vld [vmem:[#allocation5 + $0xc] sm:$0xf]
    %v117 = vld [vmem:[#allocation5 + $0x10] sm:$0xf]
    %v118 = vld [vmem:[#allocation5 + $0x14] sm:$0xf]
    %v119 = vld [vmem:[#allocation5 + $0x18] sm:$0xf]
    %v120 = vld [vmem:[#allocation5 + $0x1c] sm:$0xf]
    %v121 = vld [vmem:[#allocation5 + $0x20] sm:$0xf]
    %v122 = vld [vmem:[#allocation5 + $0x24] sm:$0xf]
    %v123 = vld [vmem:[#allocation5 + $0x28] sm:$0xf]
    %v124 = vld [vmem:[#allocation5 + $0x2c] sm:$0xf]
    %v125 = vld [vmem:[#allocation5 + $0x30] sm:$0xf]
    %v126 = vld [vmem:[#allocation5 + $0x34] sm:$0xf]
    %v127 = vld [vmem:[#allocation5 + $0x38] sm:$0xf]
    %v128 = vld [vmem:[#allocation5 + $0x3c] sm:$0xf]
    %v129 = vlaneseq
    %v130 = vshrl.u32 %v129, 7
    %v131 = vsub.s32 0, %v130
    %v132 = vrot.slane %v75, %v131
    %v165 = vunpack.c.l.b16 %v81
    %v166 = vunpack.c.l.b16 %v82
    %v167 = vunpack.c.l.b16 %v83
    %v168 = vunpack.c.l.b16 %v84
    %v169 = vunpack.c.l.b16 %v85
    %v170 = vunpack.c.l.b16 %v86
    %v171 = vunpack.c.l.b16 %v87
    %v172 = vunpack.c.l.b16 %v88
    %v173 = vunpack.c.l.b16 %v89
    %v174 = vunpack.c.l.b16 %v90
    %v175 = vunpack.c.l.b16 %v91
    %v176 = vunpack.c.l.b16 %v92
    %v177 = vunpack.c.l.b16 %v93
    %v178 = vunpack.c.l.b16 %v94
    %v179 = vunpack.c.l.b16 %v95
    %v180 = vunpack.c.l.b16 %v96
    %v181 = vunpack.c.l.b16 %v97
    %v182 = vunpack.c.l.b16 %v98
    %v183 = vunpack.c.l.b16 %v99
    %v184 = vunpack.c.l.b16 %v100
    %v185 = vunpack.c.l.b16 %v101
    %v186 = vunpack.c.l.b16 %v102
    %v187 = vunpack.c.l.b16 %v103
    %v188 = vunpack.c.l.b16 %v104
    %v189 = vunpack.c.l.b16 %v105
    %v190 = vunpack.c.l.b16 %v106
    %v191 = vunpack.c.l.b16 %v107
    %v192 = vunpack.c.l.b16 %v108
    %v193 = vunpack.c.l.b16 %v109
    %v194 = vunpack.c.l.b16 %v110
    %v195 = vunpack.c.l.b16 %v111
    %v196 = vunpack.c.l.b16 %v112
    %v197 = vpack.c.b16 %v166, %v165
    %v198 = vpack.c.b16 %v168, %v167
    %v199 = vpack.c.b16 %v170, %v169
    %v200 = vpack.c.b16 %v172, %v171
    %v201 = vpack.c.b16 %v174, %v173
    %v202 = vpack.c.b16 %v176, %v175
    %v203 = vpack.c.b16 %v178, %v177
    %v204 = vpack.c.b16 %v180, %v179
    %v205 = vpack.c.b16 %v182, %v181
    %v206 = vpack.c.b16 %v184, %v183
    %v207 = vpack.c.b16 %v186, %v185
    %v208 = vpack.c.b16 %v188, %v187
    %v209 = vpack.c.b16 %v190, %v189
    %v210 = vpack.c.b16 %v192, %v191
    %v211 = vpack.c.b16 %v194, %v193
    %v212 = vpack.c.b16 %v196, %v195
    %v245 = vunpack.c.l.b16 %v113
    %v246 = vunpack.c.l.b16 %v114
    %v247 = vunpack.c.l.b16 %v115
    %v248 = vunpack.c.l.b16 %v116
    %v249 = vunpack.c.l.b16 %v117
    %v250 = vunpack.c.l.b16 %v118
    %v251 = vunpack.c.l.b16 %v119
    %v252 = vunpack.c.l.b16 %v120
    %v253 = vunpack.c.l.b16 %v121
    %v254 = vunpack.c.l.b16 %v122
    %v255 = vunpack.c.l.b16 %v123
    %v256 = vunpack.c.l.b16 %v124
    %v257 = vunpack.c.l.b16 %v125
    %v258 = vunpack.c.l.b16 %v126
    %v259 = vunpack.c.l.b16 %v127
    %v260 = vunpack.c.l.b16 %v128
    %v261 = vpack.c.b16 %v246, %v245
    %v262 = vpack.c.b16 %v248, %v247
    %v263 = vpack.c.b16 %v250, %v249
    %v264 = vpack.c.b16 %v252, %v251
    %v265 = vpack.c.b16 %v254, %v253
    %v266 = vpack.c.b16 %v256, %v255
    %v267 = vpack.c.b16 %v258, %v257
    %v268 = vpack.c.b16 %v260, %v259
    %277 = vmatprep.subr.bf16.mxu0 0
    %278 = vmatpush1.bf16.msra.mxu0 %v261
    %279 = vmatprep.subr.bf16.mxu0 0
    %280 = vmatpush1.bf16.msra.mxu0 %v262
    %281 = vmatprep.subr.bf16.mxu0 0
    %282 = vmatpush1.bf16.msra.mxu0 %v263
    %283 = vmatprep.subr.bf16.mxu0 0
    %284 = vmatpush1.bf16.msra.mxu0 %v264
    %285 = vmatprep.subr.bf16.mxu0 0
    %286 = vmatpush1.bf16.msra.mxu0 %v265
    %287 = vmatprep.subr.bf16.mxu0 0
    %288 = vmatpush1.bf16.msra.mxu0 %v266
    %289 = vmatprep.subr.bf16.mxu0 0
    %290 = vmatpush1.bf16.msra.mxu0 %v267
    %291 = vmatprep.subr.bf16.mxu0 0
    %292 = vmatpush1.bf16.msra.mxu0 %v268
    %293 = vmatprep.subr.bf16.mxu0 0
    %294 = vmatpush1.bf16.msra.mxu0 0
    %295 = vmatprep.subr.bf16.mxu0 0
    %296 = vmatpush1.bf16.msra.mxu0 0
    %297 = vmatprep.subr.bf16.mxu0 0
    %298 = vmatpush1.bf16.msra.mxu0 0
    %299 = vmatprep.subr.bf16.mxu0 0
    %300 = vmatpush1.bf16.msra.mxu0 0
    %301 = vmatprep.subr.bf16.mxu0 0
    %302 = vmatpush1.bf16.msra.mxu0 0
    %303 = vmatprep.subr.bf16.mxu0 0
    %304 = vmatpush1.bf16.msra.mxu0 0
    %305 = vmatprep.subr.bf16.mxu0 0
    %306 = vmatpush1.bf16.msra.mxu0 0
    %307 = vmatprep.subr.bf16.mxu0 0
    %308 = vmatpush1.bf16.msra.mxu0 0
    %309 = vmatprep.mubr.bf16.mxu0 0
    %310 = vmatmul.mubr.bf16.gmra.mrb[0].mxu0 %v197
    %v311 = vpop.f32.mrb[0].mxu0
    %v312 = vadd.f32 %v132, %v311
    %v313 = vpop.f32.mrb[0].mxu0
    %v314 = vpop.f32.mrb[0].mxu0
    %v315 = vadd.f32 %v132, %v314
    %v316 = vpop.f32.mrb[0].mxu0
    %317 = vmatprep.mubr.bf16.mxu0 0
    %318 = vmatmul.mubr.bf16.gmra.mrb[0].mxu0 %v198
    %v319 = vpop.f32.mrb[0].mxu0
    %v320 = vadd.f32 %v132, %v319
    %v321 = vpop.f32.mrb[0].mxu0
    %v322 = vpop.f32.mrb[0].mxu0
    %v323 = vadd.f32 %v132, %v322
    %v324 = vpop.f32.mrb[0].mxu0
    %325 = vmatprep.mubr.bf16.mxu0 0
    %326 = vmatmul.mubr.bf16.gmra.mrb[0].mxu0 %v199
    %v327 = vpop.f32.mrb[0].mxu0
    %v328 = vadd.f32 %v132, %v327
    %v329 = vpop.f32.mrb[0].mxu0
    %v330 = vpop.f32.mrb[0].mxu0
    %v331 = vadd.f32 %v132, %v330
    %v332 = vpop.f32.mrb[0].mxu0
    %333 = vmatprep.mubr.bf16.mxu0 0
    %334 = vmatmul.mubr.bf16.gmra.mrb[0].mxu0 %v200
    %v335 = vpop.f32.mrb[0].mxu0
    %v336 = vadd.f32 %v132, %v335
    %v337 = vpop.f32.mrb[0].mxu0
    %v338 = vpop.f32.mrb[0].mxu0
    %v339 = vadd.f32 %v132, %v338
    %v340 = vpop.f32.mrb[0].mxu0
    %341 = vmatprep.mubr.bf16.mxu0 0
    %342 = vmatmul.mubr.bf16.gmra.mrb[0].mxu0 %v201
    %v343 = vpop.f32.mrb[0].mxu0
    %v344 = vadd.f32 %v132, %v343
    %v345 = vpop.f32.mrb[0].mxu0
    %v346 = vpop.f32.mrb[0].mxu0
    %v347 = vadd.f32 %v132, %v346
    %v348 = vpop.f32.mrb[0].mxu0
    %349 = vmatprep.mubr.bf16.mxu0 0
    %350 = vmatmul.mubr.bf16.gmra.mrb[0].mxu0 %v202
    %v351 = vpop.f32.mrb[0].mxu0
    %v352 = vadd.f32 %v132, %v351
    %v353 = vpop.f32.mrb[0].mxu0
    %v354 = vpop.f32.mrb[0].mxu0
    %v355 = vadd.f32 %v132, %v354
    %v356 = vpop.f32.mrb[0].mxu0
    %357 = vmatprep.mubr.bf16.mxu0 0
    %358 = vmatmul.mubr.bf16.gmra.mrb[0].mxu0 %v203
    %v359 = vpop.f32.mrb[0].mxu0
    %v360 = vadd.f32 %v132, %v359
    %v361 = vpop.f32.mrb[0].mxu0
    %v362 = vpop.f32.mrb[0].mxu0
    %v363 = vadd.f32 %v132, %v362
    %v364 = vpop.f32.mrb[0].mxu0
    %365 = vmatprep.mubr.bf16.mxu0 0
    %366 = vmatmul.mubr.bf16.gmra.mrb[0].mxu0 %v204
    %v367 = vpop.f32.mrb[0].mxu0
    %v368 = vadd.f32 %v132, %v367
    %v369 = vpop.f32.mrb[0].mxu0
    %v370 = vpop.f32.mrb[0].mxu0
    %v371 = vadd.f32 %v132, %v370
    %v372 = vpop.f32.mrb[0].mxu0
    %373 = vmatprep.mubr.bf16.mxu0 0
    %374 = vmatmul.mubr.bf16.gmra.mrb[0].mxu0 %v205
    %v375 = vpop.f32.mrb[0].mxu0
    %v376 = vadd.f32 %v132, %v375
    %v377 = vpop.f32.mrb[0].mxu0
    %v378 = vpop.f32.mrb[0].mxu0
    %v379 = vadd.f32 %v132, %v378
    %v380 = vpop.f32.mrb[0].mxu0
    %381 = vmatprep.mubr.bf16.mxu0 0
    %382 = vmatmul.mubr.bf16.gmra.mrb[0].mxu0 %v206
    %v383 = vpop.f32.mrb[0].mxu0
    %v384 = vadd.f32 %v132, %v383
    %v385 = vpop.f32.mrb[0].mxu0
    %v386 = vpop.f32.mrb[0].mxu0
    %v387 = vadd.f32 %v132, %v386
    %v388 = vpop.f32.mrb[0].mxu0
    %389 = vmatprep.mubr.bf16.mxu0 0
    %390 = vmatmul.mubr.bf16.gmra.mrb[0].mxu0 %v207
    %v391 = vpop.f32.mrb[0].mxu0
    %v392 = vadd.f32 %v132, %v391
    %v393 = vpop.f32.mrb[0].mxu0
    %v394 = vpop.f32.mrb[0].mxu0
    %v395 = vadd.f32 %v132, %v394
    %v396 = vpop.f32.mrb[0].mxu0
    %397 = vmatprep.mubr.bf16.mxu0 0
    %398 = vmatmul.mubr.bf16.gmra.mrb[0].mxu0 %v208
    %v399 = vpop.f32.mrb[0].mxu0
    %v400 = vadd.f32 %v132, %v399
    %v401 = vpop.f32.mrb[0].mxu0
    %v402 = vpop.f32.mrb[0].mxu0
    %v403 = vadd.f32 %v132, %v402
    %v404 = vpop.f32.mrb[0].mxu0
    %405 = vmatprep.mubr.bf16.mxu0 0
    %406 = vmatmul.mubr.bf16.gmra.mrb[0].mxu0 %v209
    %v407 = vpop.f32.mrb[0].mxu0
    %v408 = vadd.f32 %v132, %v407
    %v409 = vpop.f32.mrb[0].mxu0
    %v410 = vpop.f32.mrb[0].mxu0
    %v411 = vadd.f32 %v132, %v410
    %v412 = vpop.f32.mrb[0].mxu0
    %413 = vmatprep.mubr.bf16.mxu0 0
    %414 = vmatmul.mubr.bf16.gmra.mrb[0].mxu0 %v210
    %v415 = vpop.f32.mrb[0].mxu0
    %v416 = vadd.f32 %v132, %v415
    %v417 = vpop.f32.mrb[0].mxu0
    %v418 = vpop.f32.mrb[0].mxu0
    %v419 = vadd.f32 %v132, %v418
    %v420 = vpop.f32.mrb[0].mxu0
    %421 = vmatprep.mubr.bf16.mxu0 0
    %422 = vmatmul.mubr.bf16.gmra.mrb[0].mxu0 %v211
    %v423 = vpop.f32.mrb[0].mxu0
    %v424 = vadd.f32 %v132, %v423
    %v425 = vpop.f32.mrb[0].mxu0
    %v426 = vpop.f32.mrb[0].mxu0
    %v427 = vadd.f32 %v132, %v426
    %v428 = vpop.f32.mrb[0].mxu0
    %429 = vmatprep.mubr.bf16.mxu0 0
    %430 = vmatmul.mubr.bf16.gmra.mrb[0].mxu0 %v212
    %v431 = vpop.f32.mrb[0].mxu0
    %v432 = vadd.f32 %v132, %v431
    %v433 = vpop.f32.mrb[0].mxu0
    %v434 = vpop.f32.mrb[0].mxu0
    %v435 = vadd.f32 %v132, %v434
    %v436 = vpop.f32.mrb[0].mxu0
    %437 = vdwg.mxu0
    %438 = vadd.xlane.f32.xlu0 %v312
    %v439 = vpop.xlane.xlu0 %438
    %440 = vadd.xlane.f32.xlu0 %v315
    %v441 = vpop.xlane.xlu0 %440
    %442 = vadd.xlane.f32.xlu0 %v320
    %v443 = vpop.xlane.xlu0 %442
    %444 = vadd.xlane.f32.xlu0 %v323
    %v445 = vpop.xlane.xlu0 %444
    %446 = vadd.xlane.f32.xlu0 %v328
    %v447 = vpop.xlane.xlu0 %446
    %448 = vadd.xlane.f32.xlu0 %v331
    %v449 = vpop.xlane.xlu0 %448
    %450 = vadd.xlane.f32.xlu0 %v336
    %v451 = vpop.xlane.xlu0 %450
    %452 = vadd.xlane.f32.xlu0 %v339
    %v453 = vpop.xlane.xlu0 %452
    %454 = vadd.xlane.f32.xlu0 %v344
    %v455 = vpop.xlane.xlu0 %454
    %456 = vadd.xlane.f32.xlu0 %v347
    %v457 = vpop.xlane.xlu0 %456
    %458 = vadd.xlane.f32.xlu0 %v352
    %v459 = vpop.xlane.xlu0 %458
    %460 = vadd.xlane.f32.xlu0 %v355
    %v461 = vpop.xlane.xlu0 %460
    %462 = vadd.xlane.f32.xlu0 %v360
    %v463 = vpop.xlane.xlu0 %462
    %464 = vadd.xlane.f32.xlu0 %v363
    %v465 = vpop.xlane.xlu0 %464
    %466 = vadd.xlane.f32.xlu0 %v368
    %v467 = vpop.xlane.xlu0 %466
    %468 = vadd.xlane.f32.xlu0 %v371
    %v469 = vpop.xlane.xlu0 %468
    %470 = vadd.xlane.f32.xlu0 %v376
    %v471 = vpop.xlane.xlu0 %470
    %472 = vadd.xlane.f32.xlu0 %v379
    %v473 = vpop.xlane.xlu0 %472
    %474 = vadd.xlane.f32.xlu0 %v384
    %v475 = vpop.xlane.xlu0 %474
    %476 = vadd.xlane.f32.xlu0 %v387
    %v477 = vpop.xlane.xlu0 %476
    %478 = vadd.xlane.f32.xlu0 %v392
    %v479 = vpop.xlane.xlu0 %478
    %480 = vadd.xlane.f32.xlu0 %v395
    %v481 = vpop.xlane.xlu0 %480
    %482 = vadd.xlane.f32.xlu0 %v400
    %v483 = vpop.xlane.xlu0 %482
    %484 = vadd.xlane.f32.xlu0 %v403
    %v485 = vpop.xlane.xlu0 %484
    %486 = vadd.xlane.f32.xlu0 %v408
    %v487 = vpop.xlane.xlu0 %486
    %488 = vadd.xlane.f32.xlu0 %v411
    %v489 = vpop.xlane.xlu0 %488
    %490 = vadd.xlane.f32.xlu0 %v416
    %v491 = vpop.xlane.xlu0 %490
    %492 = vadd.xlane.f32.xlu0 %v419
    %v493 = vpop.xlane.xlu0 %492
    %494 = vadd.xlane.f32.xlu0 %v424
    %v495 = vpop.xlane.xlu0 %494
    %496 = vadd.xlane.f32.xlu0 %v427
    %v497 = vpop.xlane.xlu0 %496
    %498 = vadd.xlane.f32.xlu0 %v432
    %v499 = vpop.xlane.xlu0 %498
    %500 = vadd.xlane.f32.xlu0 %v435
    %v501 = vpop.xlane.xlu0 %500
    %v502 = vmul.f32 %v439, 0.0078125
    %v503 = vmul.f32 %v441, 0.0078125
    %v504 = vmul.f32 %v443, 0.0078125
    %v505 = vmul.f32 %v445, 0.0078125
    %v506 = vmul.f32 %v447, 0.0078125
    %v507 = vmul.f32 %v449, 0.0078125
    %v508 = vmul.f32 %v451, 0.0078125
    %v509 = vmul.f32 %v453, 0.0078125
    %v510 = vmul.f32 %v455, 0.0078125
    %v511 = vmul.f32 %v457, 0.0078125
    %v512 = vmul.f32 %v459, 0.0078125
    %v513 = vmul.f32 %v461, 0.0078125
    %v514 = vmul.f32 %v463, 0.0078125
    %v515 = vmul.f32 %v465, 0.0078125
    %v516 = vmul.f32 %v467, 0.0078125
    %v517 = vmul.f32 %v469, 0.0078125
    %v518 = vmul.f32 %v471, 0.0078125
    %v519 = vmul.f32 %v473, 0.0078125
    %v520 = vmul.f32 %v475, 0.0078125
    %v521 = vmul.f32 %v477, 0.0078125
    %v522 = vmul.f32 %v479, 0.0078125
    %v523 = vmul.f32 %v481, 0.0078125
    %v524 = vmul.f32 %v483, 0.0078125
    %v525 = vmul.f32 %v485, 0.0078125
    %v526 = vmul.f32 %v487, 0.0078125
    %v527 = vmul.f32 %v489, 0.0078125
    %v528 = vmul.f32 %v491, 0.0078125
    %v529 = vmul.f32 %v493, 0.0078125
    %v530 = vmul.f32 %v495, 0.0078125
    %v531 = vmul.f32 %v497, 0.0078125
    %v532 = vmul.f32 %v499, 0.0078125
    %v533 = vmul.f32 %v501, 0.0078125
    %v534 = vsub.f32 %v312, %v502
    %v535 = vsub.f32 %v315, %v503
    %v536 = vsub.f32 %v320, %v504
    %v537 = vsub.f32 %v323, %v505
    %v538 = vsub.f32 %v328, %v506
    %v539 = vsub.f32 %v331, %v507
    %v540 = vsub.f32 %v336, %v508
    %v541 = vsub.f32 %v339, %v509
    %v542 = vsub.f32 %v344, %v510
    %v543 = vsub.f32 %v347, %v511
    %v544 = vsub.f32 %v352, %v512
    %v545 = vsub.f32 %v355, %v513
    %v546 = vsub.f32 %v360, %v514
    %v547 = vsub.f32 %v363, %v515
    %v548 = vsub.f32 %v368, %v516
    %v549 = vsub.f32 %v371, %v517
    %v550 = vsub.f32 %v376, %v518
    %v551 = vsub.f32 %v379, %v519
    %v552 = vsub.f32 %v384, %v520
    %v553 = vsub.f32 %v387, %v521
    %v554 = vsub.f32 %v392, %v522
    %v555 = vsub.f32 %v395, %v523
    %v556 = vsub.f32 %v400, %v524
    %v557 = vsub.f32 %v403, %v525
    %v558 = vsub.f32 %v408, %v526
    %v559 = vsub.f32 %v411, %v527
    %v560 = vsub.f32 %v416, %v528
    %v561 = vsub.f32 %v419, %v529
    %v562 = vsub.f32 %v424, %v530
    %v563 = vsub.f32 %v427, %v531
    %v564 = vsub.f32 %v432, %v532
    %v565 = vsub.f32 %v435, %v533
    %v566 = vmul.f32 %v534, %v534
    %v567 = vmul.f32 %v535, %v535
    %v568 = vmul.f32 %v536, %v536
    %v569 = vmul.f32 %v537, %v537
    %v570 = vmul.f32 %v538, %v538
    %v571 = vmul.f32 %v539, %v539
    %v572 = vmul.f32 %v540, %v540
    %v573 = vmul.f32 %v541, %v541
    %v574 = vmul.f32 %v542, %v542
    %v575 = vmul.f32 %v543, %v543
    %v576 = vmul.f32 %v544, %v544
    %v577 = vmul.f32 %v545, %v545
    %v578 = vmul.f32 %v546, %v546
    %v579 = vmul.f32 %v547, %v547
    %v580 = vmul.f32 %v548, %v548
    %v581 = vmul.f32 %v549, %v549
    %v582 = vmul.f32 %v550, %v550
    %v583 = vmul.f32 %v551, %v551
    %v584 = vmul.f32 %v552, %v552
    %v585 = vmul.f32 %v553, %v553
    %v586 = vmul.f32 %v554, %v554
    %v587 = vmul.f32 %v555, %v555
    %v588 = vmul.f32 %v556, %v556
    %v589 = vmul.f32 %v557, %v557
    %v590 = vmul.f32 %v558, %v558
    %v591 = vmul.f32 %v559, %v559
    %v592 = vmul.f32 %v560, %v560
    %v593 = vmul.f32 %v561, %v561
    %v594 = vmul.f32 %v562, %v562
    %v595 = vmul.f32 %v563, %v563
    %v596 = vmul.f32 %v564, %v564
    %v597 = vmul.f32 %v565, %v565
    %598 = vadd.xlane.f32.xlu0 %v566
    %v599 = vpop.xlane.xlu0 %598
    %600 = vadd.xlane.f32.xlu0 %v567
    %v601 = vpop.xlane.xlu0 %600
    %602 = vadd.xlane.f32.xlu0 %v568
    %v603 = vpop.xlane.xlu0 %602
    %604 = vadd.xlane.f32.xlu0 %v569
    %v605 = vpop.xlane.xlu0 %604
    %606 = vadd.xlane.f32.xlu0 %v570
    %v607 = vpop.xlane.xlu0 %606
    %608 = vadd.xlane.f32.xlu0 %v571
    %v609 = vpop.xlane.xlu0 %608
    %610 = vadd.xlane.f32.xlu0 %v572
    %v611 = vpop.xlane.xlu0 %610
    %612 = vadd.xlane.f32.xlu0 %v573
    %v613 = vpop.xlane.xlu0 %612
    %614 = vadd.xlane.f32.xlu0 %v574
    %v615 = vpop.xlane.xlu0 %614
    %616 = vadd.xlane.f32.xlu0 %v575
    %v617 = vpop.xlane.xlu0 %616
    %618 = vadd.xlane.f32.xlu0 %v576
    %v619 = vpop.xlane.xlu0 %618
    %620 = vadd.xlane.f32.xlu0 %v577
    %v621 = vpop.xlane.xlu0 %620
    %622 = vadd.xlane.f32.xlu0 %v578
    %v623 = vpop.xlane.xlu0 %622
    %624 = vadd.xlane.f32.xlu0 %v579
    %v625 = vpop.xlane.xlu0 %624
    %626 = vadd.xlane.f32.xlu0 %v580
    %v627 = vpop.xlane.xlu0 %626
    %628 = vadd.xlane.f32.xlu0 %v581
    %v629 = vpop.xlane.xlu0 %628
    %630 = vadd.xlane.f32.xlu0 %v582
    %v631 = vpop.xlane.xlu0 %630
    %632 = vadd.xlane.f32.xlu0 %v583
    %v633 = vpop.xlane.xlu0 %632
    %634 = vadd.xlane.f32.xlu0 %v584
    %v635 = vpop.xlane.xlu0 %634
    %636 = vadd.xlane.f32.xlu0 %v585
    %v637 = vpop.xlane.xlu0 %636
    %638 = vadd.xlane.f32.xlu0 %v586
    %v639 = vpop.xlane.xlu0 %638
    %640 = vadd.xlane.f32.xlu0 %v587
    %v641 = vpop.xlane.xlu0 %640
    %642 = vadd.xlane.f32.xlu0 %v588
    %v643 = vpop.xlane.xlu0 %642
    %644 = vadd.xlane.f32.xlu0 %v589
    %v645 = vpop.xlane.xlu0 %644
    %646 = vadd.xlane.f32.xlu0 %v590
    %v647 = vpop.xlane.xlu0 %646
    %648 = vadd.xlane.f32.xlu0 %v591
    %v649 = vpop.xlane.xlu0 %648
    %650 = vadd.xlane.f32.xlu0 %v592
    %v651 = vpop.xlane.xlu0 %650
    %652 = vadd.xlane.f32.xlu0 %v593
    %v653 = vpop.xlane.xlu0 %652
    %654 = vadd.xlane.f32.xlu0 %v594
    %v655 = vpop.xlane.xlu0 %654
    %656 = vadd.xlane.f32.xlu0 %v595
    %v657 = vpop.xlane.xlu0 %656
    %658 = vadd.xlane.f32.xlu0 %v596
    %v659 = vpop.xlane.xlu0 %658
    %660 = vadd.xlane.f32.xlu0 %v597
    %v661 = vpop.xlane.xlu0 %660
    %v662 = vmul.f32 %v599, 0.0078125
    %v663 = vmul.f32 %v601, 0.0078125
    %v664 = vmul.f32 %v603, 0.0078125
    %v665 = vmul.f32 %v605, 0.0078125
    %v666 = vmul.f32 %v607, 0.0078125
    %v667 = vmul.f32 %v609, 0.0078125
    %v668 = vmul.f32 %v611, 0.0078125
    %v669 = vmul.f32 %v613, 0.0078125
    %v670 = vmul.f32 %v615, 0.0078125
    %v671 = vmul.f32 %v617, 0.0078125
    %v672 = vmul.f32 %v619, 0.0078125
    %v673 = vmul.f32 %v621, 0.0078125
    %v674 = vmul.f32 %v623, 0.0078125
    %v675 = vmul.f32 %v625, 0.0078125
    %v676 = vmul.f32 %v627, 0.0078125
    %v677 = vmul.f32 %v629, 0.0078125
    %v678 = vmul.f32 %v631, 0.0078125
    %v679 = vmul.f32 %v633, 0.0078125
    %v680 = vmul.f32 %v635, 0.0078125
    %v681 = vmul.f32 %v637, 0.0078125
    %v682 = vmul.f32 %v639, 0.0078125
    %v683 = vmul.f32 %v641, 0.0078125
    %v684 = vmul.f32 %v643, 0.0078125
    %v685 = vmul.f32 %v645, 0.0078125
    %v686 = vmul.f32 %v647, 0.0078125
    %v687 = vmul.f32 %v649, 0.0078125
    %v688 = vmul.f32 %v651, 0.0078125
    %v689 = vmul.f32 %v653, 0.0078125
    %v690 = vmul.f32 %v655, 0.0078125
    %v691 = vmul.f32 %v657, 0.0078125
    %v692 = vmul.f32 %v659, 0.0078125
    %v693 = vmul.f32 %v661, 0.0078125
    %v694 = vadd.f32 %v662, 1e-05
    %v695 = vadd.f32 %v663, 1e-05
    %v696 = vadd.f32 %v664, 1e-05
    %v697 = vadd.f32 %v665, 1e-05
    %v698 = vadd.f32 %v666, 1e-05
    %v699 = vadd.f32 %v667, 1e-05
    %v700 = vadd.f32 %v668, 1e-05
    %v701 = vadd.f32 %v669, 1e-05
    %v702 = vadd.f32 %v670, 1e-05
    %v703 = vadd.f32 %v671, 1e-05
    %v704 = vadd.f32 %v672, 1e-05
    %v705 = vadd.f32 %v673, 1e-05
    %v706 = vadd.f32 %v674, 1e-05
    %v707 = vadd.f32 %v675, 1e-05
    %v708 = vadd.f32 %v676, 1e-05
    %v709 = vadd.f32 %v677, 1e-05
    %v710 = vadd.f32 %v678, 1e-05
    %v711 = vadd.f32 %v679, 1e-05
    %v712 = vadd.f32 %v680, 1e-05
    %v713 = vadd.f32 %v681, 1e-05
    %v714 = vadd.f32 %v682, 1e-05
    %v715 = vadd.f32 %v683, 1e-05
    %v716 = vadd.f32 %v684, 1e-05
    %v717 = vadd.f32 %v685, 1e-05
    %v718 = vadd.f32 %v686, 1e-05
    %v719 = vadd.f32 %v687, 1e-05
    %v720 = vadd.f32 %v688, 1e-05
    %v721 = vadd.f32 %v689, 1e-05
    %v722 = vadd.f32 %v690, 1e-05
    %v723 = vadd.f32 %v691, 1e-05
    %v724 = vadd.f32 %v692, 1e-05
    %v725 = vadd.f32 %v693, 1e-05
    %v726 = vrsqrt.pop %v694
    %v727 = vrsqrt.pop %v695
    %v728 = vrsqrt.pop %v696
    %v729 = vrsqrt.pop %v697
    %v730 = vrsqrt.pop %v698
    %v731 = vrsqrt.pop %v699
    %v732 = vrsqrt.pop %v700
    %v733 = vrsqrt.pop %v701
    %v734 = vrsqrt.pop %v702
    %v735 = vrsqrt.pop %v703
    %v736 = vrsqrt.pop %v704
    %v737 = vrsqrt.pop %v705
    %v738 = vrsqrt.pop %v706
    %v739 = vrsqrt.pop %v707
    %v740 = vrsqrt.pop %v708
    %v741 = vrsqrt.pop %v709
    %v742 = vrsqrt.pop %v710
    %v743 = vrsqrt.pop %v711
    %v744 = vrsqrt.pop %v712
    %v745 = vrsqrt.pop %v713
    %v746 = vrsqrt.pop %v714
    %v747 = vrsqrt.pop %v715
    %v748 = vrsqrt.pop %v716
    %v749 = vrsqrt.pop %v717
    %v750 = vrsqrt.pop %v718
    %v751 = vrsqrt.pop %v719
    %v752 = vrsqrt.pop %v720
    %v753 = vrsqrt.pop %v721
    %v754 = vrsqrt.pop %v722
    %v755 = vrsqrt.pop %v723
    %v756 = vrsqrt.pop %v724
    %v757 = vrsqrt.pop %v725
    %v758 = vlaneseq
    %v759 = vshrl.u32 %v758, 7
    %v760 = vsub.s32 0, %v759
    %v761 = vrot.slane %v76, %v760
    %v762 = vmul.f32 %v726, %v761
    %v763 = vmul.f32 %v727, %v761
    %v764 = vmul.f32 %v728, %v761
    %v765 = vmul.f32 %v729, %v761
    %v766 = vmul.f32 %v730, %v761
    %v767 = vmul.f32 %v731, %v761
    %v768 = vmul.f32 %v732, %v761
    %v769 = vmul.f32 %v733, %v761
    %v770 = vmul.f32 %v734, %v761
    %v771 = vmul.f32 %v735, %v761
    %v772 = vmul.f32 %v736, %v761
    %v773 = vmul.f32 %v737, %v761
    %v774 = vmul.f32 %v738, %v761
    %v775 = vmul.f32 %v739, %v761
    %v776 = vmul.f32 %v740, %v761
    %v777 = vmul.f32 %v741, %v761
    %v778 = vmul.f32 %v742, %v761
    %v779 = vmul.f32 %v743, %v761
    %v780 = vmul.f32 %v744, %v761
    %v781 = vmul.f32 %v745, %v761
    %v782 = vmul.f32 %v746, %v761
    %v783 = vmul.f32 %v747, %v761
    %v784 = vmul.f32 %v748, %v761
    %v785 = vmul.f32 %v749, %v761
    %v786 = vmul.f32 %v750, %v761
    %v787 = vmul.f32 %v751, %v761
    %v788 = vmul.f32 %v752, %v761
    %v789 = vmul.f32 %v753, %v761
    %v790 = vmul.f32 %v754, %v761
    %v791 = vmul.f32 %v755, %v761
    %v792 = vmul.f32 %v756, %v761
    %v793 = vmul.f32 %v757, %v761
    %v794 = vmul.f32 %v534, %v762
    %v795 = vmul.f32 %v535, %v763
    %v796 = vmul.f32 %v536, %v764
    %v797 = vmul.f32 %v537, %v765
    %v798 = vmul.f32 %v538, %v766
    %v799 = vmul.f32 %v539, %v767
    %v800 = vmul.f32 %v540, %v768
    %v801 = vmul.f32 %v541, %v769
    %v802 = vmul.f32 %v542, %v770
    %v803 = vmul.f32 %v543, %v771
    %v804 = vmul.f32 %v544, %v772
    %v805 = vmul.f32 %v545, %v773
    %v806 = vmul.f32 %v546, %v774
    %v807 = vmul.f32 %v547, %v775
    %v808 = vmul.f32 %v548, %v776
    %v809 = vmul.f32 %v549, %v777
    %v810 = vmul.f32 %v550, %v778
    %v811 = vmul.f32 %v551, %v779
    %v812 = vmul.f32 %v552, %v780
    %v813 = vmul.f32 %v553, %v781
    %v814 = vmul.f32 %v554, %v782
    %v815 = vmul.f32 %v555, %v783
    %v816 = vmul.f32 %v556, %v784
    %v817 = vmul.f32 %v557, %v785
    %v818 = vmul.f32 %v558, %v786
    %v819 = vmul.f32 %v559, %v787
    %v820 = vmul.f32 %v560, %v788
    %v821 = vmul.f32 %v561, %v789
    %v822 = vmul.f32 %v562, %v790
    %v823 = vmul.f32 %v563, %v791
    %v824 = vmul.f32 %v564, %v792
    %v825 = vmul.f32 %v565, %v793
    %v826 = vlaneseq
    %v827 = vshrl.u32 %v826, 7
    %v828 = vsub.s32 0, %v827
    %v829 = vrot.slane %v77, %v828
    %v830 = vadd.f32 %v794, %v829
    %v831 = vadd.f32 %v795, %v829
    %v832 = vadd.f32 %v796, %v829
    %v833 = vadd.f32 %v797, %v829
    %v834 = vadd.f32 %v798, %v829
    %v835 = vadd.f32 %v799, %v829
    %v836 = vadd.f32 %v800, %v829
    %v837 = vadd.f32 %v801, %v829
    %v838 = vadd.f32 %v802, %v829
    %v839 = vadd.f32 %v803, %v829
    %v840 = vadd.f32 %v804, %v829
    %v841 = vadd.f32 %v805, %v829
    %v842 = vadd.f32 %v806, %v829
    %v843 = vadd.f32 %v807, %v829
    %v844 = vadd.f32 %v808, %v829
    %v845 = vadd.f32 %v809, %v829
    %v846 = vadd.f32 %v810, %v829
    %v847 = vadd.f32 %v811, %v829
    %v848 = vadd.f32 %v812, %v829
    %v849 = vadd.f32 %v813, %v829
    %v850 = vadd.f32 %v814, %v829
    %v851 = vadd.f32 %v815, %v829
    %v852 = vadd.f32 %v816, %v829
    %v853 = vadd.f32 %v817, %v829
    %v854 = vadd.f32 %v818, %v829
    %v855 = vadd.f32 %v819, %v829
    %v856 = vadd.f32 %v820, %v829
    %v857 = vadd.f32 %v821, %v829
    %v858 = vadd.f32 %v822, %v829
    %v859 = vadd.f32 %v823, %v829
    %v860 = vadd.f32 %v824, %v829
    %v861 = vadd.f32 %v825, %v829
    %v862 = vmul.f32 %v830, 0.5
    %v863 = vmul.f32 %v831, 0.5
    %v864 = vmul.f32 %v832, 0.5
    %v865 = vmul.f32 %v833, 0.5
    %v866 = vmul.f32 %v834, 0.5
    %v867 = vmul.f32 %v835, 0.5
    %v868 = vmul.f32 %v836, 0.5
    %v869 = vmul.f32 %v837, 0.5
    %v870 = vmul.f32 %v838, 0.5
    %v871 = vmul.f32 %v839, 0.5
    %v872 = vmul.f32 %v840, 0.5
    %v873 = vmul.f32 %v841, 0.5
    %v874 = vmul.f32 %v842, 0.5
    %v875 = vmul.f32 %v843, 0.5
    %v876 = vmul.f32 %v844, 0.5
    %v877 = vmul.f32 %v845, 0.5
    %v878 = vmul.f32 %v846, 0.5
    %v879 = vmul.f32 %v847, 0.5
    %v880 = vmul.f32 %v848, 0.5
    %v881 = vmul.f32 %v849, 0.5
    %v882 = vmul.f32 %v850, 0.5
    %v883 = vmul.f32 %v851, 0.5
    %v884 = vmul.f32 %v852, 0.5
    %v885 = vmul.f32 %v853, 0.5
    %v886 = vmul.f32 %v854, 0.5
    %v887 = vmul.f32 %v855, 0.5
    %v888 = vmul.f32 %v856, 0.5
    %v889 = vmul.f32 %v857, 0.5
    %v890 = vmul.f32 %v858, 0.5
    %v891 = vmul.f32 %v859, 0.5
    %v892 = vmul.f32 %v860, 0.5
    %v893 = vmul.f32 %v861, 0.5
    %v894 = vmul.f32 %v830, 0.70710677
    %v895 = vmul.f32 %v831, 0.70710677
    %v896 = vmul.f32 %v832, 0.70710677
    %v897 = vmul.f32 %v833, 0.70710677
    %v898 = vmul.f32 %v834, 0.70710677
    %v899 = vmul.f32 %v835, 0.70710677
    %v900 = vmul.f32 %v836, 0.70710677
    %v901 = vmul.f32 %v837, 0.70710677
    %v902 = vmul.f32 %v838, 0.70710677
    %v903 = vmul.f32 %v839, 0.70710677
    %v904 = vmul.f32 %v840, 0.70710677
    %v905 = vmul.f32 %v841, 0.70710677
    %v906 = vmul.f32 %v842, 0.70710677
    %v907 = vmul.f32 %v843, 0.70710677
    %v908 = vmul.f32 %v844, 0.70710677
    %v909 = vmul.f32 %v845, 0.70710677
    %v910 = vmul.f32 %v846, 0.70710677
    %v911 = vmul.f32 %v847, 0.70710677
    %v912 = vmul.f32 %v848, 0.70710677
    %v913 = vmul.f32 %v849, 0.70710677
    %v914 = vmul.f32 %v850, 0.70710677
    %v915 = vmul.f32 %v851, 0.70710677
    %v916 = vmul.f32 %v852, 0.70710677
    %v917 = vmul.f32 %v853, 0.70710677
    %v918 = vmul.f32 %v854, 0.70710677
    %v919 = vmul.f32 %v855, 0.70710677
    %v920 = vmul.f32 %v856, 0.70710677
    %v921 = vmul.f32 %v857, 0.70710677
    %v922 = vmul.f32 %v858, 0.70710677
    %v923 = vmul.f32 %v859, 0.70710677
    %v924 = vmul.f32 %v860, 0.70710677
    %v925 = vmul.f32 %v861, 0.70710677
    %v926 = verf.f32.pop %v894
    %v927 = verf.f32.pop %v895
    %v928 = verf.f32.pop %v896
    %v929 = verf.f32.pop %v897
    %v930 = verf.f32.pop %v898
    %v931 = verf.f32.pop %v899
    %v932 = verf.f32.pop %v900
    %v933 = verf.f32.pop %v901
    %v934 = verf.f32.pop %v902
    %v935 = verf.f32.pop %v903
    %v936 = verf.f32.pop %v904
    %v937 = verf.f32.pop %v905
    %v938 = verf.f32.pop %v906
    %v939 = verf.f32.pop %v907
    %v940 = verf.f32.pop %v908
    %v941 = verf.f32.pop %v909
    %v942 = verf.f32.pop %v910
    %v943 = verf.f32.pop %v911
    %v944 = verf.f32.pop %v912
    %v945 = verf.f32.pop %v913
    %v946 = verf.f32.pop %v914
    %v947 = verf.f32.pop %v915
    %v948 = verf.f32.pop %v916
    %v949 = verf.f32.pop %v917
    %v950 = verf.f32.pop %v918
    %v951 = verf.f32.pop %v919
    %v952 = verf.f32.pop %v920
    %v953 = verf.f32.pop %v921
    %v954 = verf.f32.pop %v922
    %v955 = verf.f32.pop %v923
    %v956 = verf.f32.pop %v924
    %v957 = verf.f32.pop %v925
    %v958 = vadd.f32 %v926, 1.0
    %v959 = vadd.f32 %v927, 1.0
    %v960 = vadd.f32 %v928, 1.0
    %v961 = vadd.f32 %v929, 1.0
    %v962 = vadd.f32 %v930, 1.0
    %v963 = vadd.f32 %v931, 1.0
    %v964 = vadd.f32 %v932, 1.0
    %v965 = vadd.f32 %v933, 1.0
    %v966 = vadd.f32 %v934, 1.0
    %v967 = vadd.f32 %v935, 1.0
    %v968 = vadd.f32 %v936, 1.0
    %v969 = vadd.f32 %v937, 1.0
    %v970 = vadd.f32 %v938, 1.0
    %v971 = vadd.f32 %v939, 1.0
    %v972 = vadd.f32 %v940, 1.0
    %v973 = vadd.f32 %v941, 1.0
    %v974 = vadd.f32 %v942, 1.0
    %v975 = vadd.f32 %v943, 1.0
    %v976 = vadd.f32 %v944, 1.0
    %v977 = vadd.f32 %v945, 1.0
    %v978 = vadd.f32 %v946, 1.0
    %v979 = vadd.f32 %v947, 1.0
    %v980 = vadd.f32 %v948, 1.0
    %v981 = vadd.f32 %v949, 1.0
    %v982 = vadd.f32 %v950, 1.0
    %v983 = vadd.f32 %v951, 1.0
    %v984 = vadd.f32 %v952, 1.0
    %v985 = vadd.f32 %v953, 1.0
    %v986 = vadd.f32 %v954, 1.0
    %v987 = vadd.f32 %v955, 1.0
    %v988 = vadd.f32 %v956, 1.0
    %v989 = vadd.f32 %v957, 1.0
    %v990 = vmul.f32 %v862, %v958
    %v991 = vmul.f32 %v863, %v959
    %v992 = vmul.f32 %v864, %v960
    %v993 = vmul.f32 %v865, %v961
    %v994 = vmul.f32 %v866, %v962
    %v995 = vmul.f32 %v867, %v963
    %v996 = vmul.f32 %v868, %v964
    %v997 = vmul.f32 %v869, %v965
    %v998 = vmul.f32 %v870, %v966
    %v999 = vmul.f32 %v871, %v967
    %v1000 = vmul.f32 %v872, %v968
    %v1001 = vmul.f32 %v873, %v969
    %v1002 = vmul.f32 %v874, %v970
    %v1003 = vmul.f32 %v875, %v971
    %v1004 = vmul.f32 %v876, %v972
    %v1005 = vmul.f32 %v877, %v973
    %v1006 = vmul.f32 %v878, %v974
    %v1007 = vmul.f32 %v879, %v975
    %v1008 = vmul.f32 %v880, %v976
    %v1009 = vmul.f32 %v881, %v977
    %v1010 = vmul.f32 %v882, %v978
    %v1011 = vmul.f32 %v883, %v979
    %v1012 = vmul.f32 %v884, %v980
    %v1013 = vmul.f32 %v885, %v981
    %v1014 = vmul.f32 %v886, %v982
    %v1015 = vmul.f32 %v887, %v983
    %v1016 = vmul.f32 %v888, %v984
    %v1017 = vmul.f32 %v889, %v985
    %v1018 = vmul.f32 %v890, %v986
    %v1019 = vmul.f32 %v891, %v987
    %v1020 = vmul.f32 %v892, %v988
    %v1021 = vmul.f32 %v893, %v989
    %v1022 = vpack.c.bf16 %v991, %v990
    %v1023 = vpack.c.bf16 %v993, %v992
    %v1024 = vpack.c.bf16 %v995, %v994
    %v1025 = vpack.c.bf16 %v997, %v996
    %v1026 = vpack.c.bf16 %v999, %v998
    %v1027 = vpack.c.bf16 %v1001, %v1000
    %v1028 = vpack.c.bf16 %v1003, %v1002
    %v1029 = vpack.c.bf16 %v1005, %v1004
    %v1030 = vpack.c.bf16 %v1007, %v1006
    %v1031 = vpack.c.bf16 %v1009, %v1008
    %v1032 = vpack.c.bf16 %v1011, %v1010
    %v1033 = vpack.c.bf16 %v1013, %v1012
    %v1034 = vpack.c.bf16 %v1015, %v1014
    %v1035 = vpack.c.bf16 %v1017, %v1016
    %v1036 = vpack.c.bf16 %v1019, %v1018
    %v1037 = vpack.c.bf16 %v1021, %v1020
    %v1038 = vld [vmem:[#allocation8] sm:$0xf]
    %v1039 = vld [vmem:[#allocation8 + $0x4] sm:$0xf]
    %v1040 = vld [vmem:[#allocation8 + $0x8] sm:$0xf]
    %v1041 = vld [vmem:[#allocation8 + $0xc] sm:$0xf]
    %v1042 = vld [vmem:[#allocation8 + $0x10] sm:$0xf]
    %v1043 = vld [vmem:[#allocation8 + $0x14] sm:$0xf]
    %v1044 = vld [vmem:[#allocation8 + $0x18] sm:$0xf]
    %v1045 = vld [vmem:[#allocation8 + $0x1c] sm:$0xf]
    %v1046 = vld [vmem:[#allocation8 + $0x20] sm:$0xf]
    %v1047 = vld [vmem:[#allocation8 + $0x24] sm:$0xf]
    %v1048 = vld [vmem:[#allocation8 + $0x28] sm:$0xf]
    %v1049 = vld [vmem:[#allocation8 + $0x2c] sm:$0xf]
    %v1050 = vld [vmem:[#allocation8 + $0x30] sm:$0xf]
    %v1051 = vld [vmem:[#allocation8 + $0x34] sm:$0xf]
    %v1052 = vld [vmem:[#allocation8 + $0x38] sm:$0xf]
    %v1053 = vld [vmem:[#allocation8 + $0x3c] sm:$0xf]
    %v1054 = vlaneseq
    %v1055 = vshrl.u32 %v1054, 7
    %v1056 = vsub.s32 0, %v1055
    %v1057 = vrot.slane %v78, %v1056
    %v1074 = vunpack.c.l.b16 %v1038
    %v1075 = vunpack.c.l.b16 %v1039
    %v1076 = vunpack.c.l.b16 %v1040
    %v1077 = vunpack.c.l.b16 %v1041
    %v1078 = vunpack.c.l.b16 %v1042
    %v1079 = vunpack.c.l.b16 %v1043
    %v1080 = vunpack.c.l.b16 %v1044
    %v1081 = vunpack.c.l.b16 %v1045
    %v1082 = vunpack.c.l.b16 %v1046
    %v1083 = vunpack.c.l.b16 %v1047
    %v1084 = vunpack.c.l.b16 %v1048
    %v1085 = vunpack.c.l.b16 %v1049
    %v1086 = vunpack.c.l.b16 %v1050
    %v1087 = vunpack.c.l.b16 %v1051
    %v1088 = vunpack.c.l.b16 %v1052
    %v1089 = vunpack.c.l.b16 %v1053
    %v1090 = vpack.c.b16 %v1075, %v1074
    %v1091 = vpack.c.b16 %v1077, %v1076
    %v1092 = vpack.c.b16 %v1079, %v1078
    %v1093 = vpack.c.b16 %v1081, %v1080
    %v1094 = vpack.c.b16 %v1083, %v1082
    %v1095 = vpack.c.b16 %v1085, %v1084
    %v1096 = vpack.c.b16 %v1087, %v1086
    %v1097 = vpack.c.b16 %v1089, %v1088
    %1106 = vmatprep.subr.bf16.mxu0 0
    %1107 = vmatpush1.bf16.msra.mxu0 %v1090
    %1108 = vmatprep.subr.bf16.mxu0 0
    %1109 = vmatpush1.bf16.msra.mxu0 %v1091
    %1110 = vmatprep.subr.bf16.mxu0 0
    %1111 = vmatpush1.bf16.msra.mxu0 %v1092
    %1112 = vmatprep.subr.bf16.mxu0 0
    %1113 = vmatpush1.bf16.msra.mxu0 %v1093
    %1114 = vmatprep.subr.bf16.mxu0 0
    %1115 = vmatpush1.bf16.msra.mxu0 %v1094
    %1116 = vmatprep.subr.bf16.mxu0 0
    %1117 = vmatpush1.bf16.msra.mxu0 %v1095
    %1118 = vmatprep.subr.bf16.mxu0 0
    %1119 = vmatpush1.bf16.msra.mxu0 %v1096
    %1120 = vmatprep.subr.bf16.mxu0 0
    %1121 = vmatpush1.bf16.msra.mxu0 %v1097
    %1122 = vmatprep.subr.bf16.mxu0 0
    %1123 = vmatpush1.bf16.msra.mxu0 0
    %1124 = vmatprep.subr.bf16.mxu0 0
    %1125 = vmatpush1.bf16.msra.mxu0 0
    %1126 = vmatprep.subr.bf16.mxu0 0
    %1127 = vmatpush1.bf16.msra.mxu0 0
    %1128 = vmatprep.subr.bf16.mxu0 0
    %1129 = vmatpush1.bf16.msra.mxu0 0
    %1130 = vmatprep.subr.bf16.mxu0 0
    %1131 = vmatpush1.bf16.msra.mxu0 0
    %1132 = vmatprep.subr.bf16.mxu0 0
    %1133 = vmatpush1.bf16.msra.mxu0 0
    %1134 = vmatprep.subr.bf16.mxu0 0
    %1135 = vmatpush1.bf16.msra.mxu0 0
    %1136 = vmatprep.subr.bf16.mxu0 0
    %1137 = vmatpush1.bf16.msra.mxu0 0
    %1138 = vmatprep.mubr.bf16.mxu0 0
    %1139 = vmatmul.mubr.bf16.gmra.mrb[0].mxu0 %v1022
    %v1140 = vpop.f32.mrb[0].mxu0
    %v1141 = vadd.f32 %v1057, %v1140
    %v1142 = vpop.f32.mrb[0].mxu0
    %v1143 = vpop.f32.mrb[0].mxu0
    %v1144 = vadd.f32 %v1057, %v1143
    %v1145 = vpop.f32.mrb[0].mxu0
    %1146 = vmatprep.mubr.bf16.mxu0 0
    %1147 = vmatmul.mubr.bf16.gmra.mrb[0].mxu0 %v1023
    %v1148 = vpop.f32.mrb[0].mxu0
    %v1149 = vadd.f32 %v1057, %v1148
    %v1150 = vpop.f32.mrb[0].mxu0
    %v1151 = vpop.f32.mrb[0].mxu0
    %v1152 = vadd.f32 %v1057, %v1151
    %v1153 = vpop.f32.mrb[0].mxu0
    %1154 = vmatprep.mubr.bf16.mxu0 0
    %1155 = vmatmul.mubr.bf16.gmra.mrb[0].mxu0 %v1024
    %v1156 = vpop.f32.mrb[0].mxu0
    %v1157 = vadd.f32 %v1057, %v1156
    %v1158 = vpop.f32.mrb[0].mxu0
    %v1159 = vpop.f32.mrb[0].mxu0
    %v1160 = vadd.f32 %v1057, %v1159
    %v1161 = vpop.f32.mrb[0].mxu0
    %1162 = vmatprep.mubr.bf16.mxu0 0
    %1163 = vmatmul.mubr.bf16.gmra.mrb[0].mxu0 %v1025
    %v1164 = vpop.f32.mrb[0].mxu0
    %v1165 = vadd.f32 %v1057, %v1164
    %v1166 = vpop.f32.mrb[0].mxu0
    %v1167 = vpop.f32.mrb[0].mxu0
    %v1168 = vadd.f32 %v1057, %v1167
    %v1169 = vpop.f32.mrb[0].mxu0
    %1170 = vmatprep.mubr.bf16.mxu0 0
    %1171 = vmatmul.mubr.bf16.gmra.mrb[0].mxu0 %v1026
    %v1172 = vpop.f32.mrb[0].mxu0
    %v1173 = vadd.f32 %v1057, %v1172
    %v1174 = vpop.f32.mrb[0].mxu0
    %v1175 = vpop.f32.mrb[0].mxu0
    %v1176 = vadd.f32 %v1057, %v1175
    %v1177 = vpop.f32.mrb[0].mxu0
    %1178 = vmatprep.mubr.bf16.mxu0 0
    %1179 = vmatmul.mubr.bf16.gmra.mrb[0].mxu0 %v1027
    %v1180 = vpop.f32.mrb[0].mxu0
    %v1181 = vadd.f32 %v1057, %v1180
    %v1182 = vpop.f32.mrb[0].mxu0
    %v1183 = vpop.f32.mrb[0].mxu0
    %v1184 = vadd.f32 %v1057, %v1183
    %v1185 = vpop.f32.mrb[0].mxu0
    %1186 = vmatprep.mubr.bf16.mxu0 0
    %1187 = vmatmul.mubr.bf16.gmra.mrb[0].mxu0 %v1028
    %v1188 = vpop.f32.mrb[0].mxu0
    %v1189 = vadd.f32 %v1057, %v1188
    %v1190 = vpop.f32.mrb[0].mxu0
    %v1191 = vpop.f32.mrb[0].mxu0
    %v1192 = vadd.f32 %v1057, %v1191
    %v1193 = vpop.f32.mrb[0].mxu0
    %1194 = vmatprep.mubr.bf16.mxu0 0
    %1195 = vmatmul.mubr.bf16.gmra.mrb[0].mxu0 %v1029
    %v1196 = vpop.f32.mrb[0].mxu0
    %v1197 = vadd.f32 %v1057, %v1196
    %v1198 = vpop.f32.mrb[0].mxu0
    %v1199 = vpop.f32.mrb[0].mxu0
    %v1200 = vadd.f32 %v1057, %v1199
    %v1201 = vpop.f32.mrb[0].mxu0
    %1202 = vmatprep.mubr.bf16.mxu0 0
    %1203 = vmatmul.mubr.bf16.gmra.mrb[0].mxu0 %v1030
    %v1204 = vpop.f32.mrb[0].mxu0
    %v1205 = vadd.f32 %v1057, %v1204
    %v1206 = vpop.f32.mrb[0].mxu0
    %v1207 = vpop.f32.mrb[0].mxu0
    %v1208 = vadd.f32 %v1057, %v1207
    %v1209 = vpop.f32.mrb[0].mxu0
    %1210 = vmatprep.mubr.bf16.mxu0 0
    %1211 = vmatmul.mubr.bf16.gmra.mrb[0].mxu0 %v1031
    %v1212 = vpop.f32.mrb[0].mxu0
    %v1213 = vadd.f32 %v1057, %v1212
    %v1214 = vpop.f32.mrb[0].mxu0
    %v1215 = vpop.f32.mrb[0].mxu0
    %v1216 = vadd.f32 %v1057, %v1215
    %v1217 = vpop.f32.mrb[0].mxu0
    %1218 = vmatprep.mubr.bf16.mxu0 0
    %1219 = vmatmul.mubr.bf16.gmra.mrb[0].mxu0 %v1032
    %v1220 = vpop.f32.mrb[0].mxu0
    %v1221 = vadd.f32 %v1057, %v1220
    %v1222 = vpop.f32.mrb[0].mxu0
    %v1223 = vpop.f32.mrb[0].mxu0
    %v1224 = vadd.f32 %v1057, %v1223
    %v1225 = vpop.f32.mrb[0].mxu0
    %1226 = vmatprep.mubr.bf16.mxu0 0
    %1227 = vmatmul.mubr.bf16.gmra.mrb[0].mxu0 %v1033
    %v1228 = vpop.f32.mrb[0].mxu0
    %v1229 = vadd.f32 %v1057, %v1228
    %v1230 = vpop.f32.mrb[0].mxu0
    %v1231 = vpop.f32.mrb[0].mxu0
    %v1232 = vadd.f32 %v1057, %v1231
    %v1233 = vpop.f32.mrb[0].mxu0
    %1234 = vmatprep.mubr.bf16.mxu0 0
    %1235 = vmatmul.mubr.bf16.gmra.mrb[0].mxu0 %v1034
    %v1236 = vpop.f32.mrb[0].mxu0
    %v1237 = vadd.f32 %v1057, %v1236
    %v1238 = vpop.f32.mrb[0].mxu0
    %v1239 = vpop.f32.mrb[0].mxu0
    %v1240 = vadd.f32 %v1057, %v1239
    %v1241 = vpop.f32.mrb[0].mxu0
    %1242 = vmatprep.mubr.bf16.mxu0 0
    %1243 = vmatmul.mubr.bf16.gmra.mrb[0].mxu0 %v1035
    %v1244 = vpop.f32.mrb[0].mxu0
    %v1245 = vadd.f32 %v1057, %v1244
    %v1246 = vpop.f32.mrb[0].mxu0
    %v1247 = vpop.f32.mrb[0].mxu0
    %v1248 = vadd.f32 %v1057, %v1247
    %v1249 = vpop.f32.mrb[0].mxu0
    %1250 = vmatprep.mubr.bf16.mxu0 0
    %1251 = vmatmul.mubr.bf16.gmra.mrb[0].mxu0 %v1036
    %v1252 = vpop.f32.mrb[0].mxu0
    %v1253 = vadd.f32 %v1057, %v1252
    %v1254 = vpop.f32.mrb[0].mxu0
    %v1255 = vpop.f32.mrb[0].mxu0
    %v1256 = vadd.f32 %v1057, %v1255
    %v1257 = vpop.f32.mrb[0].mxu0
    %1258 = vmatprep.mubr.bf16.mxu0 0
    %1259 = vmatmul.mubr.bf16.gmra.mrb[0].mxu0 %v1037
    %v1260 = vpop.f32.mrb[0].mxu0
    %v1261 = vadd.f32 %v1057, %v1260
    %v1262 = vpop.f32.mrb[0].mxu0
    %v1263 = vpop.f32.mrb[0].mxu0
    %v1264 = vadd.f32 %v1057, %v1263
    %v1265 = vpop.f32.mrb[0].mxu0
    %1266 = vdwg.mxu0
    %1267 = vadd.xlane.f32.xlu0 %v1141
    %v1268 = vpop.xlane.xlu0 %1267
    %1269 = vadd.xlane.f32.xlu0 %v1144
    %v1270 = vpop.xlane.xlu0 %1269
    %1271 = vadd.xlane.f32.xlu0 %v1149
    %v1272 = vpop.xlane.xlu0 %1271
    %1273 = vadd.xlane.f32.xlu0 %v1152
    %v1274 = vpop.xlane.xlu0 %1273
    %1275 = vadd.xlane.f32.xlu0 %v1157
    %v1276 = vpop.xlane.xlu0 %1275
    %1277 = vadd.xlane.f32.xlu0 %v1160
    %v1278 = vpop.xlane.xlu0 %1277
    %1279 = vadd.xlane.f32.xlu0 %v1165
    %v1280 = vpop.xlane.xlu0 %1279
    %1281 = vadd.xlane.f32.xlu0 %v1168
    %v1282 = vpop.xlane.xlu0 %1281
    %1283 = vadd.xlane.f32.xlu0 %v1173
    %v1284 = vpop.xlane.xlu0 %1283
    %1285 = vadd.xlane.f32.xlu0 %v1176
    %v1286 = vpop.xlane.xlu0 %1285
    %1287 = vadd.xlane.f32.xlu0 %v1181
    %v1288 = vpop.xlane.xlu0 %1287
    %1289 = vadd.xlane.f32.xlu0 %v1184
    %v1290 = vpop.xlane.xlu0 %1289
    %1291 = vadd.xlane.f32.xlu0 %v1189
    %v1292 = vpop.xlane.xlu0 %1291
    %1293 = vadd.xlane.f32.xlu0 %v1192
    %v1294 = vpop.xlane.xlu0 %1293
    %1295 = vadd.xlane.f32.xlu0 %v1197
    %v1296 = vpop.xlane.xlu0 %1295
    %1297 = vadd.xlane.f32.xlu0 %v1200
    %v1298 = vpop.xlane.xlu0 %1297
    %1299 = vadd.xlane.f32.xlu0 %v1205
    %v1300 = vpop.xlane.xlu0 %1299
    %1301 = vadd.xlane.f32.xlu0 %v1208
    %v1302 = vpop.xlane.xlu0 %1301
    %1303 = vadd.xlane.f32.xlu0 %v1213
    %v1304 = vpop.xlane.xlu0 %1303
    %1305 = vadd.xlane.f32.xlu0 %v1216
    %v1306 = vpop.xlane.xlu0 %1305
    %1307 = vadd.xlane.f32.xlu0 %v1221
    %v1308 = vpop.xlane.xlu0 %1307
    %1309 = vadd.xlane.f32.xlu0 %v1224
    %v1310 = vpop.xlane.xlu0 %1309
    %1311 = vadd.xlane.f32.xlu0 %v1229
    %v1312 = vpop.xlane.xlu0 %1311
    %1313 = vadd.xlane.f32.xlu0 %v1232
    %v1314 = vpop.xlane.xlu0 %1313
    %1315 = vadd.xlane.f32.xlu0 %v1237
    %v1316 = vpop.xlane.xlu0 %1315
    %1317 = vadd.xlane.f32.xlu0 %v1240
    %v1318 = vpop.xlane.xlu0 %1317
    %1319 = vadd.xlane.f32.xlu0 %v1245
    %v1320 = vpop.xlane.xlu0 %1319
    %1321 = vadd.xlane.f32.xlu0 %v1248
    %v1322 = vpop.xlane.xlu0 %1321
    %1323 = vadd.xlane.f32.xlu0 %v1253
    %v1324 = vpop.xlane.xlu0 %1323
    %1325 = vadd.xlane.f32.xlu0 %v1256
    %v1326 = vpop.xlane.xlu0 %1325
    %1327 = vadd.xlane.f32.xlu0 %v1261
    %v1328 = vpop.xlane.xlu0 %1327
    %1329 = vadd.xlane.f32.xlu0 %v1264
    %v1330 = vpop.xlane.xlu0 %1329
    %v1331 = vmul.f32 %v1268, 0.020833334
    %v1332 = vmul.f32 %v1270, 0.020833334
    %v1333 = vmul.f32 %v1272, 0.020833334
    %v1334 = vmul.f32 %v1274, 0.020833334
    %v1335 = vmul.f32 %v1276, 0.020833334
    %v1336 = vmul.f32 %v1278, 0.020833334
    %v1337 = vmul.f32 %v1280, 0.020833334
    %v1338 = vmul.f32 %v1282, 0.020833334
    %v1339 = vmul.f32 %v1284, 0.020833334
    %v1340 = vmul.f32 %v1286, 0.020833334
    %v1341 = vmul.f32 %v1288, 0.020833334
    %v1342 = vmul.f32 %v1290, 0.020833334
    %v1343 = vmul.f32 %v1292, 0.020833334
    %v1344 = vmul.f32 %v1294, 0.020833334
    %v1345 = vmul.f32 %v1296, 0.020833334
    %v1346 = vmul.f32 %v1298, 0.020833334
    %v1347 = vmul.f32 %v1300, 0.020833334
    %v1348 = vmul.f32 %v1302, 0.020833334
    %v1349 = vmul.f32 %v1304, 0.020833334
    %v1350 = vmul.f32 %v1306, 0.020833334
    %v1351 = vmul.f32 %v1308, 0.020833334
    %v1352 = vmul.f32 %v1310, 0.020833334
    %v1353 = vmul.f32 %v1312, 0.020833334
    %v1354 = vmul.f32 %v1314, 0.020833334
    %v1355 = vmul.f32 %v1316, 0.020833334
    %v1356 = vmul.f32 %v1318, 0.020833334
    %v1357 = vmul.f32 %v1320, 0.020833334
    %v1358 = vmul.f32 %v1322, 0.020833334
    %v1359 = vmul.f32 %v1324, 0.020833334
    %v1360 = vmul.f32 %v1326, 0.020833334
    %v1361 = vmul.f32 %v1328, 0.020833334
    %v1362 = vmul.f32 %v1330, 0.020833334
    %v1363 = vsub.f32 %v1141, %v1331
    %v1364 = vsub.f32 %v1144, %v1332
    %v1365 = vsub.f32 %v1149, %v1333
    %v1366 = vsub.f32 %v1152, %v1334
    %v1367 = vsub.f32 %v1157, %v1335
    %v1368 = vsub.f32 %v1160, %v1336
    %v1369 = vsub.f32 %v1165, %v1337
    %v1370 = vsub.f32 %v1168, %v1338
    %v1371 = vsub.f32 %v1173, %v1339
    %v1372 = vsub.f32 %v1176, %v1340
    %v1373 = vsub.f32 %v1181, %v1341
    %v1374 = vsub.f32 %v1184, %v1342
    %v1375 = vsub.f32 %v1189, %v1343
    %v1376 = vsub.f32 %v1192, %v1344
    %v1377 = vsub.f32 %v1197, %v1345
    %v1378 = vsub.f32 %v1200, %v1346
    %v1379 = vsub.f32 %v1205, %v1347
    %v1380 = vsub.f32 %v1208, %v1348
    %v1381 = vsub.f32 %v1213, %v1349
    %v1382 = vsub.f32 %v1216, %v1350
    %v1383 = vsub.f32 %v1221, %v1351
    %v1384 = vsub.f32 %v1224, %v1352
    %v1385 = vsub.f32 %v1229, %v1353
    %v1386 = vsub.f32 %v1232, %v1354
    %v1387 = vsub.f32 %v1237, %v1355
    %v1388 = vsub.f32 %v1240, %v1356
    %v1389 = vsub.f32 %v1245, %v1357
    %v1390 = vsub.f32 %v1248, %v1358
    %v1391 = vsub.f32 %v1253, %v1359
    %v1392 = vsub.f32 %v1256, %v1360
    %v1393 = vsub.f32 %v1261, %v1361
    %v1394 = vsub.f32 %v1264, %v1362
    %v1395 = vlaneseq
    %v1396 = vand.u32 %v1395, 127
    %vm1397 = vcmp.lt.s32.totalorder %v1396, 48
    %v1398 = vsel %vm1397, %v1363, 0.0
    %v1399 = vsel %vm1397, %v1364, 0.0
    %v1400 = vsel %vm1397, %v1365, 0.0
    %v1401 = vsel %vm1397, %v1366, 0.0
    %v1402 = vsel %vm1397, %v1367, 0.0
    %v1403 = vsel %vm1397, %v1368, 0.0
    %v1404 = vsel %vm1397, %v1369, 0.0
    %v1405 = vsel %vm1397, %v1370, 0.0
    %v1406 = vsel %vm1397, %v1371, 0.0
    %v1407 = vsel %vm1397, %v1372, 0.0
    %v1408 = vsel %vm1397, %v1373, 0.0
    %v1409 = vsel %vm1397, %v1374, 0.0
    %v1410 = vsel %vm1397, %v1375, 0.0
    %v1411 = vsel %vm1397, %v1376, 0.0
    %v1412 = vsel %vm1397, %v1377, 0.0
    %v1413 = vsel %vm1397, %v1378, 0.0
    %v1414 = vsel %vm1397, %v1379, 0.0
    %v1415 = vsel %vm1397, %v1380, 0.0
    %v1416 = vsel %vm1397, %v1381, 0.0
    %v1417 = vsel %vm1397, %v1382, 0.0
    %v1418 = vsel %vm1397, %v1383, 0.0
    %v1419 = vsel %vm1397, %v1384, 0.0
    %v1420 = vsel %vm1397, %v1385, 0.0
    %v1421 = vsel %vm1397, %v1386, 0.0
    %v1422 = vsel %vm1397, %v1387, 0.0
    %v1423 = vsel %vm1397, %v1388, 0.0
    %v1424 = vsel %vm1397, %v1389, 0.0
    %v1425 = vsel %vm1397, %v1390, 0.0
    %v1426 = vsel %vm1397, %v1391, 0.0
    %v1427 = vsel %vm1397, %v1392, 0.0
    %v1428 = vsel %vm1397, %v1393, 0.0
    %v1429 = vsel %vm1397, %v1394, 0.0
    %v1430 = vmul.f32 %v1398, %v1398
    %v1431 = vmul.f32 %v1399, %v1399
    %v1432 = vmul.f32 %v1400, %v1400
    %v1433 = vmul.f32 %v1401, %v1401
    %v1434 = vmul.f32 %v1402, %v1402
    %v1435 = vmul.f32 %v1403, %v1403
    %v1436 = vmul.f32 %v1404, %v1404
    %v1437 = vmul.f32 %v1405, %v1405
    %v1438 = vmul.f32 %v1406, %v1406
    %v1439 = vmul.f32 %v1407, %v1407
    %v1440 = vmul.f32 %v1408, %v1408
    %v1441 = vmul.f32 %v1409, %v1409
    %v1442 = vmul.f32 %v1410, %v1410
    %v1443 = vmul.f32 %v1411, %v1411
    %v1444 = vmul.f32 %v1412, %v1412
    %v1445 = vmul.f32 %v1413, %v1413
    %v1446 = vmul.f32 %v1414, %v1414
    %v1447 = vmul.f32 %v1415, %v1415
    %v1448 = vmul.f32 %v1416, %v1416
    %v1449 = vmul.f32 %v1417, %v1417
    %v1450 = vmul.f32 %v1418, %v1418
    %v1451 = vmul.f32 %v1419, %v1419
    %v1452 = vmul.f32 %v1420, %v1420
    %v1453 = vmul.f32 %v1421, %v1421
    %v1454 = vmul.f32 %v1422, %v1422
    %v1455 = vmul.f32 %v1423, %v1423
    %v1456 = vmul.f32 %v1424, %v1424
    %v1457 = vmul.f32 %v1425, %v1425
    %v1458 = vmul.f32 %v1426, %v1426
    %v1459 = vmul.f32 %v1427, %v1427
    %v1460 = vmul.f32 %v1428, %v1428
    %v1461 = vmul.f32 %v1429, %v1429
    %1462 = vadd.xlane.f32.xlu0 %v1430
    %v1463 = vpop.xlane.xlu0 %1462
    %1464 = vadd.xlane.f32.xlu0 %v1431
    %v1465 = vpop.xlane.xlu0 %1464
    %1466 = vadd.xlane.f32.xlu0 %v1432
    %v1467 = vpop.xlane.xlu0 %1466
    %1468 = vadd.xlane.f32.xlu0 %v1433
    %v1469 = vpop.xlane.xlu0 %1468
    %1470 = vadd.xlane.f32.xlu0 %v1434
    %v1471 = vpop.xlane.xlu0 %1470
    %1472 = vadd.xlane.f32.xlu0 %v1435
    %v1473 = vpop.xlane.xlu0 %1472
    %1474 = vadd.xlane.f32.xlu0 %v1436
    %v1475 = vpop.xlane.xlu0 %1474
    %1476 = vadd.xlane.f32.xlu0 %v1437
    %v1477 = vpop.xlane.xlu0 %1476
    %1478 = vadd.xlane.f32.xlu0 %v1438
    %v1479 = vpop.xlane.xlu0 %1478
    %1480 = vadd.xlane.f32.xlu0 %v1439
    %v1481 = vpop.xlane.xlu0 %1480
    %1482 = vadd.xlane.f32.xlu0 %v1440
    %v1483 = vpop.xlane.xlu0 %1482
    %1484 = vadd.xlane.f32.xlu0 %v1441
    %v1485 = vpop.xlane.xlu0 %1484
    %1486 = vadd.xlane.f32.xlu0 %v1442
    %v1487 = vpop.xlane.xlu0 %1486
    %1488 = vadd.xlane.f32.xlu0 %v1443
    %v1489 = vpop.xlane.xlu0 %1488
    %1490 = vadd.xlane.f32.xlu0 %v1444
    %v1491 = vpop.xlane.xlu0 %1490
    %1492 = vadd.xlane.f32.xlu0 %v1445
    %v1493 = vpop.xlane.xlu0 %1492
    %1494 = vadd.xlane.f32.xlu0 %v1446
    %v1495 = vpop.xlane.xlu0 %1494
    %1496 = vadd.xlane.f32.xlu0 %v1447
    %v1497 = vpop.xlane.xlu0 %1496
    %1498 = vadd.xlane.f32.xlu0 %v1448
    %v1499 = vpop.xlane.xlu0 %1498
    %1500 = vadd.xlane.f32.xlu0 %v1449
    %v1501 = vpop.xlane.xlu0 %1500
    %1502 = vadd.xlane.f32.xlu0 %v1450
    %v1503 = vpop.xlane.xlu0 %1502
    %1504 = vadd.xlane.f32.xlu0 %v1451
    %v1505 = vpop.xlane.xlu0 %1504
    %1506 = vadd.xlane.f32.xlu0 %v1452
    %v1507 = vpop.xlane.xlu0 %1506
    %1508 = vadd.xlane.f32.xlu0 %v1453
    %v1509 = vpop.xlane.xlu0 %1508
    %1510 = vadd.xlane.f32.xlu0 %v1454
    %v1511 = vpop.xlane.xlu0 %1510
    %1512 = vadd.xlane.f32.xlu0 %v1455
    %v1513 = vpop.xlane.xlu0 %1512
    %1514 = vadd.xlane.f32.xlu0 %v1456
    %v1515 = vpop.xlane.xlu0 %1514
    %1516 = vadd.xlane.f32.xlu0 %v1457
    %v1517 = vpop.xlane.xlu0 %1516
    %1518 = vadd.xlane.f32.xlu0 %v1458
    %v1519 = vpop.xlane.xlu0 %1518
    %1520 = vadd.xlane.f32.xlu0 %v1459
    %v1521 = vpop.xlane.xlu0 %1520
    %1522 = vadd.xlane.f32.xlu0 %v1460
    %v1523 = vpop.xlane.xlu0 %1522
    %1524 = vadd.xlane.f32.xlu0 %v1461
    %v1525 = vpop.xlane.xlu0 %1524
    %v1526 = vmul.f32 %v1463, 0.020833334
    %v1527 = vmul.f32 %v1465, 0.020833334
    %v1528 = vmul.f32 %v1467, 0.020833334
    %v1529 = vmul.f32 %v1469, 0.020833334
    %v1530 = vmul.f32 %v1471, 0.020833334
    %v1531 = vmul.f32 %v1473, 0.020833334
    %v1532 = vmul.f32 %v1475, 0.020833334
    %v1533 = vmul.f32 %v1477, 0.020833334
    %v1534 = vmul.f32 %v1479, 0.020833334
    %v1535 = vmul.f32 %v1481, 0.020833334
    %v1536 = vmul.f32 %v1483, 0.020833334
    %v1537 = vmul.f32 %v1485, 0.020833334
    %v1538 = vmul.f32 %v1487, 0.020833334
    %v1539 = vmul.f32 %v1489, 0.020833334
    %v1540 = vmul.f32 %v1491, 0.020833334
    %v1541 = vmul.f32 %v1493, 0.020833334
    %v1542 = vmul.f32 %v1495, 0.020833334
    %v1543 = vmul.f32 %v1497, 0.020833334
    %v1544 = vmul.f32 %v1499, 0.020833334
    %v1545 = vmul.f32 %v1501, 0.020833334
    %v1546 = vmul.f32 %v1503, 0.020833334
    %v1547 = vmul.f32 %v1505, 0.020833334
    %v1548 = vmul.f32 %v1507, 0.020833334
    %v1549 = vmul.f32 %v1509, 0.020833334
    %v1550 = vmul.f32 %v1511, 0.020833334
    %v1551 = vmul.f32 %v1513, 0.020833334
    %v1552 = vmul.f32 %v1515, 0.020833334
    %v1553 = vmul.f32 %v1517, 0.020833334
    %v1554 = vmul.f32 %v1519, 0.020833334
    %v1555 = vmul.f32 %v1521, 0.020833334
    %v1556 = vmul.f32 %v1523, 0.020833334
    %v1557 = vmul.f32 %v1525, 0.020833334
    %v1558 = vadd.f32 %v1526, 1e-05
    %v1559 = vadd.f32 %v1527, 1e-05
    %v1560 = vadd.f32 %v1528, 1e-05
    %v1561 = vadd.f32 %v1529, 1e-05
    %v1562 = vadd.f32 %v1530, 1e-05
    %v1563 = vadd.f32 %v1531, 1e-05
    %v1564 = vadd.f32 %v1532, 1e-05
    %v1565 = vadd.f32 %v1533, 1e-05
    %v1566 = vadd.f32 %v1534, 1e-05
    %v1567 = vadd.f32 %v1535, 1e-05
    %v1568 = vadd.f32 %v1536, 1e-05
    %v1569 = vadd.f32 %v1537, 1e-05
    %v1570 = vadd.f32 %v1538, 1e-05
    %v1571 = vadd.f32 %v1539, 1e-05
    %v1572 = vadd.f32 %v1540, 1e-05
    %v1573 = vadd.f32 %v1541, 1e-05
    %v1574 = vadd.f32 %v1542, 1e-05
    %v1575 = vadd.f32 %v1543, 1e-05
    %v1576 = vadd.f32 %v1544, 1e-05
    %v1577 = vadd.f32 %v1545, 1e-05
    %v1578 = vadd.f32 %v1546, 1e-05
    %v1579 = vadd.f32 %v1547, 1e-05
    %v1580 = vadd.f32 %v1548, 1e-05
    %v1581 = vadd.f32 %v1549, 1e-05
    %v1582 = vadd.f32 %v1550, 1e-05
    %v1583 = vadd.f32 %v1551, 1e-05
    %v1584 = vadd.f32 %v1552, 1e-05
    %v1585 = vadd.f32 %v1553, 1e-05
    %v1586 = vadd.f32 %v1554, 1e-05
    %v1587 = vadd.f32 %v1555, 1e-05
    %v1588 = vadd.f32 %v1556, 1e-05
    %v1589 = vadd.f32 %v1557, 1e-05
    %v1590 = vrsqrt.pop %v1558
    %v1591 = vrsqrt.pop %v1559
    %v1592 = vrsqrt.pop %v1560
    %v1593 = vrsqrt.pop %v1561
    %v1594 = vrsqrt.pop %v1562
    %v1595 = vrsqrt.pop %v1563
    %v1596 = vrsqrt.pop %v1564
    %v1597 = vrsqrt.pop %v1565
    %v1598 = vrsqrt.pop %v1566
    %v1599 = vrsqrt.pop %v1567
    %v1600 = vrsqrt.pop %v1568
    %v1601 = vrsqrt.pop %v1569
    %v1602 = vrsqrt.pop %v1570
    %v1603 = vrsqrt.pop %v1571
    %v1604 = vrsqrt.pop %v1572
    %v1605 = vrsqrt.pop %v1573
    %v1606 = vrsqrt.pop %v1574
    %v1607 = vrsqrt.pop %v1575
    %v1608 = vrsqrt.pop %v1576
    %v1609 = vrsqrt.pop %v1577
    %v1610 = vrsqrt.pop %v1578
    %v1611 = vrsqrt.pop %v1579
    %v1612 = vrsqrt.pop %v1580
    %v1613 = vrsqrt.pop %v1581
    %v1614 = vrsqrt.pop %v1582
    %v1615 = vrsqrt.pop %v1583
    %v1616 = vrsqrt.pop %v1584
    %v1617 = vrsqrt.pop %v1585
    %v1618 = vrsqrt.pop %v1586
    %v1619 = vrsqrt.pop %v1587
    %v1620 = vrsqrt.pop %v1588
    %v1621 = vrsqrt.pop %v1589
    %v1622 = vlaneseq
    %v1623 = vshrl.u32 %v1622, 7
    %v1624 = vsub.s32 0, %v1623
    %v1625 = vrot.slane %v79, %v1624
    %v1626 = vmul.f32 %v1590, %v1625
    %v1627 = vmul.f32 %v1591, %v1625
    %v1628 = vmul.f32 %v1592, %v1625
    %v1629 = vmul.f32 %v1593, %v1625
    %v1630 = vmul.f32 %v1594, %v1625
    %v1631 = vmul.f32 %v1595, %v1625
    %v1632 = vmul.f32 %v1596, %v1625
    %v1633 = vmul.f32 %v1597, %v1625
    %v1634 = vmul.f32 %v1598, %v1625
    %v1635 = vmul.f32 %v1599, %v1625
    %v1636 = vmul.f32 %v1600, %v1625
    %v1637 = vmul.f32 %v1601, %v1625
    %v1638 = vmul.f32 %v1602, %v1625
    %v1639 = vmul.f32 %v1603, %v1625
    %v1640 = vmul.f32 %v1604, %v1625
    %v1641 = vmul.f32 %v1605, %v1625
    %v1642 = vmul.f32 %v1606, %v1625
    %v1643 = vmul.f32 %v1607, %v1625
    %v1644 = vmul.f32 %v1608, %v1625
    %v1645 = vmul.f32 %v1609, %v1625
    %v1646 = vmul.f32 %v1610, %v1625
    %v1647 = vmul.f32 %v1611, %v1625
    %v1648 = vmul.f32 %v1612, %v1625
    %v1649 = vmul.f32 %v1613, %v1625
    %v1650 = vmul.f32 %v1614, %v1625
    %v1651 = vmul.f32 %v1615, %v1625
    %v1652 = vmul.f32 %v1616, %v1625
    %v1653 = vmul.f32 %v1617, %v1625
    %v1654 = vmul.f32 %v1618, %v1625
    %v1655 = vmul.f32 %v1619, %v1625
    %v1656 = vmul.f32 %v1620, %v1625
    %v1657 = vmul.f32 %v1621, %v1625
    %v1658 = vmul.f32 %v1398, %v1626
    %v1659 = vmul.f32 %v1399, %v1627
    %v1660 = vmul.f32 %v1400, %v1628
    %v1661 = vmul.f32 %v1401, %v1629
    %v1662 = vmul.f32 %v1402, %v1630
    %v1663 = vmul.f32 %v1403, %v1631
    %v1664 = vmul.f32 %v1404, %v1632
    %v1665 = vmul.f32 %v1405, %v1633
    %v1666 = vmul.f32 %v1406, %v1634
    %v1667 = vmul.f32 %v1407, %v1635
    %v1668 = vmul.f32 %v1408, %v1636
    %v1669 = vmul.f32 %v1409, %v1637
    %v1670 = vmul.f32 %v1410, %v1638
    %v1671 = vmul.f32 %v1411, %v1639
    %v1672 = vmul.f32 %v1412, %v1640
    %v1673 = vmul.f32 %v1413, %v1641
    %v1674 = vmul.f32 %v1414, %v1642
    %v1675 = vmul.f32 %v1415, %v1643
    %v1676 = vmul.f32 %v1416, %v1644
    %v1677 = vmul.f32 %v1417, %v1645
    %v1678 = vmul.f32 %v1418, %v1646
    %v1679 = vmul.f32 %v1419, %v1647
    %v1680 = vmul.f32 %v1420, %v1648
    %v1681 = vmul.f32 %v1421, %v1649
    %v1682 = vmul.f32 %v1422, %v1650
    %v1683 = vmul.f32 %v1423, %v1651
    %v1684 = vmul.f32 %v1424, %v1652
    %v1685 = vmul.f32 %v1425, %v1653
    %v1686 = vmul.f32 %v1426, %v1654
    %v1687 = vmul.f32 %v1427, %v1655
    %v1688 = vmul.f32 %v1428, %v1656
    %v1689 = vmul.f32 %v1429, %v1657
    %v1690 = vlaneseq
    %v1691 = vshrl.u32 %v1690, 7
    %v1692 = vsub.s32 0, %v1691
    %v1693 = vrot.slane %v80, %v1692
    %v1694 = vadd.f32 %v1658, %v1693
    %v1695 = vadd.f32 %v1659, %v1693
    %v1696 = vadd.f32 %v1660, %v1693
    %v1697 = vadd.f32 %v1661, %v1693
    %v1698 = vadd.f32 %v1662, %v1693
    %v1699 = vadd.f32 %v1663, %v1693
    %v1700 = vadd.f32 %v1664, %v1693
    %v1701 = vadd.f32 %v1665, %v1693
    %v1702 = vadd.f32 %v1666, %v1693
    %v1703 = vadd.f32 %v1667, %v1693
    %v1704 = vadd.f32 %v1668, %v1693
    %v1705 = vadd.f32 %v1669, %v1693
    %v1706 = vadd.f32 %v1670, %v1693
    %v1707 = vadd.f32 %v1671, %v1693
    %v1708 = vadd.f32 %v1672, %v1693
    %v1709 = vadd.f32 %v1673, %v1693
    %v1710 = vadd.f32 %v1674, %v1693
    %v1711 = vadd.f32 %v1675, %v1693
    %v1712 = vadd.f32 %v1676, %v1693
    %v1713 = vadd.f32 %v1677, %v1693
    %v1714 = vadd.f32 %v1678, %v1693
    %v1715 = vadd.f32 %v1679, %v1693
    %v1716 = vadd.f32 %v1680, %v1693
    %v1717 = vadd.f32 %v1681, %v1693
    %v1718 = vadd.f32 %v1682, %v1693
    %v1719 = vadd.f32 %v1683, %v1693
    %v1720 = vadd.f32 %v1684, %v1693
    %v1721 = vadd.f32 %v1685, %v1693
    %v1722 = vadd.f32 %v1686, %v1693
    %v1723 = vadd.f32 %v1687, %v1693
    %v1724 = vadd.f32 %v1688, %v1693
    %v1725 = vadd.f32 %v1689, %v1693
    %v1726 = vmul.f32 %v1694, %v1694
    %v1727 = vmul.f32 %v1695, %v1695
    %v1728 = vmul.f32 %v1696, %v1696
    %v1729 = vmul.f32 %v1697, %v1697
    %v1730 = vmul.f32 %v1698, %v1698
    %v1731 = vmul.f32 %v1699, %v1699
    %v1732 = vmul.f32 %v1700, %v1700
    %v1733 = vmul.f32 %v1701, %v1701
    %v1734 = vmul.f32 %v1702, %v1702
    %v1735 = vmul.f32 %v1703, %v1703
    %v1736 = vmul.f32 %v1704, %v1704
    %v1737 = vmul.f32 %v1705, %v1705
    %v1738 = vmul.f32 %v1706, %v1706
    %v1739 = vmul.f32 %v1707, %v1707
    %v1740 = vmul.f32 %v1708, %v1708
    %v1741 = vmul.f32 %v1709, %v1709
    %v1742 = vmul.f32 %v1710, %v1710
    %v1743 = vmul.f32 %v1711, %v1711
    %v1744 = vmul.f32 %v1712, %v1712
    %v1745 = vmul.f32 %v1713, %v1713
    %v1746 = vmul.f32 %v1714, %v1714
    %v1747 = vmul.f32 %v1715, %v1715
    %v1748 = vmul.f32 %v1716, %v1716
    %v1749 = vmul.f32 %v1717, %v1717
    %v1750 = vmul.f32 %v1718, %v1718
    %v1751 = vmul.f32 %v1719, %v1719
    %v1752 = vmul.f32 %v1720, %v1720
    %v1753 = vmul.f32 %v1721, %v1721
    %v1754 = vmul.f32 %v1722, %v1722
    %v1755 = vmul.f32 %v1723, %v1723
    %v1756 = vmul.f32 %v1724, %v1724
    %v1757 = vmul.f32 %v1725, %v1725
    %1758 = vadd.xlane.f32.xlu0 %v1726
    %v1759 = vpop.xlane.xlu0 %1758
    %1760 = vadd.xlane.f32.xlu0 %v1727
    %v1761 = vpop.xlane.xlu0 %1760
    %1762 = vadd.xlane.f32.xlu0 %v1728
    %v1763 = vpop.xlane.xlu0 %1762
    %1764 = vadd.xlane.f32.xlu0 %v1729
    %v1765 = vpop.xlane.xlu0 %1764
    %1766 = vadd.xlane.f32.xlu0 %v1730
    %v1767 = vpop.xlane.xlu0 %1766
    %1768 = vadd.xlane.f32.xlu0 %v1731
    %v1769 = vpop.xlane.xlu0 %1768
    %1770 = vadd.xlane.f32.xlu0 %v1732
    %v1771 = vpop.xlane.xlu0 %1770
    %1772 = vadd.xlane.f32.xlu0 %v1733
    %v1773 = vpop.xlane.xlu0 %1772
    %1774 = vadd.xlane.f32.xlu0 %v1734
    %v1775 = vpop.xlane.xlu0 %1774
    %1776 = vadd.xlane.f32.xlu0 %v1735
    %v1777 = vpop.xlane.xlu0 %1776
    %1778 = vadd.xlane.f32.xlu0 %v1736
    %v1779 = vpop.xlane.xlu0 %1778
    %1780 = vadd.xlane.f32.xlu0 %v1737
    %v1781 = vpop.xlane.xlu0 %1780
    %1782 = vadd.xlane.f32.xlu0 %v1738
    %v1783 = vpop.xlane.xlu0 %1782
    %1784 = vadd.xlane.f32.xlu0 %v1739
    %v1785 = vpop.xlane.xlu0 %1784
    %1786 = vadd.xlane.f32.xlu0 %v1740
    %v1787 = vpop.xlane.xlu0 %1786
    %1788 = vadd.xlane.f32.xlu0 %v1741
    %v1789 = vpop.xlane.xlu0 %1788
    %1790 = vadd.xlane.f32.xlu0 %v1742
    %v1791 = vpop.xlane.xlu0 %1790
    %1792 = vadd.xlane.f32.xlu0 %v1743
    %v1793 = vpop.xlane.xlu0 %1792
    %1794 = vadd.xlane.f32.xlu0 %v1744
    %v1795 = vpop.xlane.xlu0 %1794
    %1796 = vadd.xlane.f32.xlu0 %v1745
    %v1797 = vpop.xlane.xlu0 %1796
    %1798 = vadd.xlane.f32.xlu0 %v1746
    %v1799 = vpop.xlane.xlu0 %1798
    %1800 = vadd.xlane.f32.xlu0 %v1747
    %v1801 = vpop.xlane.xlu0 %1800
    %1802 = vadd.xlane.f32.xlu0 %v1748
    %v1803 = vpop.xlane.xlu0 %1802
    %1804 = vadd.xlane.f32.xlu0 %v1749
    %v1805 = vpop.xlane.xlu0 %1804
    %1806 = vadd.xlane.f32.xlu0 %v1750
    %v1807 = vpop.xlane.xlu0 %1806
    %1808 = vadd.xlane.f32.xlu0 %v1751
    %v1809 = vpop.xlane.xlu0 %1808
    %1810 = vadd.xlane.f32.xlu0 %v1752
    %v1811 = vpop.xlane.xlu0 %1810
    %1812 = vadd.xlane.f32.xlu0 %v1753
    %v1813 = vpop.xlane.xlu0 %1812
    %1814 = vadd.xlane.f32.xlu0 %v1754
    %v1815 = vpop.xlane.xlu0 %1814
    %1816 = vadd.xlane.f32.xlu0 %v1755
    %v1817 = vpop.xlane.xlu0 %1816
    %1818 = vadd.xlane.f32.xlu0 %v1756
    %v1819 = vpop.xlane.xlu0 %1818
    %1820 = vadd.xlane.f32.xlu0 %v1757
    %v1821 = vpop.xlane.xlu0 %1820
    %v1822 = vmax.f32 %v1759, 1e-24
    %v1823 = vmax.f32 %v1761, 1e-24
    %v1824 = vmax.f32 %v1763, 1e-24
    %v1825 = vmax.f32 %v1765, 1e-24
    %v1826 = vmax.f32 %v1767, 1e-24
    %v1827 = vmax.f32 %v1769, 1e-24
    %v1828 = vmax.f32 %v1771, 1e-24
    %v1829 = vmax.f32 %v1773, 1e-24
    %v1830 = vmax.f32 %v1775, 1e-24
    %v1831 = vmax.f32 %v1777, 1e-24
    %v1832 = vmax.f32 %v1779, 1e-24
    %v1833 = vmax.f32 %v1781, 1e-24
    %v1834 = vmax.f32 %v1783, 1e-24
    %v1835 = vmax.f32 %v1785, 1e-24
    %v1836 = vmax.f32 %v1787, 1e-24
    %v1837 = vmax.f32 %v1789, 1e-24
    %v1838 = vmax.f32 %v1791, 1e-24
    %v1839 = vmax.f32 %v1793, 1e-24
    %v1840 = vmax.f32 %v1795, 1e-24
    %v1841 = vmax.f32 %v1797, 1e-24
    %v1842 = vmax.f32 %v1799, 1e-24
    %v1843 = vmax.f32 %v1801, 1e-24
    %v1844 = vmax.f32 %v1803, 1e-24
    %v1845 = vmax.f32 %v1805, 1e-24
    %v1846 = vmax.f32 %v1807, 1e-24
    %v1847 = vmax.f32 %v1809, 1e-24
    %v1848 = vmax.f32 %v1811, 1e-24
    %v1849 = vmax.f32 %v1813, 1e-24
    %v1850 = vmax.f32 %v1815, 1e-24
    %v1851 = vmax.f32 %v1817, 1e-24
    %v1852 = vmax.f32 %v1819, 1e-24
    %v1853 = vmax.f32 %v1821, 1e-24
    %v1854 = vrsqrt.pop %v1822
    %v1855 = vrsqrt.pop %v1823
    %v1856 = vrsqrt.pop %v1824
    %v1857 = vrsqrt.pop %v1825
    %v1858 = vrsqrt.pop %v1826
    %v1859 = vrsqrt.pop %v1827
    %v1860 = vrsqrt.pop %v1828
    %v1861 = vrsqrt.pop %v1829
    %v1862 = vrsqrt.pop %v1830
    %v1863 = vrsqrt.pop %v1831
    %v1864 = vrsqrt.pop %v1832
    %v1865 = vrsqrt.pop %v1833
    %v1866 = vrsqrt.pop %v1834
    %v1867 = vrsqrt.pop %v1835
    %v1868 = vrsqrt.pop %v1836
    %v1869 = vrsqrt.pop %v1837
    %v1870 = vrsqrt.pop %v1838
    %v1871 = vrsqrt.pop %v1839
    %v1872 = vrsqrt.pop %v1840
    %v1873 = vrsqrt.pop %v1841
    %v1874 = vrsqrt.pop %v1842
    %v1875 = vrsqrt.pop %v1843
    %v1876 = vrsqrt.pop %v1844
    %v1877 = vrsqrt.pop %v1845
    %v1878 = vrsqrt.pop %v1846
    %v1879 = vrsqrt.pop %v1847
    %v1880 = vrsqrt.pop %v1848
    %v1881 = vrsqrt.pop %v1849
    %v1882 = vrsqrt.pop %v1850
    %v1883 = vrsqrt.pop %v1851
    %v1884 = vrsqrt.pop %v1852
    %v1885 = vrsqrt.pop %v1853
    %v1886 = vmul.f32 %v1694, %v1854
    %v1887 = vmul.f32 %v1695, %v1855
    %v1888 = vmul.f32 %v1696, %v1856
    %v1889 = vmul.f32 %v1697, %v1857
    %v1890 = vmul.f32 %v1698, %v1858
    %v1891 = vmul.f32 %v1699, %v1859
    %v1892 = vmul.f32 %v1700, %v1860
    %v1893 = vmul.f32 %v1701, %v1861
    %v1894 = vmul.f32 %v1702, %v1862
    %v1895 = vmul.f32 %v1703, %v1863
    %v1896 = vmul.f32 %v1704, %v1864
    %v1897 = vmul.f32 %v1705, %v1865
    %v1898 = vmul.f32 %v1706, %v1866
    %v1899 = vmul.f32 %v1707, %v1867
    %v1900 = vmul.f32 %v1708, %v1868
    %v1901 = vmul.f32 %v1709, %v1869
    %v1902 = vmul.f32 %v1710, %v1870
    %v1903 = vmul.f32 %v1711, %v1871
    %v1904 = vmul.f32 %v1712, %v1872
    %v1905 = vmul.f32 %v1713, %v1873
    %v1906 = vmul.f32 %v1714, %v1874
    %v1907 = vmul.f32 %v1715, %v1875
    %v1908 = vmul.f32 %v1716, %v1876
    %v1909 = vmul.f32 %v1717, %v1877
    %v1910 = vmul.f32 %v1718, %v1878
    %v1911 = vmul.f32 %v1719, %v1879
    %v1912 = vmul.f32 %v1720, %v1880
    %v1913 = vmul.f32 %v1721, %v1881
    %v1914 = vmul.f32 %v1722, %v1882
    %v1915 = vmul.f32 %v1723, %v1883
    %v1916 = vmul.f32 %v1724, %v1884
    %v1917 = vmul.f32 %v1725, %v1885
    %1918 = vst [vmem:[#allocation10] sm:$0xff] %v1886
    %1919 = vst [vmem:[#allocation10 + $0x8] sm:$0xff] %v1887
    %1920 = vst [vmem:[#allocation10 + $0x10] sm:$0xff] %v1888
    %1921 = vst [vmem:[#allocation10 + $0x18] sm:$0xff] %v1889
    %1922 = vst [vmem:[#allocation10 + $0x20] sm:$0xff] %v1890
    %1923 = vst [vmem:[#allocation10 + $0x28] sm:$0xff] %v1891
    %1924 = vst [vmem:[#allocation10 + $0x30] sm:$0xff] %v1892
    %1925 = vst [vmem:[#allocation10 + $0x38] sm:$0xff] %v1893
    %1926 = vst [vmem:[#allocation10 + $0x40] sm:$0xff] %v1894
    %1927 = vst [vmem:[#allocation10 + $0x48] sm:$0xff] %v1895
    %1928 = vst [vmem:[#allocation10 + $0x50] sm:$0xff] %v1896
    %1929 = vst [vmem:[#allocation10 + $0x58] sm:$0xff] %v1897
    %1930 = vst [vmem:[#allocation10 + $0x60] sm:$0xff] %v1898
    %1931 = vst [vmem:[#allocation10 + $0x68] sm:$0xff] %v1899
    %1932 = vst [vmem:[#allocation10 + $0x70] sm:$0xff] %v1900
    %1933 = vst [vmem:[#allocation10 + $0x78] sm:$0xff] %v1901
    %1934 = vst [vmem:[#allocation10 + $0x80] sm:$0xff] %v1902
    %1935 = vst [vmem:[#allocation10 + $0x88] sm:$0xff] %v1903
    %1936 = vst [vmem:[#allocation10 + $0x90] sm:$0xff] %v1904
    %1937 = vst [vmem:[#allocation10 + $0x98] sm:$0xff] %v1905
    %1938 = vst [vmem:[#allocation10 + $0xa0] sm:$0xff] %v1906
    %1939 = vst [vmem:[#allocation10 + $0xa8] sm:$0xff] %v1907
    %1940 = vst [vmem:[#allocation10 + $0xb0] sm:$0xff] %v1908
    %1941 = vst [vmem:[#allocation10 + $0xb8] sm:$0xff] %v1909
    %1942 = vst [vmem:[#allocation10 + $0xc0] sm:$0xff] %v1910
    %1943 = vst [vmem:[#allocation10 + $0xc8] sm:$0xff] %v1911
    %1944 = vst [vmem:[#allocation10 + $0xd0] sm:$0xff] %v1912
    %1945 = vst [vmem:[#allocation10 + $0xd8] sm:$0xff] %v1913
    %1946 = vst [vmem:[#allocation10 + $0xe0] sm:$0xff] %v1914
    %1947 = vst [vmem:[#allocation10 + $0xe8] sm:$0xff] %v1915
    %1948 = vst [vmem:[#allocation10 + $0xf0] sm:$0xff] %v1916
    %1949 = vst [vmem:[#allocation10 + $0xf8] sm:$0xff] %v1917
    // Predicated region
    $region38: #{tpu_custom_call.1} parent=1 // pred_check
      _
    $region39: #{tpu_custom_call.1} parent=1 // pred_check_branch
      %1951 = sbr.rel (0) target = $region41
    $region40: #{tpu_custom_call.1} parent=1 // pred_region
      %s1953 = ssub.s32 4096, 4096
      %1954 = vsyncadd [#allocation4], %s1953
      %s1955 = sshll.u32 [#allocation10], 4
      %s1956 = int_to_ptr.vmem [resolvable:$true] %s1955
      %1961 = dma.vmem_to_hbm [thread:$0]  %s1956, 4096, %s5, [#allocation4], 128, 128, 8
    $region41: #{tpu_custom_call.1} parent=1 // pred_fallthru
      _
    // Predicated region
    $region42: #{tpu_custom_call.1} parent=1 // pred_check
      _
    $region43: #{tpu_custom_call.1} parent=1 // pred_check_branch
      %1963 = sbr.rel (0) target = $region45
    $region44: #{tpu_custom_call.1} parent=1 // pred_region
      %1964 = dma.done [#allocation4], 4096
    $region45: #{tpu_custom_call.1} parent=1 // pred_fallthru
      _
    %1965 = vsyncpa [#allocation3], 1
    %1966 = vsyncpa [#allocation6], 1
    %1967 = vsyncpa [#allocation9], 1
    %1968 = vsyncpa [#allocation4], 1

</llo_original>
